<compile_context>
chip_gen: v6e
topology: v6e:2x2x1
jax: 0.10.0
libtpu: 0.0.40
codegen_flags: <defaults>
</compile_context>

<pallas_src>
import functools

import jax
import jax.numpy as jnp
import numpy as np
from jax.experimental import pallas as pl
from jax.experimental.pallas import tpu as pltpu


# ----------------------------- Pallas kernel -------------------------------


def _sigmoid(v):
    # Exact divide (not pl.reciprocal(approx=True)): keeps parity with
    # torch.sigmoid; this kernel is overhead/latency-bound, not VALU-bound.
    return 1.0 / (1.0 + jnp.exp(-v))


def mdn_forward_kernel(
    xin_ref,                 # [x | gumbel | eps]  (block_b, dim_in + K + K*D)
    w1_ref, b1_ref,          # fused layer 1: [pi | normal]        (dim_in, 2H)
    w2_ref, b2_ref,          # fused block-diag layer 2            (2H, K + H)
    nw3_ref, nb3_ref,        # normal-net layer 3                  (H, 2*K*D)
    out_ref,                 # (block_b, D)
    *, hidden, n_components, dim_out, dim_in, max_action,
):
    H, K, D = hidden, n_components, dim_out
    kd = K * D

    xin = xin_ref[...]
    bt = xin.shape[0]
    x = xin[:, :dim_in]
    gumbel = xin[:, dim_in:dim_in + K]
    eps = xin[:, dim_in + K:]

    # --- fused layer 1 (pi-net and normal-net share the same LHS x) ---
    act1 = jnp.dot(x, w1_ref[...], preferred_element_type=jnp.float32) + b1_ref[...]
    h = jnp.maximum(act1[:, :H], 0.0)      # pi branch: ReLU
    g1 = _sigmoid(act1[:, H:])             # normal branch: Sigmoid

    # --- fused block-diag layer 2: LHS = [h | g1], W2 = blockdiag(pw2, nw2) ---
    lhs2 = jnp.concatenate([h, g1], axis=1)                       # (bt, 2H)
    act2 = jnp.dot(lhs2, w2_ref[...], preferred_element_type=jnp.float32) + b2_ref[...]
    logits = act2[:, :K]                                          # pi logits
    g2 = _sigmoid(act2[:, K:])                                    # normal hidden 2

    # --- normal-net layer 3: mixture parameters (bt, 2*K*D) ---
    params = jnp.dot(g2, nw3_ref[...], preferred_element_type=jnp.float32) + nb3_ref[...]
    mean = params[:, :kd]         # component k lives at cols [k*D, (k+1)*D)
    log_sd = params[:, kd:]

    # --- OneHotCategorical(logits).sample() via Gumbel-max ---
    # First-max tie-break (min index attaining the max), matching jnp.argmax.
    z = logits + gumbel                                           # (bt, K)
    zmax = jnp.max(z, axis=1, keepdims=True)
    iota_k = jax.lax.broadcasted_iota(jnp.int32, z.shape, 1)
    idx = jnp.min(jnp.where(z >= zmax, iota_k, K), axis=1, keepdims=True)  # (bt,1) i32

    # --- select chosen component's D-wide block BEFORE the exp ---
    # Lane-range test on an undivided int32 iota: cheap VPU compare/select only.
    lane = jax.lax.broadcasted_iota(jnp.int32, (bt, kd), 1)
    lo = idx * D
    sel = (lane >= lo) & (lane < lo + D)                          # (bt, K*D) bool

    def block_sum(t):             # masked (bt, K*D) -> (bt, D); unrolled over K
        m = jnp.where(sel, t, 0.0)
        s = m[:, 0:D]
        for k in range(1, K):
            s = s + m[:, k * D:(k + 1) * D]
        return s

    mean_sel = block_sum(mean)
    lsd_sel = block_sum(log_sd)
    eps_sel = block_sum(eps)

    # Normal(mean, exp(log_sd)).sample() via reparameterization, selected block only.
    mixed = mean_sel + jnp.exp(lsd_sel) * eps_sel
    out_ref[...] = jnp.clip(mixed, -max_action, max_action)


# --------------------------- parameter preparation ---------------------------


def prepare_params(p, *, hidden, n_components):
    """One-time fusion of the sub-network weights (hoisted out of the forward)."""
    H, K = hidden, n_components
    # Layer 1: both sub-nets consume the same x -> concatenate along fan-out.
    w1 = jnp.concatenate([p["pw1"], p["nw1"]], axis=1)            # (dim_in, 2H)
    b1 = jnp.concatenate([p["pb1"], p["nb1"]], axis=1)            # (1, 2H)
    # Layer 2: block-diagonal [[pw2, 0], [0, nw2]] so one dot serves both nets.
    w2 = jnp.zeros((2 * H, K + H), jnp.float32)
    w2 = w2.at[:H, :K].set(p["pw2"])
    w2 = w2.at[H:, K:].set(p["nw2"])
    b2 = jnp.concatenate([p["pb2"], p["nb2"]], axis=1)            # (1, K+H)
    return {"w1": w1, "b1": b1, "w2": w2, "b2": b2,
            "nw3": p["nw3"], "nb3": p["nb3"]}


# ------------------------------- wrapper -------------------------------------


def mdn_forward(x, prepped, gumbel, eps, *, n_components, dim_out, max_action,
                hidden, block_b=1024):
    B, dim_in = x.shape
    K = n_components
    kd = K * dim_out
    width = dim_in + K + kd

    # One streamed slab per row: [x | gumbel | eps] -> a single DMA per grid step.
    xin = jnp.concatenate([x, gumbel, eps], axis=1)               # (B, width)

    # Batch tile: full-extent if the batch fits one tile, otherwise a multiple
    # of 8 (sublane).  NO padding: Pallas masks the ragged last block; safe
    # because all kernel math is row-independent.
    if B <= block_b:
        block_b = B
    else:
        block_b = max(8, (block_b // 8) * 8)
    grid = (pl.cdiv(B, block_b),)

    batch_map = lambda i: (i, 0)     # tiles the batch axis
    const_map = lambda i: (0, 0)     # weights stay VMEM-resident across steps

    in_specs = [
        pl.BlockSpec((block_b, width), batch_map),                # [x|gumbel|eps]
        pl.BlockSpec(prepped["w1"].shape, const_map),
        pl.BlockSpec(prepped["b1"].shape, const_map),
        pl.BlockSpec(prepped["w2"].shape, const_map),
        pl.BlockSpec(prepped["b2"].shape, const_map),
        pl.BlockSpec(prepped["nw3"].shape, const_map),
        pl.BlockSpec(prepped["nb3"].shape, const_map),
    ]
    out_specs = pl.BlockSpec((block_b, dim_out), batch_map)

    kernel = functools.partial(
        mdn_forward_kernel,
        hidden=hidden, n_components=K, dim_out=dim_out, dim_in=dim_in,
        max_action=max_action,
    )
    return pl.pallas_call(
        kernel,
        grid=grid,
        in_specs=in_specs,
        out_specs=out_specs,
        out_shape=jax.ShapeDtypeStruct((B, dim_out), jnp.float32),
        compiler_params=pltpu.CompilerParams(
            # Batch tiles are independent -> v7x can shard them across its two
            # TensorCores (no effect on single-TC v5e/v6e).
            dimension_semantics=("parallel",),
        ),
    )(xin, prepped["w1"], prepped["b1"], prepped["w2"], prepped["b2"],
      prepped["nw3"], prepped["nb3"])


# --------------------------- pure-JAX reference ------------------------------


def mdn_forward_ref(x, p, gumbel, eps, *, n_components, dim_out, max_action):
    hi = jax.lax.Precision.HIGHEST
    h = jax.nn.relu(jnp.dot(x, p["pw1"], precision=hi) + p["pb1"])
    logits = jnp.dot(h, p["pw2"], precision=hi) + p["pb2"]
    g1 = jax.nn.sigmoid(jnp.dot(x, p["nw1"], precision=hi) + p["nb1"])
    g2 = jax.nn.sigmoid(jnp.dot(g1, p["nw2"], precision=hi) + p["nb2"])
    params = jnp.dot(g2, p["nw3"], precision=hi) + p["nb3"]
    kd = n_components * dim_out
    mean = params[:, :kd].reshape(-1, n_components, dim_out)
    sd = jnp.exp(params[:, kd:]).reshape(-1, n_components, dim_out)
    sample = mean + sd * eps.reshape(-1, n_components, dim_out)
    idx = jnp.argmax(logits + gumbel, axis=1)
    onehot = jax.nn.one_hot(idx, n_components, dtype=jnp.float32)
    mixed = jnp.sum(onehot[:, :, None] * sample, axis=1)
    return jnp.clip(mixed, -max_action, max_action)


# ------------------------------- main ---------------------------------------


def _linear_init(key, fan_in, fan_out):
    # PyTorch nn.Linear default: U(-1/sqrt(fan_in), 1/sqrt(fan_in))
    k1, k2 = jax.random.split(key)
    bound = 1.0 / np.sqrt(fan_in)
    w = jax.random.uniform(k1, (fan_in, fan_out), jnp.float32, -bound, bound)
    b = jax.random.uniform(k2, (1, fan_out), jnp.float32, -bound, bound)
    return w, b


if __name__ == "__main__":
    # Small, forward-consistent shapes.  block_b=256 with B=512 gives grid=(2,)
    # so both v7x TensorCores are exercised; production batches use the default
    # block_b=1024.
    B, dim_in, dim_out, n_components, H = 512, 16, 8, 4, 32
    max_action = 1.0
    block_b = 256

    key = jax.random.PRNGKey(0)
    keys = jax.random.split(key, 8)

    p = {}
    p["pw1"], p["pb1"] = _linear_init(keys[0], dim_in, H)
    p["pw2"], p["pb2"] = _linear_init(keys[1], H, n_components)
    p["nw1"], p["nb1"] = _linear_init(keys[2], dim_in, H)
    p["nw2"], p["nb2"] = _linear_init(keys[3], H, H)
    p["nw3"], p["nb3"] = _linear_init(keys[4], H, 2 * dim_out * n_components)

    x = jax.random.normal(keys[5], (B, dim_in), jnp.float32)
    gumbel = jax.random.gumbel(keys[6], (B, n_components), jnp.float32)
    eps = jax.random.normal(keys[7], (B, n_components * dim_out), jnp.float32)

    prepped = prepare_params(p, hidden=H, n_components=n_components)

    out = mdn_forward(
        x, prepped, gumbel, eps,
        n_components=n_components, dim_out=dim_out, max_action=max_action,
        hidden=H, block_b=block_b,
    )
    out = jax.block_until_ready(out)

    ref = mdn_forward_ref(
        x, p, gumbel, eps,
        n_components=n_components, dim_out=dim_out, max_action=max_action,
    )
    np.testing.assert_allclose(np.asarray(out), np.asarray(ref), rtol=1e-3, atol=1e-3)
    assert out.shape == (B, dim_out)

    print("KERNEL_OK")
</pallas_src>

<mosaic_0001>
module attributes {stable_mosaic.version = 11 : i64} {
  func.func @mdn_forward_kernel(%arg0: i32, %arg1: memref<256x52xf32, #tpu.memory_space<vmem>>, %arg2: memref<16x64xf32, #tpu.memory_space<vmem>>, %arg3: memref<1x64xf32, #tpu.memory_space<vmem>>, %arg4: memref<64x36xf32, #tpu.memory_space<vmem>>, %arg5: memref<1x36xf32, #tpu.memory_space<vmem>>, %arg6: memref<32x64xf32, #tpu.memory_space<vmem>>, %arg7: memref<1x64xf32, #tpu.memory_space<vmem>>, %arg8: memref<256x8xf32, #tpu.memory_space<vmem>>) attributes {dimension_semantics = [#tpu.dimension_semantics<parallel>], iteration_bounds = array<i64: 2>, scalar_prefetch = 0 : i64, scratch_operands = 0 : i64, tpu.core_type = #tpu.core_type<tc>, window_params = [{transform_indices = @transform_0, window_bounds = array<i64: 256, 52>}, {pipeline_mode = #tpu.pipeline_mode<synchronous>, transform_indices = @transform_1, window_bounds = array<i64: 16, 64>}, {pipeline_mode = #tpu.pipeline_mode<synchronous>, transform_indices = @transform_2, window_bounds = array<i64: 1, 64>}, {pipeline_mode = #tpu.pipeline_mode<synchronous>, transform_indices = @transform_3, window_bounds = array<i64: 64, 36>}, {pipeline_mode = #tpu.pipeline_mode<synchronous>, transform_indices = @transform_4, window_bounds = array<i64: 1, 36>}, {pipeline_mode = #tpu.pipeline_mode<synchronous>, transform_indices = @transform_5, window_bounds = array<i64: 32, 64>}, {pipeline_mode = #tpu.pipeline_mode<synchronous>, transform_indices = @transform_6, window_bounds = array<i64: 1, 64>}, {transform_indices = @transform_7, window_bounds = array<i64: 256, 8>}]} {
    %c0 = arith.constant 0 : index
    %c0_0 = arith.constant 0 : index
    %0 = vector.load %arg1[%c0, %c0_0] : memref<256x52xf32, #tpu.memory_space<vmem>>, vector<256x52xf32>
    %1 = vector.extract_strided_slice %0 {offsets = [0, 0], sizes = [256, 16], strides = [1, 1]} : vector<256x52xf32> to vector<256x16xf32>
    %2 = vector.extract_strided_slice %0 {offsets = [0, 16], sizes = [256, 4], strides = [1, 1]} : vector<256x52xf32> to vector<256x4xf32>
    %3 = vector.extract_strided_slice %0 {offsets = [0, 20], sizes = [256, 32], strides = [1, 1]} : vector<256x52xf32> to vector<256x32xf32>
    %c0_1 = arith.constant 0 : index
    %c0_2 = arith.constant 0 : index
    %4 = vector.load %arg2[%c0_1, %c0_2] : memref<16x64xf32, #tpu.memory_space<vmem>>, vector<16x64xf32>
    %cst = arith.constant dense<0.000000e+00> : vector<256x64xf32>
    %5 = tpu.matmul %1, %4, %cst {dimension_numbers = #tpu.dot_dimension_numbers<[1], [0], [0], [1], [0, 0, 1, 1], [], []>} : vector<256x16xf32>, vector<16x64xf32>, vector<256x64xf32> -> vector<256x64xf32>
    %c0_3 = arith.constant 0 : index
    %c0_4 = arith.constant 0 : index
    %6 = vector.load %arg3[%c0_3, %c0_4] : memref<1x64xf32, #tpu.memory_space<vmem>>, vector<1x64xf32>
    %7 = vector.broadcast %6 : vector<1x64xf32> to vector<256x64xf32>
    %8 = arith.addf %5, %7 : vector<256x64xf32>
    %9 = vector.extract_strided_slice %8 {offsets = [0, 0], sizes = [256, 32], strides = [1, 1]} : vector<256x64xf32> to vector<256x32xf32>
    %cst_5 = arith.constant 0.000000e+00 : f32
    %10 = vector.broadcast %cst_5 : f32 to vector<256x32xf32>
    %11 = arith.maximumf %9, %10 : vector<256x32xf32>
    %12 = vector.extract_strided_slice %8 {offsets = [0, 32], sizes = [256, 32], strides = [1, 1]} : vector<256x64xf32> to vector<256x32xf32>
    %cst_6 = arith.constant 0.000000e+00 : f32
    %13 = vector.broadcast %cst_6 : f32 to vector<256x32xf32>
    %14 = arith.subf %13, %12 : vector<256x32xf32>
    %15 = math.exp %14 : vector<256x32xf32>
    %cst_7 = arith.constant 1.000000e+00 : f32
    %16 = vector.broadcast %cst_7 : f32 to vector<256x32xf32>
    %17 = arith.addf %16, %15 : vector<256x32xf32>
    %cst_8 = arith.constant 1.000000e+00 : f32
    %18 = vector.broadcast %cst_8 : f32 to vector<256x32xf32>
    %19 = arith.divf %18, %17 : vector<256x32xf32>
    %20 = tpu.concatenate %11, %19 in 1 : vector<256x32xf32>, vector<256x32xf32> -> vector<256x64xf32>
    %c0_9 = arith.constant 0 : index
    %c0_10 = arith.constant 0 : index
    %21 = vector.load %arg4[%c0_9, %c0_10] : memref<64x36xf32, #tpu.memory_space<vmem>>, vector<64x36xf32>
    %cst_11 = arith.constant dense<0.000000e+00> : vector<256x36xf32>
    %22 = tpu.matmul %20, %21, %cst_11 {dimension_numbers = #tpu.dot_dimension_numbers<[1], [0], [0], [1], [0, 0, 1, 1], [], []>} : vector<256x64xf32>, vector<64x36xf32>, vector<256x36xf32> -> vector<256x36xf32>
    %c0_12 = arith.constant 0 : index
    %c0_13 = arith.constant 0 : index
    %23 = vector.load %arg5[%c0_12, %c0_13] : memref<1x36xf32, #tpu.memory_space<vmem>>, vector<1x36xf32>
    %24 = vector.broadcast %23 : vector<1x36xf32> to vector<256x36xf32>
    %25 = arith.addf %22, %24 : vector<256x36xf32>
    %26 = vector.extract_strided_slice %25 {offsets = [0, 0], sizes = [256, 4], strides = [1, 1]} : vector<256x36xf32> to vector<256x4xf32>
    %27 = vector.extract_strided_slice %25 {offsets = [0, 4], sizes = [256, 32], strides = [1, 1]} : vector<256x36xf32> to vector<256x32xf32>
    %cst_14 = arith.constant 0.000000e+00 : f32
    %28 = vector.broadcast %cst_14 : f32 to vector<256x32xf32>
    %29 = arith.subf %28, %27 : vector<256x32xf32>
    %30 = math.exp %29 : vector<256x32xf32>
    %cst_15 = arith.constant 1.000000e+00 : f32
    %31 = vector.broadcast %cst_15 : f32 to vector<256x32xf32>
    %32 = arith.addf %31, %30 : vector<256x32xf32>
    %cst_16 = arith.constant 1.000000e+00 : f32
    %33 = vector.broadcast %cst_16 : f32 to vector<256x32xf32>
    %34 = arith.divf %33, %32 : vector<256x32xf32>
    %c0_17 = arith.constant 0 : index
    %c0_18 = arith.constant 0 : index
    %35 = vector.load %arg6[%c0_17, %c0_18] : memref<32x64xf32, #tpu.memory_space<vmem>>, vector<32x64xf32>
    %cst_19 = arith.constant dense<0.000000e+00> : vector<256x64xf32>
    %36 = tpu.matmul %34, %35, %cst_19 {dimension_numbers = #tpu.dot_dimension_numbers<[1], [0], [0], [1], [0, 0, 1, 1], [], []>} : vector<256x32xf32>, vector<32x64xf32>, vector<256x64xf32> -> vector<256x64xf32>
    %c0_20 = arith.constant 0 : index
    %c0_21 = arith.constant 0 : index
    %37 = vector.load %arg7[%c0_20, %c0_21] : memref<1x64xf32, #tpu.memory_space<vmem>>, vector<1x64xf32>
    %38 = vector.broadcast %37 : vector<1x64xf32> to vector<256x64xf32>
    %39 = arith.addf %36, %38 : vector<256x64xf32>
    %40 = vector.extract_strided_slice %39 {offsets = [0, 0], sizes = [256, 32], strides = [1, 1]} : vector<256x64xf32> to vector<256x32xf32>
    %41 = vector.extract_strided_slice %39 {offsets = [0, 32], sizes = [256, 32], strides = [1, 1]} : vector<256x64xf32> to vector<256x32xf32>
    %42 = arith.addf %26, %2 : vector<256x4xf32>
    %cst_22 = arith.constant dense<0xFF800000> : vector<256xf32>
    %43 = vector.multi_reduction <maximumf>, %42, %cst_22 [1] : vector<256x4xf32> to vector<256xf32>
    %44 = vector.shape_cast %43 : vector<256xf32> to vector<256x1xf32>
    %45 = tpu.iota {dimensions = array<i32: 1>} : vector<256x4xi32>
    %46 = vector.broadcast %44 : vector<256x1xf32> to vector<256x4xf32>
    %47 = arith.cmpf oge, %42, %46 : vector<256x4xf32>
    %c4_i32 = arith.constant 4 : i32
    %48 = vector.broadcast %c4_i32 : i32 to vector<256x4xi32>
    %49 = arith.select %47, %45, %48 : vector<256x4xi1>, vector<256x4xi32>
    %cst_23 = arith.constant dense<2147483647> : vector<256xi32>
    %50 = vector.multi_reduction <minsi>, %49, %cst_23 [1] : vector<256x4xi32> to vector<256xi32>
    %51 = vector.shape_cast %50 : vector<256xi32> to vector<256x1xi32>
    %52 = tpu.iota {dimensions = array<i32: 1>} : vector<256x32xi32>
    %c8_i32 = arith.constant 8 : i32
    %53 = vector.broadcast %c8_i32 : i32 to vector<256x1xi32>
    %54 = arith.muli %51, %53 : vector<256x1xi32>
    %55 = vector.broadcast %54 : vector<256x1xi32> to vector<256x32xi32>
    %56 = arith.cmpi sge, %52, %55 : vector<256x32xi32>
    %c8_i32_24 = arith.constant 8 : i32
    %57 = vector.broadcast %c8_i32_24 : i32 to vector<256x1xi32>
    %58 = arith.addi %54, %57 : vector<256x1xi32>
    %59 = vector.broadcast %58 : vector<256x1xi32> to vector<256x32xi32>
    %60 = arith.cmpi slt, %52, %59 : vector<256x32xi32>
    %61 = arith.andi %56, %60 : vector<256x32xi1>
    %cst_25 = arith.constant 0.000000e+00 : f32
    %62 = vector.broadcast %cst_25 : f32 to vector<256x32xf32>
    %63 = arith.select %61, %40, %62 : vector<256x32xi1>, vector<256x32xf32>
    %64 = vector.extract_strided_slice %63 {offsets = [0, 0], sizes = [256, 8], strides = [1, 1]} : vector<256x32xf32> to vector<256x8xf32>
    %65 = vector.extract_strided_slice %63 {offsets = [0, 8], sizes = [256, 8], strides = [1, 1]} : vector<256x32xf32> to vector<256x8xf32>
    %66 = arith.addf %64, %65 : vector<256x8xf32>
    %67 = vector.extract_strided_slice %63 {offsets = [0, 16], sizes = [256, 8], strides = [1, 1]} : vector<256x32xf32> to vector<256x8xf32>
    %68 = arith.addf %66, %67 : vector<256x8xf32>
    %69 = vector.extract_strided_slice %63 {offsets = [0, 24], sizes = [256, 8], strides = [1, 1]} : vector<256x32xf32> to vector<256x8xf32>
    %70 = arith.addf %68, %69 : vector<256x8xf32>
    %cst_26 = arith.constant 0.000000e+00 : f32
    %71 = vector.broadcast %cst_26 : f32 to vector<256x32xf32>
    %72 = arith.select %61, %41, %71 : vector<256x32xi1>, vector<256x32xf32>
    %73 = vector.extract_strided_slice %72 {offsets = [0, 0], sizes = [256, 8], strides = [1, 1]} : vector<256x32xf32> to vector<256x8xf32>
    %74 = vector.extract_strided_slice %72 {offsets = [0, 8], sizes = [256, 8], strides = [1, 1]} : vector<256x32xf32> to vector<256x8xf32>
    %75 = arith.addf %73, %74 : vector<256x8xf32>
    %76 = vector.extract_strided_slice %72 {offsets = [0, 16], sizes = [256, 8], strides = [1, 1]} : vector<256x32xf32> to vector<256x8xf32>
    %77 = arith.addf %75, %76 : vector<256x8xf32>
    %78 = vector.extract_strided_slice %72 {offsets = [0, 24], sizes = [256, 8], strides = [1, 1]} : vector<256x32xf32> to vector<256x8xf32>
    %79 = arith.addf %77, %78 : vector<256x8xf32>
    %cst_27 = arith.constant 0.000000e+00 : f32
    %80 = vector.broadcast %cst_27 : f32 to vector<256x32xf32>
    %81 = arith.select %61, %3, %80 : vector<256x32xi1>, vector<256x32xf32>
    %82 = vector.extract_strided_slice %81 {offsets = [0, 0], sizes = [256, 8], strides = [1, 1]} : vector<256x32xf32> to vector<256x8xf32>
    %83 = vector.extract_strided_slice %81 {offsets = [0, 8], sizes = [256, 8], strides = [1, 1]} : vector<256x32xf32> to vector<256x8xf32>
    %84 = arith.addf %82, %83 : vector<256x8xf32>
    %85 = vector.extract_strided_slice %81 {offsets = [0, 16], sizes = [256, 8], strides = [1, 1]} : vector<256x32xf32> to vector<256x8xf32>
    %86 = arith.addf %84, %85 : vector<256x8xf32>
    %87 = vector.extract_strided_slice %81 {offsets = [0, 24], sizes = [256, 8], strides = [1, 1]} : vector<256x32xf32> to vector<256x8xf32>
    %88 = arith.addf %86, %87 : vector<256x8xf32>
    %89 = math.exp %79 : vector<256x8xf32>
    %90 = arith.mulf %89, %88 : vector<256x8xf32>
    %91 = arith.addf %70, %90 : vector<256x8xf32>
    %cst_28 = arith.constant -1.000000e+00 : f32
    %cst_29 = arith.constant 1.000000e+00 : f32
    %92 = vector.broadcast %cst_28 : f32 to vector<256x8xf32>
    %93 = arith.maximumf %92, %91 : vector<256x8xf32>
    %94 = vector.broadcast %cst_29 : f32 to vector<256x8xf32>
    %95 = arith.minimumf %94, %93 : vector<256x8xf32>
    %c0_30 = arith.constant 0 : index
    %c0_31 = arith.constant 0 : index
    %96 = vector.load %arg8[%c0_30, %c0_31] : memref<256x8xf32, #tpu.memory_space<vmem>>, vector<256x8xf32>
    tpu.vector_store %arg8[%c0_30, %c0_31], %95 {strides = array<i32>} : memref<256x8xf32, #tpu.memory_space<vmem>>, vector<256x8xf32>,
    return
  }
  func.func @transform_0(%arg0: i32) -> (i32, i32) {
    %c0_i32 = arith.constant 0 : i32
    %c0_i32_0 = arith.constant 0 : i32
    return %arg0, %c0_i32 : i32, i32
  }
  func.func @transform_1(%arg0: i32) -> (i32, i32) {
    %c0_i32 = arith.constant 0 : i32
    %c0_i32_0 = arith.constant 0 : i32
    %c0_i32_1 = arith.constant 0 : i32
    return %c0_i32, %c0_i32_0 : i32, i32
  }
  func.func @transform_2(%arg0: i32) -> (i32, i32) {
    %c0_i32 = arith.constant 0 : i32
    %c0_i32_0 = arith.constant 0 : i32
    %c0_i32_1 = arith.constant 0 : i32
    return %c0_i32, %c0_i32_0 : i32, i32
  }
  func.func @transform_3(%arg0: i32) -> (i32, i32) {
    %c0_i32 = arith.constant 0 : i32
    %c0_i32_0 = arith.constant 0 : i32
    %c0_i32_1 = arith.constant 0 : i32
    return %c0_i32, %c0_i32_0 : i32, i32
  }
  func.func @transform_4(%arg0: i32) -> (i32, i32) {
    %c0_i32 = arith.constant 0 : i32
    %c0_i32_0 = arith.constant 0 : i32
    %c0_i32_1 = arith.constant 0 : i32
    return %c0_i32, %c0_i32_0 : i32, i32
  }
  func.func @transform_5(%arg0: i32) -> (i32, i32) {
    %c0_i32 = arith.constant 0 : i32
    %c0_i32_0 = arith.constant 0 : i32
    %c0_i32_1 = arith.constant 0 : i32
    return %c0_i32, %c0_i32_0 : i32, i32
  }
  func.func @transform_6(%arg0: i32) -> (i32, i32) {
    %c0_i32 = arith.constant 0 : i32
    %c0_i32_0 = arith.constant 0 : i32
    %c0_i32_1 = arith.constant 0 : i32
    return %c0_i32, %c0_i32_0 : i32, i32
  }
  func.func @transform_7(%arg0: i32) -> (i32, i32) {
    %c0_i32 = arith.constant 0 : i32
    %c0_i32_0 = arith.constant 0 : i32
    return %arg0, %c0_i32 : i32, i32
  }
}

</mosaic_0001>

<llo_original>
// kernel: tpu_custom_call.1
$region0: #{tpu_custom_call.1}
  #allocation0 [shape = 'u32[]', space=smem, size = 0x4, offset = 0x4, fixed_abs, tag = 'smem constant byte address 0x4 - core index']
  #allocation1 [shape = 'u32[144,128]{1,0:T(1,128)}', space=vmem, size = 0x12000, scoped, tag = 'internal scratch']
  %s0 = inlined_call_operand.vmem [shape: f32[512,52], index: 0, kind: input, shape index: {}]
  %s1 = inlined_call_operand.vmem [shape: f32[16,64], index: 1, kind: input, shape index: {}]
  %s2 = inlined_call_operand.vmem [shape: f32[1,64], index: 2, kind: input, shape index: {}]
  %s3 = inlined_call_operand.vmem [shape: f32[64,36], index: 3, kind: input, shape index: {}]
  %s4 = inlined_call_operand.vmem [shape: f32[1,36], index: 4, kind: input, shape index: {}]
  %s5 = inlined_call_operand.vmem [shape: f32[32,64], index: 5, kind: input, shape index: {}]
  %s6 = inlined_call_operand.vmem [shape: f32[1,64], index: 6, kind: input, shape index: {}]
  %s7 = inlined_call_operand.vmem [shape: f32[512,8], index: 7, kind: output, shape index: {}]
  %s8 = sld [smem:[#allocation0]]
  $region61: #{tpu_custom_call.1} parent=0
    _
  %s10 = ssub.s32 1, %s8
  %s11 = scalar_select 0, %s10, %s8
  loop: start=0, step=1, limit=4
  $region2: #{tpu_custom_call.1} parent=0 // loop_pre_header
    _
  $region3: #{tpu_custom_call.1} parent=0 // loop_header
    %s13 = sphi 0, %s17
    %p14 = scmp.ge.s32.totalorder %s13, 4
    %s23 = sphi 0, %s25
    %s26 = sphi 0, %s23
    %s27 = sphi 0, %s26
    %s43 = sphi 0, %s27
    %s47 = sphi 0, %s47
    %s49 = sphi 0, %s47
    %s50 = sphi 0, %s49
    %s64 = sphi 0, %s50
    %s68 = sphi 0, %s68
    %s70 = sphi 0, %s68
    %s71 = sphi 0, %s70
    %s85 = sphi 0, %s71
    %s89 = sphi 0, %s89
    %s91 = sphi 0, %s89
    %s92 = sphi 0, %s91
    %s106 = sphi 0, %s92
    %s110 = sphi 0, %s110
    %s112 = sphi 0, %s110
    %s113 = sphi 0, %s112
    %s127 = sphi 0, %s113
    %s131 = sphi 0, %s131
    %s133 = sphi 0, %s131
    %s134 = sphi 0, %s133
    %s148 = sphi 0, %s134
    %s152 = sphi 0, %s152
    %s154 = sphi 0, %s152
    %s155 = sphi 0, %s154
    %s169 = sphi 0, %s155
    %s175 = sphi 0, %s177
    %s178 = sphi 0, %s175
    %s179 = sphi 0, %s178
    %s195 = sphi 0, %s179
  $region4: #{tpu_custom_call.1} parent=0 // loop_header_branch
    %16 = sbr.rel (%p14) target = $region8
  $region5: #{tpu_custom_call.1} parent=0 // loop_body
    %s18 = ssub.s32 %s13, 1
    %s19 = ssub.s32 %s13, 2
    %s20 = sadd.s32 %s13, 1
    %s21 = ssub.s32 %s13, %s20
    %p22 = scmp.eq.s32.totalorder %s21, 0
    %s24 = sadd.s32 %s23, 1
    %s25 = scalar_select %p22, %s23, %s24
    %p28 = pneg %p22
    %p29 = scmp.eq.s32.totalorder %s13, 1
    %p30 = por %p28, %p29
    %p31 = scmp.ne.s32.totalorder %s23, %s26
    %p32 = scmp.eq.s32.totalorder %s13, 0
    %p33 = por %p31, %p32
    %p34 = scmp.ne.s32.totalorder %s23, %s26
    %p35 = scmp.eq.s32.totalorder %s18, 1
    %p36 = por %p34, %p35
    %p37 = scmp.ne.s32.totalorder %s26, %s27
    %p38 = scmp.eq.s32.totalorder %s18, 0
    %p39 = por %p37, %p38
    %p40 = scmp.ne.s32.totalorder %s26, %s27
    %p41 = scmp.eq.s32.totalorder %s19, 1
    %p42 = por %p40, %p41
    %p44 = scmp.ne.s32.totalorder %s27, %s43
    %p45 = scmp.eq.s32.totalorder %s19, 0
    %p46 = por %p44, %p45
    %s48 = sadd.s32 %s47, 1
    %p51 = scmp.eq.s32.totalorder %s13, 1
    %p52 = scmp.ne.s32.totalorder %s47, %s49
    %p53 = scmp.eq.s32.totalorder %s13, 0
    %p54 = por %p52, %p53
    %p55 = scmp.ne.s32.totalorder %s47, %s49
    %p56 = scmp.eq.s32.totalorder %s18, 1
    %p57 = por %p55, %p56
    %p58 = scmp.ne.s32.totalorder %s49, %s50
    %p59 = scmp.eq.s32.totalorder %s18, 0
    %p60 = por %p58, %p59
    %p61 = scmp.ne.s32.totalorder %s49, %s50
    %p62 = scmp.eq.s32.totalorder %s19, 1
    %p63 = por %p61, %p62
    %p65 = scmp.ne.s32.totalorder %s50, %s64
    %p66 = scmp.eq.s32.totalorder %s19, 0
    %p67 = por %p65, %p66
    %s69 = sadd.s32 %s68, 1
    %p72 = scmp.eq.s32.totalorder %s13, 1
    %p73 = scmp.ne.s32.totalorder %s68, %s70
    %p74 = scmp.eq.s32.totalorder %s13, 0
    %p75 = por %p73, %p74
    %p76 = scmp.ne.s32.totalorder %s68, %s70
    %p77 = scmp.eq.s32.totalorder %s18, 1
    %p78 = por %p76, %p77
    %p79 = scmp.ne.s32.totalorder %s70, %s71
    %p80 = scmp.eq.s32.totalorder %s18, 0
    %p81 = por %p79, %p80
    %p82 = scmp.ne.s32.totalorder %s70, %s71
    %p83 = scmp.eq.s32.totalorder %s19, 1
    %p84 = por %p82, %p83
    %p86 = scmp.ne.s32.totalorder %s71, %s85
    %p87 = scmp.eq.s32.totalorder %s19, 0
    %p88 = por %p86, %p87
    %s90 = sadd.s32 %s89, 1
    %p93 = scmp.eq.s32.totalorder %s13, 1
    %p94 = scmp.ne.s32.totalorder %s89, %s91
    %p95 = scmp.eq.s32.totalorder %s13, 0
    %p96 = por %p94, %p95
    %p97 = scmp.ne.s32.totalorder %s89, %s91
    %p98 = scmp.eq.s32.totalorder %s18, 1
    %p99 = por %p97, %p98
    %p100 = scmp.ne.s32.totalorder %s91, %s92
    %p101 = scmp.eq.s32.totalorder %s18, 0
    %p102 = por %p100, %p101
    %p103 = scmp.ne.s32.totalorder %s91, %s92
    %p104 = scmp.eq.s32.totalorder %s19, 1
    %p105 = por %p103, %p104
    %p107 = scmp.ne.s32.totalorder %s92, %s106
    %p108 = scmp.eq.s32.totalorder %s19, 0
    %p109 = por %p107, %p108
    %s111 = sadd.s32 %s110, 1
    %p114 = scmp.eq.s32.totalorder %s13, 1
    %p115 = scmp.ne.s32.totalorder %s110, %s112
    %p116 = scmp.eq.s32.totalorder %s13, 0
    %p117 = por %p115, %p116
    %p118 = scmp.ne.s32.totalorder %s110, %s112
    %p119 = scmp.eq.s32.totalorder %s18, 1
    %p120 = por %p118, %p119
    %p121 = scmp.ne.s32.totalorder %s112, %s113
    %p122 = scmp.eq.s32.totalorder %s18, 0
    %p123 = por %p121, %p122
    %p124 = scmp.ne.s32.totalorder %s112, %s113
    %p125 = scmp.eq.s32.totalorder %s19, 1
    %p126 = por %p124, %p125
    %p128 = scmp.ne.s32.totalorder %s113, %s127
    %p129 = scmp.eq.s32.totalorder %s19, 0
    %p130 = por %p128, %p129
    %s132 = sadd.s32 %s131, 1
    %p135 = scmp.eq.s32.totalorder %s13, 1
    %p136 = scmp.ne.s32.totalorder %s131, %s133
    %p137 = scmp.eq.s32.totalorder %s13, 0
    %p138 = por %p136, %p137
    %p139 = scmp.ne.s32.totalorder %s131, %s133
    %p140 = scmp.eq.s32.totalorder %s18, 1
    %p141 = por %p139, %p140
    %p142 = scmp.ne.s32.totalorder %s133, %s134
    %p143 = scmp.eq.s32.totalorder %s18, 0
    %p144 = por %p142, %p143
    %p145 = scmp.ne.s32.totalorder %s133, %s134
    %p146 = scmp.eq.s32.totalorder %s19, 1
    %p147 = por %p145, %p146
    %p149 = scmp.ne.s32.totalorder %s134, %s148
    %p150 = scmp.eq.s32.totalorder %s19, 0
    %p151 = por %p149, %p150
    %s153 = sadd.s32 %s152, 1
    %p156 = scmp.eq.s32.totalorder %s13, 1
    %p157 = scmp.ne.s32.totalorder %s152, %s154
    %p158 = scmp.eq.s32.totalorder %s13, 0
    %p159 = por %p157, %p158
    %p160 = scmp.ne.s32.totalorder %s152, %s154
    %p161 = scmp.eq.s32.totalorder %s18, 1
    %p162 = por %p160, %p161
    %p163 = scmp.ne.s32.totalorder %s154, %s155
    %p164 = scmp.eq.s32.totalorder %s18, 0
    %p165 = por %p163, %p164
    %p166 = scmp.ne.s32.totalorder %s154, %s155
    %p167 = scmp.eq.s32.totalorder %s19, 1
    %p168 = por %p166, %p167
    %p170 = scmp.ne.s32.totalorder %s155, %s169
    %p171 = scmp.eq.s32.totalorder %s19, 0
    %p172 = por %p170, %p171
    %s173 = ssub.s32 %s13, %s20
    %p174 = scmp.eq.s32.totalorder %s173, 0
    %s176 = sadd.s32 %s175, 1
    %s177 = scalar_select %p174, %s175, %s176
    %p180 = pneg %p174
    %p181 = scmp.eq.s32.totalorder %s13, 1
    %p182 = por %p180, %p181
    %p183 = scmp.ne.s32.totalorder %s175, %s178
    %p184 = scmp.eq.s32.totalorder %s13, 0
    %p185 = por %p183, %p184
    %p186 = scmp.ne.s32.totalorder %s175, %s178
    %p187 = scmp.eq.s32.totalorder %s18, 1
    %p188 = por %p186, %p187
    %p189 = scmp.ne.s32.totalorder %s178, %s179
    %p190 = scmp.eq.s32.totalorder %s18, 0
    %p191 = por %p189, %p190
    %p192 = scmp.ne.s32.totalorder %s178, %s179
    %p193 = scmp.eq.s32.totalorder %s19, 1
    %p194 = por %p192, %p193
    %p196 = scmp.ne.s32.totalorder %s179, %s195
    %p197 = scmp.eq.s32.totalorder %s19, 0
    %p198 = por %p196, %p197
    %p199 = scmp.le.s32.totalorder 1, %s13
    %p200 = scmp.lt.s32.totalorder %s13, 3
    %p201 = pnand %p199, %p200
    %p202 = pneg %p201
    // Predicated region
    $region9: #{tpu_custom_call.1} parent=5 // pred_check
      _
    $region10: #{tpu_custom_call.1} parent=5 // pred_check_branch
      %204 = sbr.rel (%p201) target = $region12
    $region11: #{tpu_custom_call.1} parent=5 // pred_region
      %s205 = ssub.s32 %s13, 1
      // Predicated region
      $region13: #{tpu_custom_call.1} parent=11 // pred_check
        %p206 = pneg %p60
      $region14: #{tpu_custom_call.1} parent=11 // pred_check_branch
        %208 = sbr.rel (%p206) target = $region16
      $region15: #{tpu_custom_call.1} parent=11 // pred_region
        _
      $region16: #{tpu_custom_call.1} parent=11 // pred_fallthru
        _
      // Predicated region
      $region17: #{tpu_custom_call.1} parent=11 // pred_check
        %p209 = pneg %p81
      $region18: #{tpu_custom_call.1} parent=11 // pred_check_branch
        %211 = sbr.rel (%p209) target = $region20
      $region19: #{tpu_custom_call.1} parent=11 // pred_region
        _
      $region20: #{tpu_custom_call.1} parent=11 // pred_fallthru
        _
      // Predicated region
      $region21: #{tpu_custom_call.1} parent=11 // pred_check
        %p212 = pneg %p102
      $region22: #{tpu_custom_call.1} parent=11 // pred_check_branch
        %214 = sbr.rel (%p212) target = $region24
      $region23: #{tpu_custom_call.1} parent=11 // pred_region
        _
      $region24: #{tpu_custom_call.1} parent=11 // pred_fallthru
        _
      // Predicated region
      $region25: #{tpu_custom_call.1} parent=11 // pred_check
        %p215 = pneg %p123
      $region26: #{tpu_custom_call.1} parent=11 // pred_check_branch
        %217 = sbr.rel (%p215) target = $region28
      $region27: #{tpu_custom_call.1} parent=11 // pred_region
        _
      $region28: #{tpu_custom_call.1} parent=11 // pred_fallthru
        _
      // Predicated region
      $region29: #{tpu_custom_call.1} parent=11 // pred_check
        %p218 = pneg %p144
      $region30: #{tpu_custom_call.1} parent=11 // pred_check_branch
        %220 = sbr.rel (%p218) target = $region32
      $region31: #{tpu_custom_call.1} parent=11 // pred_region
        _
      $region32: #{tpu_custom_call.1} parent=11 // pred_fallthru
        _
      // Predicated region
      $region33: #{tpu_custom_call.1} parent=11 // pred_check
        %p221 = pneg %p165
      $region34: #{tpu_custom_call.1} parent=11 // pred_check_branch
        %223 = sbr.rel (%p221) target = $region36
      $region35: #{tpu_custom_call.1} parent=11 // pred_region
        _
      $region36: #{tpu_custom_call.1} parent=11 // pred_fallthru
        _
    $region12: #{tpu_custom_call.1} parent=5 // pred_fallthru
      _
    %p224 = scmp.lt.s32.totalorder %s13, 2
    // Predicated region
    $region37: #{tpu_custom_call.1} parent=5 // pred_check
      %p225 = pneg %p224
    $region38: #{tpu_custom_call.1} parent=5 // pred_check_branch
      %227 = sbr.rel (%p225) target = $region40
    $region39: #{tpu_custom_call.1} parent=5 // pred_region
      // Predicated region
      $region41: #{tpu_custom_call.1} parent=39 // pred_check
        %p228 = pneg %p33
      $region42: #{tpu_custom_call.1} parent=39 // pred_check_branch
        %230 = sbr.rel (%p228) target = $region44
      $region43: #{tpu_custom_call.1} parent=39 // pred_region
        %s231 = smul.u32 32, %s13
        %p232 = scmp.lt.s32.totalorder %s231, 63
        %s233 = scalar_select %p232, %s231, 63
        %s234 = smul.addr %s233, 8
        %s235 = scalar_lea.vmem %s0, %s234
        %s236 = smul.u32 32, %s13
      $region44: #{tpu_custom_call.1} parent=39 // pred_fallthru
        _
    $region40: #{tpu_custom_call.1} parent=5 // pred_fallthru
      _
    %p237 = scmp.le.s32.totalorder 1, %s13
    %p238 = scmp.lt.s32.totalorder %s13, 3
    %p239 = pnand %p237, %p238
    %p240 = pneg %p239
    // Predicated region
    $region45: #{tpu_custom_call.1} parent=5 // pred_check
      _
    $region46: #{tpu_custom_call.1} parent=5 // pred_check_branch
      %242 = sbr.rel (%p239) target = $region48
    $region47: #{tpu_custom_call.1} parent=5 // pred_region
      %s243 = ssub.s32 %s13, 1
      %s244 = smul.u32 32, %s18
      %p245 = scmp.lt.s32.totalorder %s244, 63
      %s246 = scalar_select %p245, %s244, 63
      %s247 = smul.addr %s246, 8
      %s248 = scalar_lea.vmem %s0, %s247
      %p249 = pneg %p39
      %p250 = pneg %p36
      %p251 = pneg %p60
      %p252 = pneg %p57
      %p253 = pneg %p81
      %p254 = pneg %p78
      %p255 = pneg %p102
      %p256 = pneg %p99
      %p257 = pneg %p123
      %p258 = pneg %p120
      %p259 = pneg %p144
      %p260 = pneg %p141
      %p261 = pneg %p165
      %p262 = pneg %p162
      %p263 = pneg %p191
      %p264 = pneg %p188
      %s265 = smul.u32 32, %s18
      %p266 = scmp.lt.s32.totalorder %s265, 63
      %s267 = scalar_select %p266, %s265, 63
      %s268 = smul.addr %s267, 8
      %s269 = scalar_lea.vmem %s7, %s268
      %s270 = smul.u32 32, %s18
      %p271 = scmp.lt.s32.totalorder %s270, 63
      %s272 = scalar_select %p271, %s270, 63
      %s273 = smul.addr %s272, 8
      %s274 = scalar_lea.vmem %s0, %s273
      %s275 = smul.u32 32, %s18
      %s276 = smul.u32 32, %s18
      %p277 = scmp.lt.s32.totalorder %s276, 63
      %s278 = scalar_select %p277, %s276, 63
      %s279 = smul.addr %s278, 8
      %s280 = scalar_lea.vmem %s7, %s279
      %s281 = smul.u32 32, %s18
      %v282 = vld [vmem:[%s274] sm:$0xff]
      %v283 = vld [vmem:[%s274 + $0x8] sm:$0xff]
      %v284 = vld [vmem:[%s274 + $0x10] sm:$0xff]
      %v285 = vld [vmem:[%s274 + $0x18] sm:$0xff]
      %v286 = vld [vmem:[%s274 + $0x20] sm:$0xff]
      %v287 = vld [vmem:[%s274 + $0x28] sm:$0xff]
      %v288 = vld [vmem:[%s274 + $0x30] sm:$0xff]
      %v289 = vld [vmem:[%s274 + $0x38] sm:$0xff]
      %v290 = vld [vmem:[%s274 + $0x40] sm:$0xff]
      %v291 = vld [vmem:[%s274 + $0x48] sm:$0xff]
      %v292 = vld [vmem:[%s274 + $0x50] sm:$0xff]
      %v293 = vld [vmem:[%s274 + $0x58] sm:$0xff]
      %v294 = vld [vmem:[%s274 + $0x60] sm:$0xff]
      %v295 = vld [vmem:[%s274 + $0x68] sm:$0xff]
      %v296 = vld [vmem:[%s274 + $0x70] sm:$0xff]
      %v297 = vld [vmem:[%s274 + $0x78] sm:$0xff]
      %v298 = vld [vmem:[%s274 + $0x80] sm:$0xff]
      %v299 = vld [vmem:[%s274 + $0x88] sm:$0xff]
      %v300 = vld [vmem:[%s274 + $0x90] sm:$0xff]
      %v301 = vld [vmem:[%s274 + $0x98] sm:$0xff]
      %v302 = vld [vmem:[%s274 + $0xa0] sm:$0xff]
      %v303 = vld [vmem:[%s274 + $0xa8] sm:$0xff]
      %v304 = vld [vmem:[%s274 + $0xb0] sm:$0xff]
      %v305 = vld [vmem:[%s274 + $0xb8] sm:$0xff]
      %v306 = vld [vmem:[%s274 + $0xc0] sm:$0xff]
      %v307 = vld [vmem:[%s274 + $0xc8] sm:$0xff]
      %v308 = vld [vmem:[%s274 + $0xd0] sm:$0xff]
      %v309 = vld [vmem:[%s274 + $0xd8] sm:$0xff]
      %v310 = vld [vmem:[%s274 + $0xe0] sm:$0xff]
      %v311 = vld [vmem:[%s274 + $0xe8] sm:$0xff]
      %v312 = vld [vmem:[%s274 + $0xf0] sm:$0xff]
      %v313 = vld [vmem:[%s274 + $0xf8] sm:$0xff]
      %v314 = vld [vmem:[%s1] sm:$0xff]
      %v315 = vld [vmem:[%s1 + $0x8] sm:$0xff]
      %v316 = vld [vmem:[%s2] sm:$0x1]
      %v318 = vlaneseq
      %v319 = vshrl.u32 %v318, 7
      %v320 = vsub.s32 0, %v319
      %v321 = vrot.slane %v316, %v320
      %vm323 = vcmask 130048
      %v325 = vsel %vm323, %v282, 0
      %v328 = vsel %vm323, %v283, 0
      %v331 = vsel %vm323, %v284, 0
      %v334 = vsel %vm323, %v285, 0
      %v337 = vsel %vm323, %v286, 0
      %v340 = vsel %vm323, %v287, 0
      %v343 = vsel %vm323, %v288, 0
      %v346 = vsel %vm323, %v289, 0
      %v349 = vsel %vm323, %v290, 0
      %v352 = vsel %vm323, %v291, 0
      %v355 = vsel %vm323, %v292, 0
      %v358 = vsel %vm323, %v293, 0
      %v361 = vsel %vm323, %v294, 0
      %v364 = vsel %vm323, %v295, 0
      %v367 = vsel %vm323, %v296, 0
      %v370 = vsel %vm323, %v297, 0
      %v373 = vsel %vm323, %v298, 0
      %v376 = vsel %vm323, %v299, 0
      %v379 = vsel %vm323, %v300, 0
      %v382 = vsel %vm323, %v301, 0
      %v385 = vsel %vm323, %v302, 0
      %v388 = vsel %vm323, %v303, 0
      %v391 = vsel %vm323, %v304, 0
      %v394 = vsel %vm323, %v305, 0
      %v397 = vsel %vm323, %v306, 0
      %v400 = vsel %vm323, %v307, 0
      %v403 = vsel %vm323, %v308, 0
      %v406 = vsel %vm323, %v309, 0
      %v409 = vsel %vm323, %v310, 0
      %v412 = vsel %vm323, %v311, 0
      %v415 = vsel %vm323, %v312, 0
      %v418 = vsel %vm323, %v313, 0
      %420 = vmatprep.subr.mxu0 0.0
      %421 = vmatpush1.msra.mxu0 0.0
      %422 = vmatprep.subr.mxu0 0.0
      %423 = vmatpush1.msra.mxu0 0.0
      %424 = vmatprep.subr.mxu0 0.0
      %425 = vmatpush1.msra.mxu0 0.0
      %426 = vmatprep.subr.mxu0 0.0
      %427 = vmatpush1.msra.mxu0 0.0
      %428 = vmatprep.subr.mxu0 0.0
      %429 = vmatpush1.msra.mxu0 0.0
      %430 = vmatprep.subr.mxu0 0.0
      %431 = vmatpush1.msra.mxu0 0.0
      %432 = vmatprep.subr.mxu0 0.0
      %433 = vmatpush1.msra.mxu0 0.0
      %434 = vmatprep.subr.mxu0 0.0
      %435 = vmatpush1.msra.mxu0 0.0
      %436 = vmatprep.subr.mxu0 0.0
      %437 = vmatpush1.msra.mxu0 0.0
      %438 = vmatprep.subr.mxu0 0.0
      %439 = vmatpush1.msra.mxu0 0.0
      %440 = vmatprep.subr.mxu0 0.0
      %441 = vmatpush1.msra.mxu0 0.0
      %442 = vmatprep.subr.mxu0 0.0
      %443 = vmatpush1.msra.mxu0 0.0
      %444 = vmatprep.subr.mxu0 0.0
      %445 = vmatpush1.msra.mxu0 0.0
      %446 = vmatprep.subr.mxu0 0.0
      %447 = vmatpush1.msra.mxu0 0.0
      %448 = vmatprep.subr.mxu0 0.0
      %449 = vmatpush1.msra.mxu0 %v315
      %450 = vmatprep.subr.mxu0 0.0
      %451 = vmatpush1.msra.mxu0 %v314
      %452 = vmatprep.subr.mxu0 0.0
      %453 = vmatpush2.msra.mxu0 0.0
      %454 = vmatprep.subr.mxu0 0.0
      %455 = vmatpush2.msra.mxu0 0.0
      %456 = vmatprep.subr.mxu0 0.0
      %457 = vmatpush2.msra.mxu0 0.0
      %458 = vmatprep.subr.mxu0 0.0
      %459 = vmatpush2.msra.mxu0 0.0
      %460 = vmatprep.subr.mxu0 0.0
      %461 = vmatpush2.msra.mxu0 0.0
      %462 = vmatprep.subr.mxu0 0.0
      %463 = vmatpush2.msra.mxu0 0.0
      %464 = vmatprep.subr.mxu0 0.0
      %465 = vmatpush2.msra.mxu0 0.0
      %466 = vmatprep.subr.mxu0 0.0
      %467 = vmatpush2.msra.mxu0 0.0
      %468 = vmatprep.subr.mxu0 0.0
      %469 = vmatpush2.msra.mxu0 0.0
      %470 = vmatprep.subr.mxu0 0.0
      %471 = vmatpush2.msra.mxu0 0.0
      %472 = vmatprep.subr.mxu0 0.0
      %473 = vmatpush2.msra.mxu0 0.0
      %474 = vmatprep.subr.mxu0 0.0
      %475 = vmatpush2.msra.mxu0 0.0
      %476 = vmatprep.subr.mxu0 0.0
      %477 = vmatpush2.msra.mxu0 0.0
      %478 = vmatprep.subr.mxu0 0.0
      %479 = vmatpush2.msra.mxu0 0.0
      %480 = vmatprep.subr.mxu0 0.0
      %481 = vmatpush2.msra.mxu0 0.0
      %482 = vmatprep.subr.mxu0 0.0
      %483 = vmatpush2.msra.mxu0 0.0
      %484 = vmatprep.mubr.f32.mxu0 0.0
      %485 = vmatmul.mubr.f32.gmra.mxu0 %v325
      %v486 = vpop.f32.mrf.mxu0
      %v487 = vadd.f32 %v321, %v486
      %v488 = vpop.f32.mrf.mxu0
      %489 = vmatprep.mubr.f32.mxu0 0.0
      %490 = vmatmul.mubr.f32.gmra.mxu0 %v328
      %v491 = vpop.f32.mrf.mxu0
      %v492 = vadd.f32 %v321, %v491
      %v493 = vpop.f32.mrf.mxu0
      %494 = vmatprep.mubr.f32.mxu0 0.0
      %495 = vmatmul.mubr.f32.gmra.mxu0 %v331
      %v496 = vpop.f32.mrf.mxu0
      %v497 = vadd.f32 %v321, %v496
      %v498 = vpop.f32.mrf.mxu0
      %499 = vmatprep.mubr.f32.mxu0 0.0
      %500 = vmatmul.mubr.f32.gmra.mxu0 %v334
      %v501 = vpop.f32.mrf.mxu0
      %v502 = vadd.f32 %v321, %v501
      %v503 = vpop.f32.mrf.mxu0
      %504 = vmatprep.mubr.f32.mxu0 0.0
      %505 = vmatmul.mubr.f32.gmra.mxu0 %v337
      %v506 = vpop.f32.mrf.mxu0
      %v507 = vadd.f32 %v321, %v506
      %v508 = vpop.f32.mrf.mxu0
      %509 = vmatprep.mubr.f32.mxu0 0.0
      %510 = vmatmul.mubr.f32.gmra.mxu0 %v340
      %v511 = vpop.f32.mrf.mxu0
      %v512 = vadd.f32 %v321, %v511
      %v513 = vpop.f32.mrf.mxu0
      %514 = vmatprep.mubr.f32.mxu0 0.0
      %515 = vmatmul.mubr.f32.gmra.mxu0 %v343
      %v516 = vpop.f32.mrf.mxu0
      %v517 = vadd.f32 %v321, %v516
      %v518 = vpop.f32.mrf.mxu0
      %519 = vmatprep.mubr.f32.mxu0 0.0
      %520 = vmatmul.mubr.f32.gmra.mxu0 %v346
      %v521 = vpop.f32.mrf.mxu0
      %v522 = vadd.f32 %v321, %v521
      %v523 = vpop.f32.mrf.mxu0
      %524 = vmatprep.mubr.f32.mxu0 0.0
      %525 = vmatmul.mubr.f32.gmra.mxu0 %v349
      %v526 = vpop.f32.mrf.mxu0
      %v527 = vadd.f32 %v321, %v526
      %v528 = vpop.f32.mrf.mxu0
      %529 = vmatprep.mubr.f32.mxu0 0.0
      %530 = vmatmul.mubr.f32.gmra.mxu0 %v352
      %v531 = vpop.f32.mrf.mxu0
      %v532 = vadd.f32 %v321, %v531
      %v533 = vpop.f32.mrf.mxu0
      %534 = vmatprep.mubr.f32.mxu0 0.0
      %535 = vmatmul.mubr.f32.gmra.mxu0 %v355
      %v536 = vpop.f32.mrf.mxu0
      %v537 = vadd.f32 %v321, %v536
      %v538 = vpop.f32.mrf.mxu0
      %539 = vmatprep.mubr.f32.mxu0 0.0
      %540 = vmatmul.mubr.f32.gmra.mxu0 %v358
      %v541 = vpop.f32.mrf.mxu0
      %v542 = vadd.f32 %v321, %v541
      %v543 = vpop.f32.mrf.mxu0
      %544 = vmatprep.mubr.f32.mxu0 0.0
      %545 = vmatmul.mubr.f32.gmra.mxu0 %v361
      %v546 = vpop.f32.mrf.mxu0
      %v547 = vadd.f32 %v321, %v546
      %v548 = vpop.f32.mrf.mxu0
      %549 = vmatprep.mubr.f32.mxu0 0.0
      %550 = vmatmul.mubr.f32.gmra.mxu0 %v364
      %v551 = vpop.f32.mrf.mxu0
      %v552 = vadd.f32 %v321, %v551
      %v553 = vpop.f32.mrf.mxu0
      %554 = vmatprep.mubr.f32.mxu0 0.0
      %555 = vmatmul.mubr.f32.gmra.mxu0 %v367
      %v556 = vpop.f32.mrf.mxu0
      %v557 = vadd.f32 %v321, %v556
      %v558 = vpop.f32.mrf.mxu0
      %559 = vmatprep.mubr.f32.mxu0 0.0
      %560 = vmatmul.mubr.f32.gmra.mxu0 %v370
      %v561 = vpop.f32.mrf.mxu0
      %v562 = vadd.f32 %v321, %v561
      %v563 = vpop.f32.mrf.mxu0
      %564 = vmatprep.mubr.f32.mxu0 0.0
      %565 = vmatmul.mubr.f32.gmra.mxu0 %v373
      %v566 = vpop.f32.mrf.mxu0
      %v567 = vadd.f32 %v321, %v566
      %v568 = vpop.f32.mrf.mxu0
      %569 = vmatprep.mubr.f32.mxu0 0.0
      %570 = vmatmul.mubr.f32.gmra.mxu0 %v376
      %v571 = vpop.f32.mrf.mxu0
      %v572 = vadd.f32 %v321, %v571
      %v573 = vpop.f32.mrf.mxu0
      %574 = vmatprep.mubr.f32.mxu0 0.0
      %575 = vmatmul.mubr.f32.gmra.mxu0 %v379
      %v576 = vpop.f32.mrf.mxu0
      %v577 = vadd.f32 %v321, %v576
      %v578 = vpop.f32.mrf.mxu0
      %579 = vmatprep.mubr.f32.mxu0 0.0
      %580 = vmatmul.mubr.f32.gmra.mxu0 %v382
      %v581 = vpop.f32.mrf.mxu0
      %v582 = vadd.f32 %v321, %v581
      %v583 = vpop.f32.mrf.mxu0
      %584 = vmatprep.mubr.f32.mxu0 0.0
      %585 = vmatmul.mubr.f32.gmra.mxu0 %v385
      %v586 = vpop.f32.mrf.mxu0
      %v587 = vadd.f32 %v321, %v586
      %v588 = vpop.f32.mrf.mxu0
      %589 = vmatprep.mubr.f32.mxu0 0.0
      %590 = vmatmul.mubr.f32.gmra.mxu0 %v388
      %v591 = vpop.f32.mrf.mxu0
      %v592 = vadd.f32 %v321, %v591
      %v593 = vpop.f32.mrf.mxu0
      %594 = vmatprep.mubr.f32.mxu0 0.0
      %595 = vmatmul.mubr.f32.gmra.mxu0 %v391
      %v596 = vpop.f32.mrf.mxu0
      %v597 = vadd.f32 %v321, %v596
      %v598 = vpop.f32.mrf.mxu0
      %599 = vmatprep.mubr.f32.mxu0 0.0
      %600 = vmatmul.mubr.f32.gmra.mxu0 %v394
      %v601 = vpop.f32.mrf.mxu0
      %v602 = vadd.f32 %v321, %v601
      %v603 = vpop.f32.mrf.mxu0
      %604 = vmatprep.mubr.f32.mxu0 0.0
      %605 = vmatmul.mubr.f32.gmra.mxu0 %v397
      %v606 = vpop.f32.mrf.mxu0
      %v607 = vadd.f32 %v321, %v606
      %v608 = vpop.f32.mrf.mxu0
      %609 = vmatprep.mubr.f32.mxu0 0.0
      %610 = vmatmul.mubr.f32.gmra.mxu0 %v400
      %v611 = vpop.f32.mrf.mxu0
      %v612 = vadd.f32 %v321, %v611
      %v613 = vpop.f32.mrf.mxu0
      %614 = vmatprep.mubr.f32.mxu0 0.0
      %615 = vmatmul.mubr.f32.gmra.mxu0 %v403
      %v616 = vpop.f32.mrf.mxu0
      %v617 = vadd.f32 %v321, %v616
      %v618 = vpop.f32.mrf.mxu0
      %619 = vmatprep.mubr.f32.mxu0 0.0
      %620 = vmatmul.mubr.f32.gmra.mxu0 %v406
      %v621 = vpop.f32.mrf.mxu0
      %v622 = vadd.f32 %v321, %v621
      %v623 = vpop.f32.mrf.mxu0
      %624 = vmatprep.mubr.f32.mxu0 0.0
      %625 = vmatmul.mubr.f32.gmra.mxu0 %v409
      %v626 = vpop.f32.mrf.mxu0
      %v627 = vadd.f32 %v321, %v626
      %v628 = vpop.f32.mrf.mxu0
      %629 = vmatprep.mubr.f32.mxu0 0.0
      %630 = vmatmul.mubr.f32.gmra.mxu0 %v412
      %v631 = vpop.f32.mrf.mxu0
      %v632 = vadd.f32 %v321, %v631
      %v633 = vpop.f32.mrf.mxu0
      %634 = vmatprep.mubr.f32.mxu0 0.0
      %635 = vmatmul.mubr.f32.gmra.mxu0 %v415
      %v636 = vpop.f32.mrf.mxu0
      %v637 = vadd.f32 %v321, %v636
      %v638 = vpop.f32.mrf.mxu0
      %639 = vmatprep.mubr.f32.mxu0 0.0
      %640 = vmatmul.mubr.f32.gmra.mxu0 %v418
      %v641 = vpop.f32.mrf.mxu0
      %v642 = vadd.f32 %v321, %v641
      %v643 = vpop.f32.mrf.mxu0
      %644 = vdwg.mxu0
      %v645 = vmax.f32 %v487, 0.0
      %v646 = vmax.f32 %v492, 0.0
      %v647 = vmax.f32 %v497, 0.0
      %v648 = vmax.f32 %v502, 0.0
      %v649 = vmax.f32 %v507, 0.0
      %v650 = vmax.f32 %v512, 0.0
      %v651 = vmax.f32 %v517, 0.0
      %v652 = vmax.f32 %v522, 0.0
      %v653 = vmax.f32 %v527, 0.0
      %v654 = vmax.f32 %v532, 0.0
      %v655 = vmax.f32 %v537, 0.0
      %v656 = vmax.f32 %v542, 0.0
      %v657 = vmax.f32 %v547, 0.0
      %v658 = vmax.f32 %v552, 0.0
      %v659 = vmax.f32 %v557, 0.0
      %v660 = vmax.f32 %v562, 0.0
      %v661 = vmax.f32 %v567, 0.0
      %v662 = vmax.f32 %v572, 0.0
      %v663 = vmax.f32 %v577, 0.0
      %v664 = vmax.f32 %v582, 0.0
      %v665 = vmax.f32 %v587, 0.0
      %v666 = vmax.f32 %v592, 0.0
      %v667 = vmax.f32 %v597, 0.0
      %v668 = vmax.f32 %v602, 0.0
      %v669 = vmax.f32 %v607, 0.0
      %v670 = vmax.f32 %v612, 0.0
      %v671 = vmax.f32 %v617, 0.0
      %v672 = vmax.f32 %v622, 0.0
      %v673 = vmax.f32 %v627, 0.0
      %v674 = vmax.f32 %v632, 0.0
      %v675 = vmax.f32 %v637, 0.0
      %v676 = vmax.f32 %v642, 0.0
      %v677 = vsub.f32 0.0, %v487
      %v678 = vsub.f32 0.0, %v492
      %v679 = vsub.f32 0.0, %v497
      %v680 = vsub.f32 0.0, %v502
      %v681 = vsub.f32 0.0, %v507
      %v682 = vsub.f32 0.0, %v512
      %v683 = vsub.f32 0.0, %v517
      %v684 = vsub.f32 0.0, %v522
      %v685 = vsub.f32 0.0, %v527
      %v686 = vsub.f32 0.0, %v532
      %v687 = vsub.f32 0.0, %v537
      %v688 = vsub.f32 0.0, %v542
      %v689 = vsub.f32 0.0, %v547
      %v690 = vsub.f32 0.0, %v552
      %v691 = vsub.f32 0.0, %v557
      %v692 = vsub.f32 0.0, %v562
      %v693 = vsub.f32 0.0, %v567
      %v694 = vsub.f32 0.0, %v572
      %v695 = vsub.f32 0.0, %v577
      %v696 = vsub.f32 0.0, %v582
      %v697 = vsub.f32 0.0, %v587
      %v698 = vsub.f32 0.0, %v592
      %v699 = vsub.f32 0.0, %v597
      %v700 = vsub.f32 0.0, %v602
      %v701 = vsub.f32 0.0, %v607
      %v702 = vsub.f32 0.0, %v612
      %v703 = vsub.f32 0.0, %v617
      %v704 = vsub.f32 0.0, %v622
      %v705 = vsub.f32 0.0, %v627
      %v706 = vsub.f32 0.0, %v632
      %v707 = vsub.f32 0.0, %v637
      %v708 = vsub.f32 0.0, %v642
      %v709 = vmul.f32 %v677, 1.442695
      %v710 = vpow.pop %v709
      %v711 = vmul.f32 %v678, 1.442695
      %v712 = vpow.pop %v711
      %v713 = vmul.f32 %v679, 1.442695
      %v714 = vpow.pop %v713
      %v715 = vmul.f32 %v680, 1.442695
      %v716 = vpow.pop %v715
      %v717 = vmul.f32 %v681, 1.442695
      %v718 = vpow.pop %v717
      %v719 = vmul.f32 %v682, 1.442695
      %v720 = vpow.pop %v719
      %v721 = vmul.f32 %v683, 1.442695
      %v722 = vpow.pop %v721
      %v723 = vmul.f32 %v684, 1.442695
      %v724 = vpow.pop %v723
      %v725 = vmul.f32 %v685, 1.442695
      %v726 = vpow.pop %v725
      %v727 = vmul.f32 %v686, 1.442695
      %v728 = vpow.pop %v727
      %v729 = vmul.f32 %v687, 1.442695
      %v730 = vpow.pop %v729
      %v731 = vmul.f32 %v688, 1.442695
      %v732 = vpow.pop %v731
      %v733 = vmul.f32 %v689, 1.442695
      %v734 = vpow.pop %v733
      %v735 = vmul.f32 %v690, 1.442695
      %v736 = vpow.pop %v735
      %v737 = vmul.f32 %v691, 1.442695
      %v738 = vpow.pop %v737
      %v739 = vmul.f32 %v692, 1.442695
      %v740 = vpow.pop %v739
      %v741 = vmul.f32 %v693, 1.442695
      %v742 = vpow.pop %v741
      %v743 = vmul.f32 %v694, 1.442695
      %v744 = vpow.pop %v743
      %v745 = vmul.f32 %v695, 1.442695
      %v746 = vpow.pop %v745
      %v747 = vmul.f32 %v696, 1.442695
      %v748 = vpow.pop %v747
      %v749 = vmul.f32 %v697, 1.442695
      %v750 = vpow.pop %v749
      %v751 = vmul.f32 %v698, 1.442695
      %v752 = vpow.pop %v751
      %v753 = vmul.f32 %v699, 1.442695
      %v754 = vpow.pop %v753
      %v755 = vmul.f32 %v700, 1.442695
      %v756 = vpow.pop %v755
      %v757 = vmul.f32 %v701, 1.442695
      %v758 = vpow.pop %v757
      %v759 = vmul.f32 %v702, 1.442695
      %v760 = vpow.pop %v759
      %v761 = vmul.f32 %v703, 1.442695
      %v762 = vpow.pop %v761
      %v763 = vmul.f32 %v704, 1.442695
      %v764 = vpow.pop %v763
      %v765 = vmul.f32 %v705, 1.442695
      %v766 = vpow.pop %v765
      %v767 = vmul.f32 %v706, 1.442695
      %v768 = vpow.pop %v767
      %v769 = vmul.f32 %v707, 1.442695
      %v770 = vpow.pop %v769
      %v771 = vmul.f32 %v708, 1.442695
      %v772 = vpow.pop %v771
      %v773 = vadd.f32 %v710, 1.0
      %v774 = vadd.f32 %v712, 1.0
      %v775 = vadd.f32 %v714, 1.0
      %v776 = vadd.f32 %v716, 1.0
      %v777 = vadd.f32 %v718, 1.0
      %v778 = vadd.f32 %v720, 1.0
      %v779 = vadd.f32 %v722, 1.0
      %v780 = vadd.f32 %v724, 1.0
      %v781 = vadd.f32 %v726, 1.0
      %v782 = vadd.f32 %v728, 1.0
      %v783 = vadd.f32 %v730, 1.0
      %v784 = vadd.f32 %v732, 1.0
      %v785 = vadd.f32 %v734, 1.0
      %v786 = vadd.f32 %v736, 1.0
      %v787 = vadd.f32 %v738, 1.0
      %v788 = vadd.f32 %v740, 1.0
      %v789 = vadd.f32 %v742, 1.0
      %v790 = vadd.f32 %v744, 1.0
      %v791 = vadd.f32 %v746, 1.0
      %v792 = vadd.f32 %v748, 1.0
      %v793 = vadd.f32 %v750, 1.0
      %v794 = vadd.f32 %v752, 1.0
      %v795 = vadd.f32 %v754, 1.0
      %v796 = vadd.f32 %v756, 1.0
      %v797 = vadd.f32 %v758, 1.0
      %v798 = vadd.f32 %v760, 1.0
      %v799 = vadd.f32 %v762, 1.0
      %v800 = vadd.f32 %v764, 1.0
      %v801 = vadd.f32 %v766, 1.0
      %v802 = vadd.f32 %v768, 1.0
      %v803 = vadd.f32 %v770, 1.0
      %v804 = vadd.f32 %v772, 1.0
      %v805 = vrcp.pop %v773
      %v806 = vmul.f32 1.0, %v805
      %v807 = vrcp.pop %v774
      %v808 = vmul.f32 1.0, %v807
      %v809 = vrcp.pop %v775
      %v810 = vmul.f32 1.0, %v809
      %v811 = vrcp.pop %v776
      %v812 = vmul.f32 1.0, %v811
      %v813 = vrcp.pop %v777
      %v814 = vmul.f32 1.0, %v813
      %v815 = vrcp.pop %v778
      %v816 = vmul.f32 1.0, %v815
      %v817 = vrcp.pop %v779
      %v818 = vmul.f32 1.0, %v817
      %v819 = vrcp.pop %v780
      %v820 = vmul.f32 1.0, %v819
      %v821 = vrcp.pop %v781
      %v822 = vmul.f32 1.0, %v821
      %v823 = vrcp.pop %v782
      %v824 = vmul.f32 1.0, %v823
      %v825 = vrcp.pop %v783
      %v826 = vmul.f32 1.0, %v825
      %v827 = vrcp.pop %v784
      %v828 = vmul.f32 1.0, %v827
      %v829 = vrcp.pop %v785
      %v830 = vmul.f32 1.0, %v829
      %v831 = vrcp.pop %v786
      %v832 = vmul.f32 1.0, %v831
      %v833 = vrcp.pop %v787
      %v834 = vmul.f32 1.0, %v833
      %v835 = vrcp.pop %v788
      %v836 = vmul.f32 1.0, %v835
      %v837 = vrcp.pop %v789
      %v838 = vmul.f32 1.0, %v837
      %v839 = vrcp.pop %v790
      %v840 = vmul.f32 1.0, %v839
      %v841 = vrcp.pop %v791
      %v842 = vmul.f32 1.0, %v841
      %v843 = vrcp.pop %v792
      %v844 = vmul.f32 1.0, %v843
      %v845 = vrcp.pop %v793
      %v846 = vmul.f32 1.0, %v845
      %v847 = vrcp.pop %v794
      %v848 = vmul.f32 1.0, %v847
      %v849 = vrcp.pop %v795
      %v850 = vmul.f32 1.0, %v849
      %v851 = vrcp.pop %v796
      %v852 = vmul.f32 1.0, %v851
      %v853 = vrcp.pop %v797
      %v854 = vmul.f32 1.0, %v853
      %v855 = vrcp.pop %v798
      %v856 = vmul.f32 1.0, %v855
      %v857 = vrcp.pop %v799
      %v858 = vmul.f32 1.0, %v857
      %v859 = vrcp.pop %v800
      %v860 = vmul.f32 1.0, %v859
      %v861 = vrcp.pop %v801
      %v862 = vmul.f32 1.0, %v861
      %v863 = vrcp.pop %v802
      %v864 = vmul.f32 1.0, %v863
      %v865 = vrcp.pop %v803
      %v866 = vmul.f32 1.0, %v865
      %v867 = vrcp.pop %v804
      %v868 = vmul.f32 1.0, %v867
      %vm869 = vcmask 261120
      %v870 = vsel %vm869, %v645, %v806
      %v871 = vsel %vm869, %v646, %v808
      %v872 = vsel %vm869, %v647, %v810
      %v873 = vsel %vm869, %v648, %v812
      %v874 = vsel %vm869, %v649, %v814
      %v875 = vsel %vm869, %v650, %v816
      %v876 = vsel %vm869, %v651, %v818
      %v877 = vsel %vm869, %v652, %v820
      %v878 = vsel %vm869, %v653, %v822
      %v879 = vsel %vm869, %v654, %v824
      %v880 = vsel %vm869, %v655, %v826
      %v881 = vsel %vm869, %v656, %v828
      %v882 = vsel %vm869, %v657, %v830
      %v883 = vsel %vm869, %v658, %v832
      %v884 = vsel %vm869, %v659, %v834
      %v885 = vsel %vm869, %v660, %v836
      %v886 = vsel %vm869, %v661, %v838
      %v887 = vsel %vm869, %v662, %v840
      %v888 = vsel %vm869, %v663, %v842
      %v889 = vsel %vm869, %v664, %v844
      %v890 = vsel %vm869, %v665, %v846
      %v891 = vsel %vm869, %v666, %v848
      %v892 = vsel %vm869, %v667, %v850
      %v893 = vsel %vm869, %v668, %v852
      %v894 = vsel %vm869, %v669, %v854
      %v895 = vsel %vm869, %v670, %v856
      %v896 = vsel %vm869, %v671, %v858
      %v897 = vsel %vm869, %v672, %v860
      %v898 = vsel %vm869, %v673, %v862
      %v899 = vsel %vm869, %v674, %v864
      %v900 = vsel %vm869, %v675, %v866
      %v901 = vsel %vm869, %v676, %v868
      %v902 = vld [vmem:[%s3] sm:$0xff]
      %v903 = vld [vmem:[%s3 + $0x8] sm:$0xff]
      %v904 = vld [vmem:[%s3 + $0x10] sm:$0xff]
      %v905 = vld [vmem:[%s3 + $0x18] sm:$0xff]
      %v906 = vld [vmem:[%s3 + $0x20] sm:$0xff]
      %v907 = vld [vmem:[%s3 + $0x28] sm:$0xff]
      %v908 = vld [vmem:[%s3 + $0x30] sm:$0xff]
      %v909 = vld [vmem:[%s3 + $0x38] sm:$0xff]
      %v910 = vld [vmem:[%s4] sm:$0x1]
      %v912 = vlaneseq
      %v913 = vshrl.u32 %v912, 7
      %v914 = vsub.s32 0, %v913
      %v915 = vrot.slane %v910, %v914
      %vm917 = vcmask 523264
      %v919 = vsel %vm917, %v870, 0
      %v922 = vsel %vm917, %v871, 0
      %v925 = vsel %vm917, %v872, 0
      %v928 = vsel %vm917, %v873, 0
      %v931 = vsel %vm917, %v874, 0
      %v934 = vsel %vm917, %v875, 0
      %v937 = vsel %vm917, %v876, 0
      %v940 = vsel %vm917, %v877, 0
      %v943 = vsel %vm917, %v878, 0
      %v946 = vsel %vm917, %v879, 0
      %v949 = vsel %vm917, %v880, 0
      %v952 = vsel %vm917, %v881, 0
      %v955 = vsel %vm917, %v882, 0
      %v958 = vsel %vm917, %v883, 0
      %v961 = vsel %vm917, %v884, 0
      %v964 = vsel %vm917, %v885, 0
      %v967 = vsel %vm917, %v886, 0
      %v970 = vsel %vm917, %v887, 0
      %v973 = vsel %vm917, %v888, 0
      %v976 = vsel %vm917, %v889, 0
      %v979 = vsel %vm917, %v890, 0
      %v982 = vsel %vm917, %v891, 0
      %v985 = vsel %vm917, %v892, 0
      %v988 = vsel %vm917, %v893, 0
      %v991 = vsel %vm917, %v894, 0
      %v994 = vsel %vm917, %v895, 0
      %v997 = vsel %vm917, %v896, 0
      %v1000 = vsel %vm917, %v897, 0
      %v1003 = vsel %vm917, %v898, 0
      %v1006 = vsel %vm917, %v899, 0
      %v1009 = vsel %vm917, %v900, 0
      %v1012 = vsel %vm917, %v901, 0
      %1014 = vmatprep.subr.mxu0 0.0
      %1015 = vmatpush1.msra.mxu0 0.0
      %1016 = vmatprep.subr.mxu0 0.0
      %1017 = vmatpush1.msra.mxu0 0.0
      %1018 = vmatprep.subr.mxu0 0.0
      %1019 = vmatpush1.msra.mxu0 0.0
      %1020 = vmatprep.subr.mxu0 0.0
      %1021 = vmatpush1.msra.mxu0 0.0
      %1022 = vmatprep.subr.mxu0 0.0
      %1023 = vmatpush1.msra.mxu0 0.0
      %1024 = vmatprep.subr.mxu0 0.0
      %1025 = vmatpush1.msra.mxu0 0.0
      %1026 = vmatprep.subr.mxu0 0.0
      %1027 = vmatpush1.msra.mxu0 0.0
      %1028 = vmatprep.subr.mxu0 0.0
      %1029 = vmatpush1.msra.mxu0 0.0
      %1030 = vmatprep.subr.mxu0 0.0
      %1031 = vmatpush1.msra.mxu0 %v909
      %1032 = vmatprep.subr.mxu0 0.0
      %1033 = vmatpush1.msra.mxu0 %v908
      %1034 = vmatprep.subr.mxu0 0.0
      %1035 = vmatpush1.msra.mxu0 %v907
      %1036 = vmatprep.subr.mxu0 0.0
      %1037 = vmatpush1.msra.mxu0 %v906
      %1038 = vmatprep.subr.mxu0 0.0
      %1039 = vmatpush1.msra.mxu0 %v905
      %1040 = vmatprep.subr.mxu0 0.0
      %1041 = vmatpush1.msra.mxu0 %v904
      %1042 = vmatprep.subr.mxu0 0.0
      %1043 = vmatpush1.msra.mxu0 %v903
      %1044 = vmatprep.subr.mxu0 0.0
      %1045 = vmatpush1.msra.mxu0 %v902
      %1046 = vmatprep.subr.mxu0 0.0
      %1047 = vmatpush2.msra.mxu0 0.0
      %1048 = vmatprep.subr.mxu0 0.0
      %1049 = vmatpush2.msra.mxu0 0.0
      %1050 = vmatprep.subr.mxu0 0.0
      %1051 = vmatpush2.msra.mxu0 0.0
      %1052 = vmatprep.subr.mxu0 0.0
      %1053 = vmatpush2.msra.mxu0 0.0
      %1054 = vmatprep.subr.mxu0 0.0
      %1055 = vmatpush2.msra.mxu0 0.0
      %1056 = vmatprep.subr.mxu0 0.0
      %1057 = vmatpush2.msra.mxu0 0.0
      %1058 = vmatprep.subr.mxu0 0.0
      %1059 = vmatpush2.msra.mxu0 0.0
      %1060 = vmatprep.subr.mxu0 0.0
      %1061 = vmatpush2.msra.mxu0 0.0
      %1062 = vmatprep.subr.mxu0 0.0
      %1063 = vmatpush2.msra.mxu0 0.0
      %1064 = vmatprep.subr.mxu0 0.0
      %1065 = vmatpush2.msra.mxu0 0.0
      %1066 = vmatprep.subr.mxu0 0.0
      %1067 = vmatpush2.msra.mxu0 0.0
      %1068 = vmatprep.subr.mxu0 0.0
      %1069 = vmatpush2.msra.mxu0 0.0
      %1070 = vmatprep.subr.mxu0 0.0
      %1071 = vmatpush2.msra.mxu0 0.0
      %1072 = vmatprep.subr.mxu0 0.0
      %1073 = vmatpush2.msra.mxu0 0.0
      %1074 = vmatprep.subr.mxu0 0.0
      %1075 = vmatpush2.msra.mxu0 0.0
      %1076 = vmatprep.subr.mxu0 0.0
      %1077 = vmatpush2.msra.mxu0 0.0
      %1078 = vmatprep.mubr.f32.mxu0 0.0
      %1079 = vmatmul.mubr.f32.gmra.mxu0 %v919
      %v1080 = vpop.f32.mrf.mxu0
      %v1081 = vadd.f32 %v915, %v1080
      %v1082 = vpop.f32.mrf.mxu0
      %1083 = vmatprep.mubr.f32.mxu0 0.0
      %1084 = vmatmul.mubr.f32.gmra.mxu0 %v922
      %v1085 = vpop.f32.mrf.mxu0
      %v1086 = vadd.f32 %v915, %v1085
      %v1087 = vpop.f32.mrf.mxu0
      %1088 = vmatprep.mubr.f32.mxu0 0.0
      %1089 = vmatmul.mubr.f32.gmra.mxu0 %v925
      %v1090 = vpop.f32.mrf.mxu0
      %v1091 = vadd.f32 %v915, %v1090
      %v1092 = vpop.f32.mrf.mxu0
      %1093 = vmatprep.mubr.f32.mxu0 0.0
      %1094 = vmatmul.mubr.f32.gmra.mxu0 %v928
      %v1095 = vpop.f32.mrf.mxu0
      %v1096 = vadd.f32 %v915, %v1095
      %v1097 = vpop.f32.mrf.mxu0
      %1098 = vmatprep.mubr.f32.mxu0 0.0
      %1099 = vmatmul.mubr.f32.gmra.mxu0 %v931
      %v1100 = vpop.f32.mrf.mxu0
      %v1101 = vadd.f32 %v915, %v1100
      %v1102 = vpop.f32.mrf.mxu0
      %1103 = vmatprep.mubr.f32.mxu0 0.0
      %1104 = vmatmul.mubr.f32.gmra.mxu0 %v934
      %v1105 = vpop.f32.mrf.mxu0
      %v1106 = vadd.f32 %v915, %v1105
      %v1107 = vpop.f32.mrf.mxu0
      %1108 = vmatprep.mubr.f32.mxu0 0.0
      %1109 = vmatmul.mubr.f32.gmra.mxu0 %v937
      %v1110 = vpop.f32.mrf.mxu0
      %v1111 = vadd.f32 %v915, %v1110
      %v1112 = vpop.f32.mrf.mxu0
      %1113 = vmatprep.mubr.f32.mxu0 0.0
      %1114 = vmatmul.mubr.f32.gmra.mxu0 %v940
      %v1115 = vpop.f32.mrf.mxu0
      %v1116 = vadd.f32 %v915, %v1115
      %v1117 = vpop.f32.mrf.mxu0
      %1118 = vmatprep.mubr.f32.mxu0 0.0
      %1119 = vmatmul.mubr.f32.gmra.mxu0 %v943
      %v1120 = vpop.f32.mrf.mxu0
      %v1121 = vadd.f32 %v915, %v1120
      %v1122 = vpop.f32.mrf.mxu0
      %1123 = vmatprep.mubr.f32.mxu0 0.0
      %1124 = vmatmul.mubr.f32.gmra.mxu0 %v946
      %v1125 = vpop.f32.mrf.mxu0
      %v1126 = vadd.f32 %v915, %v1125
      %v1127 = vpop.f32.mrf.mxu0
      %1128 = vmatprep.mubr.f32.mxu0 0.0
      %1129 = vmatmul.mubr.f32.gmra.mxu0 %v949
      %v1130 = vpop.f32.mrf.mxu0
      %v1131 = vadd.f32 %v915, %v1130
      %v1132 = vpop.f32.mrf.mxu0
      %1133 = vmatprep.mubr.f32.mxu0 0.0
      %1134 = vmatmul.mubr.f32.gmra.mxu0 %v952
      %v1135 = vpop.f32.mrf.mxu0
      %v1136 = vadd.f32 %v915, %v1135
      %v1137 = vpop.f32.mrf.mxu0
      %1138 = vmatprep.mubr.f32.mxu0 0.0
      %1139 = vmatmul.mubr.f32.gmra.mxu0 %v955
      %v1140 = vpop.f32.mrf.mxu0
      %v1141 = vadd.f32 %v915, %v1140
      %v1142 = vpop.f32.mrf.mxu0
      %1143 = vmatprep.mubr.f32.mxu0 0.0
      %1144 = vmatmul.mubr.f32.gmra.mxu0 %v958
      %v1145 = vpop.f32.mrf.mxu0
      %v1146 = vadd.f32 %v915, %v1145
      %v1147 = vpop.f32.mrf.mxu0
      %1148 = vmatprep.mubr.f32.mxu0 0.0
      %1149 = vmatmul.mubr.f32.gmra.mxu0 %v961
      %v1150 = vpop.f32.mrf.mxu0
      %v1151 = vadd.f32 %v915, %v1150
      %v1152 = vpop.f32.mrf.mxu0
      %1153 = vmatprep.mubr.f32.mxu0 0.0
      %1154 = vmatmul.mubr.f32.gmra.mxu0 %v964
      %v1155 = vpop.f32.mrf.mxu0
      %v1156 = vadd.f32 %v915, %v1155
      %v1157 = vpop.f32.mrf.mxu0
      %1158 = vmatprep.mubr.f32.mxu0 0.0
      %1159 = vmatmul.mubr.f32.gmra.mxu0 %v967
      %v1160 = vpop.f32.mrf.mxu0
      %v1161 = vadd.f32 %v915, %v1160
      %v1162 = vpop.f32.mrf.mxu0
      %1163 = vmatprep.mubr.f32.mxu0 0.0
      %1164 = vmatmul.mubr.f32.gmra.mxu0 %v970
      %v1165 = vpop.f32.mrf.mxu0
      %v1166 = vadd.f32 %v915, %v1165
      %v1167 = vpop.f32.mrf.mxu0
      %1168 = vmatprep.mubr.f32.mxu0 0.0
      %1169 = vmatmul.mubr.f32.gmra.mxu0 %v973
      %v1170 = vpop.f32.mrf.mxu0
      %v1171 = vadd.f32 %v915, %v1170
      %v1172 = vpop.f32.mrf.mxu0
      %1173 = vmatprep.mubr.f32.mxu0 0.0
      %1174 = vmatmul.mubr.f32.gmra.mxu0 %v976
      %v1175 = vpop.f32.mrf.mxu0
      %v1176 = vadd.f32 %v915, %v1175
      %v1177 = vpop.f32.mrf.mxu0
      %1178 = vmatprep.mubr.f32.mxu0 0.0
      %1179 = vmatmul.mubr.f32.gmra.mxu0 %v979
      %v1180 = vpop.f32.mrf.mxu0
      %v1181 = vadd.f32 %v915, %v1180
      %v1182 = vpop.f32.mrf.mxu0
      %1183 = vmatprep.mubr.f32.mxu0 0.0
      %1184 = vmatmul.mubr.f32.gmra.mxu0 %v982
      %v1185 = vpop.f32.mrf.mxu0
      %v1186 = vadd.f32 %v915, %v1185
      %v1187 = vpop.f32.mrf.mxu0
      %1188 = vmatprep.mubr.f32.mxu0 0.0
      %1189 = vmatmul.mubr.f32.gmra.mxu0 %v985
      %v1190 = vpop.f32.mrf.mxu0
      %v1191 = vadd.f32 %v915, %v1190
      %v1192 = vpop.f32.mrf.mxu0
      %1193 = vmatprep.mubr.f32.mxu0 0.0
      %1194 = vmatmul.mubr.f32.gmra.mxu0 %v988
      %v1195 = vpop.f32.mrf.mxu0
      %v1196 = vadd.f32 %v915, %v1195
      %v1197 = vpop.f32.mrf.mxu0
      %1198 = vmatprep.mubr.f32.mxu0 0.0
      %1199 = vmatmul.mubr.f32.gmra.mxu0 %v991
      %v1200 = vpop.f32.mrf.mxu0
      %v1201 = vadd.f32 %v915, %v1200
      %v1202 = vpop.f32.mrf.mxu0
      %1203 = vmatprep.mubr.f32.mxu0 0.0
      %1204 = vmatmul.mubr.f32.gmra.mxu0 %v994
      %v1205 = vpop.f32.mrf.mxu0
      %v1206 = vadd.f32 %v915, %v1205
      %v1207 = vpop.f32.mrf.mxu0
      %1208 = vmatprep.mubr.f32.mxu0 0.0
      %1209 = vmatmul.mubr.f32.gmra.mxu0 %v997
      %v1210 = vpop.f32.mrf.mxu0
      %v1211 = vadd.f32 %v915, %v1210
      %v1212 = vpop.f32.mrf.mxu0
      %1213 = vmatprep.mubr.f32.mxu0 0.0
      %1214 = vmatmul.mubr.f32.gmra.mxu0 %v1000
      %v1215 = vpop.f32.mrf.mxu0
      %v1216 = vadd.f32 %v915, %v1215
      %v1217 = vpop.f32.mrf.mxu0
      %1218 = vmatprep.mubr.f32.mxu0 0.0
      %1219 = vmatmul.mubr.f32.gmra.mxu0 %v1003
      %v1220 = vpop.f32.mrf.mxu0
      %v1221 = vadd.f32 %v915, %v1220
      %v1222 = vpop.f32.mrf.mxu0
      %1223 = vmatprep.mubr.f32.mxu0 0.0
      %1224 = vmatmul.mubr.f32.gmra.mxu0 %v1006
      %v1225 = vpop.f32.mrf.mxu0
      %v1226 = vadd.f32 %v915, %v1225
      %v1227 = vpop.f32.mrf.mxu0
      %1228 = vmatprep.mubr.f32.mxu0 0.0
      %1229 = vmatmul.mubr.f32.gmra.mxu0 %v1009
      %v1230 = vpop.f32.mrf.mxu0
      %v1231 = vadd.f32 %v915, %v1230
      %v1232 = vpop.f32.mrf.mxu0
      %1233 = vmatprep.mubr.f32.mxu0 0.0
      %1234 = vmatmul.mubr.f32.gmra.mxu0 %v1012
      %v1235 = vpop.f32.mrf.mxu0
      %v1236 = vadd.f32 %v915, %v1235
      %v1237 = vpop.f32.mrf.mxu0
      %1238 = vdwg.mxu0
      %v1239 = vsub.f32 0.0, %v1081
      %v1240 = vsub.f32 0.0, %v1086
      %v1241 = vsub.f32 0.0, %v1091
      %v1242 = vsub.f32 0.0, %v1096
      %v1243 = vsub.f32 0.0, %v1101
      %v1244 = vsub.f32 0.0, %v1106
      %v1245 = vsub.f32 0.0, %v1111
      %v1246 = vsub.f32 0.0, %v1116
      %v1247 = vsub.f32 0.0, %v1121
      %v1248 = vsub.f32 0.0, %v1126
      %v1249 = vsub.f32 0.0, %v1131
      %v1250 = vsub.f32 0.0, %v1136
      %v1251 = vsub.f32 0.0, %v1141
      %v1252 = vsub.f32 0.0, %v1146
      %v1253 = vsub.f32 0.0, %v1151
      %v1254 = vsub.f32 0.0, %v1156
      %v1255 = vsub.f32 0.0, %v1161
      %v1256 = vsub.f32 0.0, %v1166
      %v1257 = vsub.f32 0.0, %v1171
      %v1258 = vsub.f32 0.0, %v1176
      %v1259 = vsub.f32 0.0, %v1181
      %v1260 = vsub.f32 0.0, %v1186
      %v1261 = vsub.f32 0.0, %v1191
      %v1262 = vsub.f32 0.0, %v1196
      %v1263 = vsub.f32 0.0, %v1201
      %v1264 = vsub.f32 0.0, %v1206
      %v1265 = vsub.f32 0.0, %v1211
      %v1266 = vsub.f32 0.0, %v1216
      %v1267 = vsub.f32 0.0, %v1221
      %v1268 = vsub.f32 0.0, %v1226
      %v1269 = vsub.f32 0.0, %v1231
      %v1270 = vsub.f32 0.0, %v1236
      %v1271 = vmul.f32 %v1239, 1.442695
      %v1272 = vpow.pop %v1271
      %v1273 = vmul.f32 %v1240, 1.442695
      %v1274 = vpow.pop %v1273
      %v1275 = vmul.f32 %v1241, 1.442695
      %v1276 = vpow.pop %v1275
      %v1277 = vmul.f32 %v1242, 1.442695
      %v1278 = vpow.pop %v1277
      %v1279 = vmul.f32 %v1243, 1.442695
      %v1280 = vpow.pop %v1279
      %v1281 = vmul.f32 %v1244, 1.442695
      %v1282 = vpow.pop %v1281
      %v1283 = vmul.f32 %v1245, 1.442695
      %v1284 = vpow.pop %v1283
      %v1285 = vmul.f32 %v1246, 1.442695
      %v1286 = vpow.pop %v1285
      %v1287 = vmul.f32 %v1247, 1.442695
      %v1288 = vpow.pop %v1287
      %v1289 = vmul.f32 %v1248, 1.442695
      %v1290 = vpow.pop %v1289
      %v1291 = vmul.f32 %v1249, 1.442695
      %v1292 = vpow.pop %v1291
      %v1293 = vmul.f32 %v1250, 1.442695
      %v1294 = vpow.pop %v1293
      %v1295 = vmul.f32 %v1251, 1.442695
      %v1296 = vpow.pop %v1295
      %v1297 = vmul.f32 %v1252, 1.442695
      %v1298 = vpow.pop %v1297
      %v1299 = vmul.f32 %v1253, 1.442695
      %v1300 = vpow.pop %v1299
      %v1301 = vmul.f32 %v1254, 1.442695
      %v1302 = vpow.pop %v1301
      %v1303 = vmul.f32 %v1255, 1.442695
      %v1304 = vpow.pop %v1303
      %v1305 = vmul.f32 %v1256, 1.442695
      %v1306 = vpow.pop %v1305
      %v1307 = vmul.f32 %v1257, 1.442695
      %v1308 = vpow.pop %v1307
      %v1309 = vmul.f32 %v1258, 1.442695
      %v1310 = vpow.pop %v1309
      %v1311 = vmul.f32 %v1259, 1.442695
      %v1312 = vpow.pop %v1311
      %v1313 = vmul.f32 %v1260, 1.442695
      %v1314 = vpow.pop %v1313
      %v1315 = vmul.f32 %v1261, 1.442695
      %v1316 = vpow.pop %v1315
      %v1317 = vmul.f32 %v1262, 1.442695
      %v1318 = vpow.pop %v1317
      %v1319 = vmul.f32 %v1263, 1.442695
      %v1320 = vpow.pop %v1319
      %v1321 = vmul.f32 %v1264, 1.442695
      %v1322 = vpow.pop %v1321
      %v1323 = vmul.f32 %v1265, 1.442695
      %v1324 = vpow.pop %v1323
      %v1325 = vmul.f32 %v1266, 1.442695
      %v1326 = vpow.pop %v1325
      %v1327 = vmul.f32 %v1267, 1.442695
      %v1328 = vpow.pop %v1327
      %v1329 = vmul.f32 %v1268, 1.442695
      %v1330 = vpow.pop %v1329
      %v1331 = vmul.f32 %v1269, 1.442695
      %v1332 = vpow.pop %v1331
      %v1333 = vmul.f32 %v1270, 1.442695
      %v1334 = vpow.pop %v1333
      %v1335 = vadd.f32 %v1272, 1.0
      %v1336 = vadd.f32 %v1274, 1.0
      %v1337 = vadd.f32 %v1276, 1.0
      %v1338 = vadd.f32 %v1278, 1.0
      %v1339 = vadd.f32 %v1280, 1.0
      %v1340 = vadd.f32 %v1282, 1.0
      %v1341 = vadd.f32 %v1284, 1.0
      %v1342 = vadd.f32 %v1286, 1.0
      %v1343 = vadd.f32 %v1288, 1.0
      %v1344 = vadd.f32 %v1290, 1.0
      %v1345 = vadd.f32 %v1292, 1.0
      %v1346 = vadd.f32 %v1294, 1.0
      %v1347 = vadd.f32 %v1296, 1.0
      %v1348 = vadd.f32 %v1298, 1.0
      %v1349 = vadd.f32 %v1300, 1.0
      %v1350 = vadd.f32 %v1302, 1.0
      %v1351 = vadd.f32 %v1304, 1.0
      %v1352 = vadd.f32 %v1306, 1.0
      %v1353 = vadd.f32 %v1308, 1.0
      %v1354 = vadd.f32 %v1310, 1.0
      %v1355 = vadd.f32 %v1312, 1.0
      %v1356 = vadd.f32 %v1314, 1.0
      %v1357 = vadd.f32 %v1316, 1.0
      %v1358 = vadd.f32 %v1318, 1.0
      %v1359 = vadd.f32 %v1320, 1.0
      %v1360 = vadd.f32 %v1322, 1.0
      %v1361 = vadd.f32 %v1324, 1.0
      %v1362 = vadd.f32 %v1326, 1.0
      %v1363 = vadd.f32 %v1328, 1.0
      %v1364 = vadd.f32 %v1330, 1.0
      %v1365 = vadd.f32 %v1332, 1.0
      %v1366 = vadd.f32 %v1334, 1.0
      %v1367 = vrcp.pop %v1335
      %v1368 = vmul.f32 1.0, %v1367
      %v1369 = vrcp.pop %v1336
      %v1370 = vmul.f32 1.0, %v1369
      %v1371 = vrcp.pop %v1337
      %v1372 = vmul.f32 1.0, %v1371
      %v1373 = vrcp.pop %v1338
      %v1374 = vmul.f32 1.0, %v1373
      %v1375 = vrcp.pop %v1339
      %v1376 = vmul.f32 1.0, %v1375
      %v1377 = vrcp.pop %v1340
      %v1378 = vmul.f32 1.0, %v1377
      %v1379 = vrcp.pop %v1341
      %v1380 = vmul.f32 1.0, %v1379
      %v1381 = vrcp.pop %v1342
      %v1382 = vmul.f32 1.0, %v1381
      %v1383 = vrcp.pop %v1343
      %v1384 = vmul.f32 1.0, %v1383
      %v1385 = vrcp.pop %v1344
      %v1386 = vmul.f32 1.0, %v1385
      %v1387 = vrcp.pop %v1345
      %v1388 = vmul.f32 1.0, %v1387
      %v1389 = vrcp.pop %v1346
      %v1390 = vmul.f32 1.0, %v1389
      %v1391 = vrcp.pop %v1347
      %v1392 = vmul.f32 1.0, %v1391
      %v1393 = vrcp.pop %v1348
      %v1394 = vmul.f32 1.0, %v1393
      %v1395 = vrcp.pop %v1349
      %v1396 = vmul.f32 1.0, %v1395
      %v1397 = vrcp.pop %v1350
      %v1398 = vmul.f32 1.0, %v1397
      %v1399 = vrcp.pop %v1351
      %v1400 = vmul.f32 1.0, %v1399
      %v1401 = vrcp.pop %v1352
      %v1402 = vmul.f32 1.0, %v1401
      %v1403 = vrcp.pop %v1353
      %v1404 = vmul.f32 1.0, %v1403
      %v1405 = vrcp.pop %v1354
      %v1406 = vmul.f32 1.0, %v1405
      %v1407 = vrcp.pop %v1355
      %v1408 = vmul.f32 1.0, %v1407
      %v1409 = vrcp.pop %v1356
      %v1410 = vmul.f32 1.0, %v1409
      %v1411 = vrcp.pop %v1357
      %v1412 = vmul.f32 1.0, %v1411
      %v1413 = vrcp.pop %v1358
      %v1414 = vmul.f32 1.0, %v1413
      %v1415 = vrcp.pop %v1359
      %v1416 = vmul.f32 1.0, %v1415
      %v1417 = vrcp.pop %v1360
      %v1418 = vmul.f32 1.0, %v1417
      %v1419 = vrcp.pop %v1361
      %v1420 = vmul.f32 1.0, %v1419
      %v1421 = vrcp.pop %v1362
      %v1422 = vmul.f32 1.0, %v1421
      %v1423 = vrcp.pop %v1363
      %v1424 = vmul.f32 1.0, %v1423
      %v1425 = vrcp.pop %v1364
      %v1426 = vmul.f32 1.0, %v1425
      %v1427 = vrcp.pop %v1365
      %v1428 = vmul.f32 1.0, %v1427
      %v1429 = vrcp.pop %v1366
      %v1430 = vmul.f32 1.0, %v1429
      %v1431 = vld [vmem:[%s5] sm:$0xff]
      %v1432 = vld [vmem:[%s5 + $0x8] sm:$0xff]
      %v1433 = vld [vmem:[%s5 + $0x10] sm:$0xff]
      %v1434 = vld [vmem:[%s5 + $0x18] sm:$0xff]
      %v1435 = vld [vmem:[%s6] sm:$0x1]
      %v1437 = vlaneseq
      %v1438 = vshrl.u32 %v1437, 7
      %v1439 = vsub.s32 0, %v1438
      %v1440 = vrot.slane %v1435, %v1439
      %1474 = vrot.lane.b32.xlu0 %v1368, 124
      %v1475 = vpop.permute.xlu0 %1474
      %1476 = vrot.lane.b32.xlu0 %v1370, 124
      %v1477 = vpop.permute.xlu0 %1476
      %1478 = vrot.lane.b32.xlu0 %v1372, 124
      %v1479 = vpop.permute.xlu0 %1478
      %1480 = vrot.lane.b32.xlu0 %v1374, 124
      %v1481 = vpop.permute.xlu0 %1480
      %1482 = vrot.lane.b32.xlu0 %v1376, 124
      %v1483 = vpop.permute.xlu0 %1482
      %1484 = vrot.lane.b32.xlu0 %v1378, 124
      %v1485 = vpop.permute.xlu0 %1484
      %1486 = vrot.lane.b32.xlu0 %v1380, 124
      %v1487 = vpop.permute.xlu0 %1486
      %1488 = vrot.lane.b32.xlu0 %v1382, 124
      %v1489 = vpop.permute.xlu0 %1488
      %1490 = vrot.lane.b32.xlu0 %v1384, 124
      %v1491 = vpop.permute.xlu0 %1490
      %1492 = vrot.lane.b32.xlu0 %v1386, 124
      %v1493 = vpop.permute.xlu0 %1492
      %1494 = vrot.lane.b32.xlu0 %v1388, 124
      %v1495 = vpop.permute.xlu0 %1494
      %1496 = vrot.lane.b32.xlu0 %v1390, 124
      %v1497 = vpop.permute.xlu0 %1496
      %1498 = vrot.lane.b32.xlu0 %v1392, 124
      %v1499 = vpop.permute.xlu0 %1498
      %1500 = vrot.lane.b32.xlu0 %v1394, 124
      %v1501 = vpop.permute.xlu0 %1500
      %1502 = vrot.lane.b32.xlu0 %v1396, 124
      %v1503 = vpop.permute.xlu0 %1502
      %1504 = vrot.lane.b32.xlu0 %v1398, 124
      %v1505 = vpop.permute.xlu0 %1504
      %1506 = vrot.lane.b32.xlu0 %v1400, 124
      %v1507 = vpop.permute.xlu0 %1506
      %1508 = vrot.lane.b32.xlu0 %v1402, 124
      %v1509 = vpop.permute.xlu0 %1508
      %1510 = vrot.lane.b32.xlu0 %v1404, 124
      %v1511 = vpop.permute.xlu0 %1510
      %1512 = vrot.lane.b32.xlu0 %v1406, 124
      %v1513 = vpop.permute.xlu0 %1512
      %1514 = vrot.lane.b32.xlu0 %v1408, 124
      %v1515 = vpop.permute.xlu0 %1514
      %1516 = vrot.lane.b32.xlu0 %v1410, 124
      %v1517 = vpop.permute.xlu0 %1516
      %1518 = vrot.lane.b32.xlu0 %v1412, 124
      %v1519 = vpop.permute.xlu0 %1518
      %1520 = vrot.lane.b32.xlu0 %v1414, 124
      %v1521 = vpop.permute.xlu0 %1520
      %1522 = vrot.lane.b32.xlu0 %v1416, 124
      %v1523 = vpop.permute.xlu0 %1522
      %1524 = vrot.lane.b32.xlu0 %v1418, 124
      %v1525 = vpop.permute.xlu0 %1524
      %1526 = vrot.lane.b32.xlu0 %v1420, 124
      %v1527 = vpop.permute.xlu0 %1526
      %1528 = vrot.lane.b32.xlu0 %v1422, 124
      %v1529 = vpop.permute.xlu0 %1528
      %1530 = vrot.lane.b32.xlu0 %v1424, 124
      %v1531 = vpop.permute.xlu0 %1530
      %1532 = vrot.lane.b32.xlu0 %v1426, 124
      %v1533 = vpop.permute.xlu0 %1532
      %1534 = vrot.lane.b32.xlu0 %v1428, 124
      %v1535 = vpop.permute.xlu0 %1534
      %1536 = vrot.lane.b32.xlu0 %v1430, 124
      %v1537 = vpop.permute.xlu0 %1536
      %v1538 = vsel %vm869, %v1475, 0
      %v1540 = vsel %vm869, %v1477, 0
      %v1542 = vsel %vm869, %v1479, 0
      %v1544 = vsel %vm869, %v1481, 0
      %v1546 = vsel %vm869, %v1483, 0
      %v1548 = vsel %vm869, %v1485, 0
      %v1550 = vsel %vm869, %v1487, 0
      %v1552 = vsel %vm869, %v1489, 0
      %v1554 = vsel %vm869, %v1491, 0
      %v1556 = vsel %vm869, %v1493, 0
      %v1558 = vsel %vm869, %v1495, 0
      %v1560 = vsel %vm869, %v1497, 0
      %v1562 = vsel %vm869, %v1499, 0
      %v1564 = vsel %vm869, %v1501, 0
      %v1566 = vsel %vm869, %v1503, 0
      %v1568 = vsel %vm869, %v1505, 0
      %v1570 = vsel %vm869, %v1507, 0
      %v1572 = vsel %vm869, %v1509, 0
      %v1574 = vsel %vm869, %v1511, 0
      %v1576 = vsel %vm869, %v1513, 0
      %v1578 = vsel %vm869, %v1515, 0
      %v1580 = vsel %vm869, %v1517, 0
      %v1582 = vsel %vm869, %v1519, 0
      %v1584 = vsel %vm869, %v1521, 0
      %v1586 = vsel %vm869, %v1523, 0
      %v1588 = vsel %vm869, %v1525, 0
      %v1590 = vsel %vm869, %v1527, 0
      %v1592 = vsel %vm869, %v1529, 0
      %v1594 = vsel %vm869, %v1531, 0
      %v1596 = vsel %vm869, %v1533, 0
      %v1598 = vsel %vm869, %v1535, 0
      %v1600 = vsel %vm869, %v1537, 0
      %1602 = vmatprep.subr.mxu0 0.0
      %1603 = vmatpush1.msra.mxu0 0.0
      %1604 = vmatprep.subr.mxu0 0.0
      %1605 = vmatpush1.msra.mxu0 0.0
      %1606 = vmatprep.subr.mxu0 0.0
      %1607 = vmatpush1.msra.mxu0 0.0
      %1608 = vmatprep.subr.mxu0 0.0
      %1609 = vmatpush1.msra.mxu0 0.0
      %1610 = vmatprep.subr.mxu0 0.0
      %1611 = vmatpush1.msra.mxu0 0.0
      %1612 = vmatprep.subr.mxu0 0.0
      %1613 = vmatpush1.msra.mxu0 0.0
      %1614 = vmatprep.subr.mxu0 0.0
      %1615 = vmatpush1.msra.mxu0 0.0
      %1616 = vmatprep.subr.mxu0 0.0
      %1617 = vmatpush1.msra.mxu0 0.0
      %1618 = vmatprep.subr.mxu0 0.0
      %1619 = vmatpush1.msra.mxu0 0.0
      %1620 = vmatprep.subr.mxu0 0.0
      %1621 = vmatpush1.msra.mxu0 0.0
      %1622 = vmatprep.subr.mxu0 0.0
      %1623 = vmatpush1.msra.mxu0 0.0
      %1624 = vmatprep.subr.mxu0 0.0
      %1625 = vmatpush1.msra.mxu0 0.0
      %1626 = vmatprep.subr.mxu0 0.0
      %1627 = vmatpush1.msra.mxu0 %v1434
      %1628 = vmatprep.subr.mxu0 0.0
      %1629 = vmatpush1.msra.mxu0 %v1433
      %1630 = vmatprep.subr.mxu0 0.0
      %1631 = vmatpush1.msra.mxu0 %v1432
      %1632 = vmatprep.subr.mxu0 0.0
      %1633 = vmatpush1.msra.mxu0 %v1431
      %1634 = vmatprep.subr.mxu0 0.0
      %1635 = vmatpush2.msra.mxu0 0.0
      %1636 = vmatprep.subr.mxu0 0.0
      %1637 = vmatpush2.msra.mxu0 0.0
      %1638 = vmatprep.subr.mxu0 0.0
      %1639 = vmatpush2.msra.mxu0 0.0
      %1640 = vmatprep.subr.mxu0 0.0
      %1641 = vmatpush2.msra.mxu0 0.0
      %1642 = vmatprep.subr.mxu0 0.0
      %1643 = vmatpush2.msra.mxu0 0.0
      %1644 = vmatprep.subr.mxu0 0.0
      %1645 = vmatpush2.msra.mxu0 0.0
      %1646 = vmatprep.subr.mxu0 0.0
      %1647 = vmatpush2.msra.mxu0 0.0
      %1648 = vmatprep.subr.mxu0 0.0
      %1649 = vmatpush2.msra.mxu0 0.0
      %1650 = vmatprep.subr.mxu0 0.0
      %1651 = vmatpush2.msra.mxu0 0.0
      %1652 = vmatprep.subr.mxu0 0.0
      %1653 = vmatpush2.msra.mxu0 0.0
      %1654 = vmatprep.subr.mxu0 0.0
      %1655 = vmatpush2.msra.mxu0 0.0
      %1656 = vmatprep.subr.mxu0 0.0
      %1657 = vmatpush2.msra.mxu0 0.0
      %1658 = vmatprep.subr.mxu0 0.0
      %1659 = vmatpush2.msra.mxu0 0.0
      %1660 = vmatprep.subr.mxu0 0.0
      %1661 = vmatpush2.msra.mxu0 0.0
      %1662 = vmatprep.subr.mxu0 0.0
      %1663 = vmatpush2.msra.mxu0 0.0
      %1664 = vmatprep.subr.mxu0 0.0
      %1665 = vmatpush2.msra.mxu0 0.0
      %1666 = vmatprep.mubr.f32.mxu0 0.0
      %1667 = vmatmul.mubr.f32.gmra.mxu0 %v1538
      %v1668 = vpop.f32.mrf.mxu0
      %v1669 = vadd.f32 %v1440, %v1668
      %v1670 = vpop.f32.mrf.mxu0
      %1671 = vmatprep.mubr.f32.mxu0 0.0
      %1672 = vmatmul.mubr.f32.gmra.mxu0 %v1540
      %v1673 = vpop.f32.mrf.mxu0
      %v1674 = vadd.f32 %v1440, %v1673
      %v1675 = vpop.f32.mrf.mxu0
      %1676 = vmatprep.mubr.f32.mxu0 0.0
      %1677 = vmatmul.mubr.f32.gmra.mxu0 %v1542
      %v1678 = vpop.f32.mrf.mxu0
      %v1679 = vadd.f32 %v1440, %v1678
      %v1680 = vpop.f32.mrf.mxu0
      %1681 = vmatprep.mubr.f32.mxu0 0.0
      %1682 = vmatmul.mubr.f32.gmra.mxu0 %v1544
      %v1683 = vpop.f32.mrf.mxu0
      %v1684 = vadd.f32 %v1440, %v1683
      %v1685 = vpop.f32.mrf.mxu0
      %1686 = vmatprep.mubr.f32.mxu0 0.0
      %1687 = vmatmul.mubr.f32.gmra.mxu0 %v1546
      %v1688 = vpop.f32.mrf.mxu0
      %v1689 = vadd.f32 %v1440, %v1688
      %v1690 = vpop.f32.mrf.mxu0
      %1691 = vmatprep.mubr.f32.mxu0 0.0
      %1692 = vmatmul.mubr.f32.gmra.mxu0 %v1548
      %v1693 = vpop.f32.mrf.mxu0
      %v1694 = vadd.f32 %v1440, %v1693
      %v1695 = vpop.f32.mrf.mxu0
      %1696 = vmatprep.mubr.f32.mxu0 0.0
      %1697 = vmatmul.mubr.f32.gmra.mxu0 %v1550
      %v1698 = vpop.f32.mrf.mxu0
      %v1699 = vadd.f32 %v1440, %v1698
      %v1700 = vpop.f32.mrf.mxu0
      %1701 = vmatprep.mubr.f32.mxu0 0.0
      %1702 = vmatmul.mubr.f32.gmra.mxu0 %v1552
      %v1703 = vpop.f32.mrf.mxu0
      %v1704 = vadd.f32 %v1440, %v1703
      %v1705 = vpop.f32.mrf.mxu0
      %1706 = vmatprep.mubr.f32.mxu0 0.0
      %1707 = vmatmul.mubr.f32.gmra.mxu0 %v1554
      %v1708 = vpop.f32.mrf.mxu0
      %v1709 = vadd.f32 %v1440, %v1708
      %v1710 = vpop.f32.mrf.mxu0
      %1711 = vmatprep.mubr.f32.mxu0 0.0
      %1712 = vmatmul.mubr.f32.gmra.mxu0 %v1556
      %v1713 = vpop.f32.mrf.mxu0
      %v1714 = vadd.f32 %v1440, %v1713
      %v1715 = vpop.f32.mrf.mxu0
      %1716 = vmatprep.mubr.f32.mxu0 0.0
      %1717 = vmatmul.mubr.f32.gmra.mxu0 %v1558
      %v1718 = vpop.f32.mrf.mxu0
      %v1719 = vadd.f32 %v1440, %v1718
      %v1720 = vpop.f32.mrf.mxu0
      %1721 = vmatprep.mubr.f32.mxu0 0.0
      %1722 = vmatmul.mubr.f32.gmra.mxu0 %v1560
      %v1723 = vpop.f32.mrf.mxu0
      %v1724 = vadd.f32 %v1440, %v1723
      %v1725 = vpop.f32.mrf.mxu0
      %1726 = vmatprep.mubr.f32.mxu0 0.0
      %1727 = vmatmul.mubr.f32.gmra.mxu0 %v1562
      %v1728 = vpop.f32.mrf.mxu0
      %v1729 = vadd.f32 %v1440, %v1728
      %v1730 = vpop.f32.mrf.mxu0
      %1731 = vmatprep.mubr.f32.mxu0 0.0
      %1732 = vmatmul.mubr.f32.gmra.mxu0 %v1564
      %v1733 = vpop.f32.mrf.mxu0
      %v1734 = vadd.f32 %v1440, %v1733
      %v1735 = vpop.f32.mrf.mxu0
      %1736 = vmatprep.mubr.f32.mxu0 0.0
      %1737 = vmatmul.mubr.f32.gmra.mxu0 %v1566
      %v1738 = vpop.f32.mrf.mxu0
      %v1739 = vadd.f32 %v1440, %v1738
      %v1740 = vpop.f32.mrf.mxu0
      %1741 = vmatprep.mubr.f32.mxu0 0.0
      %1742 = vmatmul.mubr.f32.gmra.mxu0 %v1568
      %v1743 = vpop.f32.mrf.mxu0
      %v1744 = vadd.f32 %v1440, %v1743
      %v1745 = vpop.f32.mrf.mxu0
      %1746 = vmatprep.mubr.f32.mxu0 0.0
      %1747 = vmatmul.mubr.f32.gmra.mxu0 %v1570
      %v1748 = vpop.f32.mrf.mxu0
      %v1749 = vadd.f32 %v1440, %v1748
      %v1750 = vpop.f32.mrf.mxu0
      %1751 = vmatprep.mubr.f32.mxu0 0.0
      %1752 = vmatmul.mubr.f32.gmra.mxu0 %v1572
      %v1753 = vpop.f32.mrf.mxu0
      %v1754 = vadd.f32 %v1440, %v1753
      %v1755 = vpop.f32.mrf.mxu0
      %1756 = vmatprep.mubr.f32.mxu0 0.0
      %1757 = vmatmul.mubr.f32.gmra.mxu0 %v1574
      %v1758 = vpop.f32.mrf.mxu0
      %v1759 = vadd.f32 %v1440, %v1758
      %v1760 = vpop.f32.mrf.mxu0
      %1761 = vmatprep.mubr.f32.mxu0 0.0
      %1762 = vmatmul.mubr.f32.gmra.mxu0 %v1576
      %v1763 = vpop.f32.mrf.mxu0
      %v1764 = vadd.f32 %v1440, %v1763
      %v1765 = vpop.f32.mrf.mxu0
      %1766 = vmatprep.mubr.f32.mxu0 0.0
      %1767 = vmatmul.mubr.f32.gmra.mxu0 %v1578
      %v1768 = vpop.f32.mrf.mxu0
      %v1769 = vadd.f32 %v1440, %v1768
      %v1770 = vpop.f32.mrf.mxu0
      %1771 = vmatprep.mubr.f32.mxu0 0.0
      %1772 = vmatmul.mubr.f32.gmra.mxu0 %v1580
      %v1773 = vpop.f32.mrf.mxu0
      %v1774 = vadd.f32 %v1440, %v1773
      %v1775 = vpop.f32.mrf.mxu0
      %1776 = vmatprep.mubr.f32.mxu0 0.0
      %1777 = vmatmul.mubr.f32.gmra.mxu0 %v1582
      %v1778 = vpop.f32.mrf.mxu0
      %v1779 = vadd.f32 %v1440, %v1778
      %v1780 = vpop.f32.mrf.mxu0
      %1781 = vmatprep.mubr.f32.mxu0 0.0
      %1782 = vmatmul.mubr.f32.gmra.mxu0 %v1584
      %v1783 = vpop.f32.mrf.mxu0
      %v1784 = vadd.f32 %v1440, %v1783
      %v1785 = vpop.f32.mrf.mxu0
      %1786 = vmatprep.mubr.f32.mxu0 0.0
      %1787 = vmatmul.mubr.f32.gmra.mxu0 %v1586
      %v1788 = vpop.f32.mrf.mxu0
      %v1789 = vadd.f32 %v1440, %v1788
      %v1790 = vpop.f32.mrf.mxu0
      %1791 = vmatprep.mubr.f32.mxu0 0.0
      %1792 = vmatmul.mubr.f32.gmra.mxu0 %v1588
      %v1793 = vpop.f32.mrf.mxu0
      %v1794 = vadd.f32 %v1440, %v1793
      %v1795 = vpop.f32.mrf.mxu0
      %1796 = vmatprep.mubr.f32.mxu0 0.0
      %1797 = vmatmul.mubr.f32.gmra.mxu0 %v1590
      %v1798 = vpop.f32.mrf.mxu0
      %v1799 = vadd.f32 %v1440, %v1798
      %v1800 = vpop.f32.mrf.mxu0
      %1801 = vmatprep.mubr.f32.mxu0 0.0
      %1802 = vmatmul.mubr.f32.gmra.mxu0 %v1592
      %v1803 = vpop.f32.mrf.mxu0
      %v1804 = vadd.f32 %v1440, %v1803
      %v1805 = vpop.f32.mrf.mxu0
      %1806 = vmatprep.mubr.f32.mxu0 0.0
      %1807 = vmatmul.mubr.f32.gmra.mxu0 %v1594
      %v1808 = vpop.f32.mrf.mxu0
      %v1809 = vadd.f32 %v1440, %v1808
      %v1810 = vpop.f32.mrf.mxu0
      %1811 = vmatprep.mubr.f32.mxu0 0.0
      %1812 = vmatmul.mubr.f32.gmra.mxu0 %v1596
      %v1813 = vpop.f32.mrf.mxu0
      %v1814 = vadd.f32 %v1440, %v1813
      %v1815 = vpop.f32.mrf.mxu0
      %1816 = vmatprep.mubr.f32.mxu0 0.0
      %1817 = vmatmul.mubr.f32.gmra.mxu0 %v1598
      %v1818 = vpop.f32.mrf.mxu0
      %v1819 = vadd.f32 %v1440, %v1818
      %v1820 = vpop.f32.mrf.mxu0
      %1821 = vmatprep.mubr.f32.mxu0 0.0
      %1822 = vmatmul.mubr.f32.gmra.mxu0 %v1600
      %v1823 = vpop.f32.mrf.mxu0
      %v1824 = vadd.f32 %v1440, %v1823
      %v1825 = vpop.f32.mrf.mxu0
      %1826 = vdwg.mxu0
      %1827 = vrot.lane.b32.xlu0 %v282, 112
      %v1828 = vpop.permute.xlu0 %1827
      %1829 = vrot.lane.b32.xlu0 %v283, 112
      %v1830 = vpop.permute.xlu0 %1829
      %1831 = vrot.lane.b32.xlu0 %v284, 112
      %v1832 = vpop.permute.xlu0 %1831
      %1833 = vrot.lane.b32.xlu0 %v285, 112
      %v1834 = vpop.permute.xlu0 %1833
      %1835 = vrot.lane.b32.xlu0 %v286, 112
      %v1836 = vpop.permute.xlu0 %1835
      %1837 = vrot.lane.b32.xlu0 %v287, 112
      %v1838 = vpop.permute.xlu0 %1837
      %1839 = vrot.lane.b32.xlu0 %v288, 112
      %v1840 = vpop.permute.xlu0 %1839
      %1841 = vrot.lane.b32.xlu0 %v289, 112
      %v1842 = vpop.permute.xlu0 %1841
      %1843 = vrot.lane.b32.xlu0 %v290, 112
      %v1844 = vpop.permute.xlu0 %1843
      %1845 = vrot.lane.b32.xlu0 %v291, 112
      %v1846 = vpop.permute.xlu0 %1845
      %1847 = vrot.lane.b32.xlu0 %v292, 112
      %v1848 = vpop.permute.xlu0 %1847
      %1849 = vrot.lane.b32.xlu0 %v293, 112
      %v1850 = vpop.permute.xlu0 %1849
      %1851 = vrot.lane.b32.xlu0 %v294, 112
      %v1852 = vpop.permute.xlu0 %1851
      %1853 = vrot.lane.b32.xlu0 %v295, 112
      %v1854 = vpop.permute.xlu0 %1853
      %1855 = vrot.lane.b32.xlu0 %v296, 112
      %v1856 = vpop.permute.xlu0 %1855
      %1857 = vrot.lane.b32.xlu0 %v297, 112
      %v1858 = vpop.permute.xlu0 %1857
      %1859 = vrot.lane.b32.xlu0 %v298, 112
      %v1860 = vpop.permute.xlu0 %1859
      %1861 = vrot.lane.b32.xlu0 %v299, 112
      %v1862 = vpop.permute.xlu0 %1861
      %1863 = vrot.lane.b32.xlu0 %v300, 112
      %v1864 = vpop.permute.xlu0 %1863
      %1865 = vrot.lane.b32.xlu0 %v301, 112
      %v1866 = vpop.permute.xlu0 %1865
      %1867 = vrot.lane.b32.xlu0 %v302, 112
      %v1868 = vpop.permute.xlu0 %1867
      %1869 = vrot.lane.b32.xlu0 %v303, 112
      %v1870 = vpop.permute.xlu0 %1869
      %1871 = vrot.lane.b32.xlu0 %v304, 112
      %v1872 = vpop.permute.xlu0 %1871
      %1873 = vrot.lane.b32.xlu0 %v305, 112
      %v1874 = vpop.permute.xlu0 %1873
      %1875 = vrot.lane.b32.xlu0 %v306, 112
      %v1876 = vpop.permute.xlu0 %1875
      %1877 = vrot.lane.b32.xlu0 %v307, 112
      %v1878 = vpop.permute.xlu0 %1877
      %1879 = vrot.lane.b32.xlu0 %v308, 112
      %v1880 = vpop.permute.xlu0 %1879
      %1881 = vrot.lane.b32.xlu0 %v309, 112
      %v1882 = vpop.permute.xlu0 %1881
      %1883 = vrot.lane.b32.xlu0 %v310, 112
      %v1884 = vpop.permute.xlu0 %1883
      %1885 = vrot.lane.b32.xlu0 %v311, 112
      %v1886 = vpop.permute.xlu0 %1885
      %1887 = vrot.lane.b32.xlu0 %v312, 112
      %v1888 = vpop.permute.xlu0 %1887
      %1889 = vrot.lane.b32.xlu0 %v313, 112
      %v1890 = vpop.permute.xlu0 %1889
      %v1923 = vadd.f32 %v1081, %v1828
      %v1924 = vadd.f32 %v1086, %v1830
      %v1925 = vadd.f32 %v1091, %v1832
      %v1926 = vadd.f32 %v1096, %v1834
      %v1927 = vadd.f32 %v1101, %v1836
      %v1928 = vadd.f32 %v1106, %v1838
      %v1929 = vadd.f32 %v1111, %v1840
      %v1930 = vadd.f32 %v1116, %v1842
      %v1931 = vadd.f32 %v1121, %v1844
      %v1932 = vadd.f32 %v1126, %v1846
      %v1933 = vadd.f32 %v1131, %v1848
      %v1934 = vadd.f32 %v1136, %v1850
      %v1935 = vadd.f32 %v1141, %v1852
      %v1936 = vadd.f32 %v1146, %v1854
      %v1937 = vadd.f32 %v1151, %v1856
      %v1938 = vadd.f32 %v1156, %v1858
      %v1939 = vadd.f32 %v1161, %v1860
      %v1940 = vadd.f32 %v1166, %v1862
      %v1941 = vadd.f32 %v1171, %v1864
      %v1942 = vadd.f32 %v1176, %v1866
      %v1943 = vadd.f32 %v1181, %v1868
      %v1944 = vadd.f32 %v1186, %v1870
      %v1945 = vadd.f32 %v1191, %v1872
      %v1946 = vadd.f32 %v1196, %v1874
      %v1947 = vadd.f32 %v1201, %v1876
      %v1948 = vadd.f32 %v1206, %v1878
      %v1949 = vadd.f32 %v1211, %v1880
      %v1950 = vadd.f32 %v1216, %v1882
      %v1951 = vadd.f32 %v1221, %v1884
      %v1952 = vadd.f32 %v1226, %v1886
      %v1953 = vadd.f32 %v1231, %v1888
      %v1954 = vadd.f32 %v1236, %v1890
      %vm1955 = vcmask 31744
      %v1956 = vsel %vm1955, %v1923, -inf
      %1957 = vmax.xlane.f32.xlu0 %v1956
      %v1958 = vpop.xlane.xlu0 %1957
      %v1959 = vsel %vm1955, %v1924, -inf
      %1960 = vmax.xlane.f32.xlu0 %v1959
      %v1961 = vpop.xlane.xlu0 %1960
      %v1962 = vsel %vm1955, %v1925, -inf
      %1963 = vmax.xlane.f32.xlu0 %v1962
      %v1964 = vpop.xlane.xlu0 %1963
      %v1965 = vsel %vm1955, %v1926, -inf
      %1966 = vmax.xlane.f32.xlu0 %v1965
      %v1967 = vpop.xlane.xlu0 %1966
      %v1968 = vsel %vm1955, %v1927, -inf
      %1969 = vmax.xlane.f32.xlu0 %v1968
      %v1970 = vpop.xlane.xlu0 %1969
      %v1971 = vsel %vm1955, %v1928, -inf
      %1972 = vmax.xlane.f32.xlu0 %v1971
      %v1973 = vpop.xlane.xlu0 %1972
      %v1974 = vsel %vm1955, %v1929, -inf
      %1975 = vmax.xlane.f32.xlu0 %v1974
      %v1976 = vpop.xlane.xlu0 %1975
      %v1977 = vsel %vm1955, %v1930, -inf
      %1978 = vmax.xlane.f32.xlu0 %v1977
      %v1979 = vpop.xlane.xlu0 %1978
      %v1980 = vsel %vm1955, %v1931, -inf
      %1981 = vmax.xlane.f32.xlu0 %v1980
      %v1982 = vpop.xlane.xlu0 %1981
      %v1983 = vsel %vm1955, %v1932, -inf
      %1984 = vmax.xlane.f32.xlu0 %v1983
      %v1985 = vpop.xlane.xlu0 %1984
      %v1986 = vsel %vm1955, %v1933, -inf
      %1987 = vmax.xlane.f32.xlu0 %v1986
      %v1988 = vpop.xlane.xlu0 %1987
      %v1989 = vsel %vm1955, %v1934, -inf
      %1990 = vmax.xlane.f32.xlu0 %v1989
      %v1991 = vpop.xlane.xlu0 %1990
      %v1992 = vsel %vm1955, %v1935, -inf
      %1993 = vmax.xlane.f32.xlu0 %v1992
      %v1994 = vpop.xlane.xlu0 %1993
      %v1995 = vsel %vm1955, %v1936, -inf
      %1996 = vmax.xlane.f32.xlu0 %v1995
      %v1997 = vpop.xlane.xlu0 %1996
      %v1998 = vsel %vm1955, %v1937, -inf
      %1999 = vmax.xlane.f32.xlu0 %v1998
      %v2000 = vpop.xlane.xlu0 %1999
      %v2001 = vsel %vm1955, %v1938, -inf
      %2002 = vmax.xlane.f32.xlu0 %v2001
      %v2003 = vpop.xlane.xlu0 %2002
      %v2004 = vsel %vm1955, %v1939, -inf
      %2005 = vmax.xlane.f32.xlu0 %v2004
      %v2006 = vpop.xlane.xlu0 %2005
      %v2007 = vsel %vm1955, %v1940, -inf
      %2008 = vmax.xlane.f32.xlu0 %v2007
      %v2009 = vpop.xlane.xlu0 %2008
      %v2010 = vsel %vm1955, %v1941, -inf
      %2011 = vmax.xlane.f32.xlu0 %v2010
      %v2012 = vpop.xlane.xlu0 %2011
      %v2013 = vsel %vm1955, %v1942, -inf
      %2014 = vmax.xlane.f32.xlu0 %v2013
      %v2015 = vpop.xlane.xlu0 %2014
      %v2016 = vsel %vm1955, %v1943, -inf
      %2017 = vmax.xlane.f32.xlu0 %v2016
      %v2018 = vpop.xlane.xlu0 %2017
      %v2019 = vsel %vm1955, %v1944, -inf
      %2020 = vmax.xlane.f32.xlu0 %v2019
      %v2021 = vpop.xlane.xlu0 %2020
      %v2022 = vsel %vm1955, %v1945, -inf
      %2023 = vmax.xlane.f32.xlu0 %v2022
      %v2024 = vpop.xlane.xlu0 %2023
      %v2025 = vsel %vm1955, %v1946, -inf
      %2026 = vmax.xlane.f32.xlu0 %v2025
      %v2027 = vpop.xlane.xlu0 %2026
      %v2028 = vsel %vm1955, %v1947, -inf
      %2029 = vmax.xlane.f32.xlu0 %v2028
      %v2030 = vpop.xlane.xlu0 %2029
      %v2031 = vsel %vm1955, %v1948, -inf
      %2032 = vmax.xlane.f32.xlu0 %v2031
      %v2033 = vpop.xlane.xlu0 %2032
      %v2034 = vsel %vm1955, %v1949, -inf
      %2035 = vmax.xlane.f32.xlu0 %v2034
      %v2036 = vpop.xlane.xlu0 %2035
      %v2037 = vsel %vm1955, %v1950, -inf
      %2038 = vmax.xlane.f32.xlu0 %v2037
      %v2039 = vpop.xlane.xlu0 %2038
      %v2040 = vsel %vm1955, %v1951, -inf
      %2041 = vmax.xlane.f32.xlu0 %v2040
      %v2042 = vpop.xlane.xlu0 %2041
      %v2043 = vsel %vm1955, %v1952, -inf
      %2044 = vmax.xlane.f32.xlu0 %v2043
      %v2045 = vpop.xlane.xlu0 %2044
      %v2046 = vsel %vm1955, %v1953, -inf
      %2047 = vmax.xlane.f32.xlu0 %v2046
      %v2048 = vpop.xlane.xlu0 %2047
      %v2049 = vsel %vm1955, %v1954, -inf
      %2050 = vmax.xlane.f32.xlu0 %v2049
      %v2051 = vpop.xlane.xlu0 %2050
      %v2052 = vlaneseq
      %v2053 = vand.u32 %v2052, 127
      %vm2054 = vcmp.ge.f32.partialorder %v1923, %v1958
      %vm2055 = vcmp.ge.f32.partialorder %v1924, %v1961
      %vm2056 = vcmp.ge.f32.partialorder %v1925, %v1964
      %vm2057 = vcmp.ge.f32.partialorder %v1926, %v1967
      %vm2058 = vcmp.ge.f32.partialorder %v1927, %v1970
      %vm2059 = vcmp.ge.f32.partialorder %v1928, %v1973
      %vm2060 = vcmp.ge.f32.partialorder %v1929, %v1976
      %vm2061 = vcmp.ge.f32.partialorder %v1930, %v1979
      %vm2062 = vcmp.ge.f32.partialorder %v1931, %v1982
      %vm2063 = vcmp.ge.f32.partialorder %v1932, %v1985
      %vm2064 = vcmp.ge.f32.partialorder %v1933, %v1988
      %vm2065 = vcmp.ge.f32.partialorder %v1934, %v1991
      %vm2066 = vcmp.ge.f32.partialorder %v1935, %v1994
      %vm2067 = vcmp.ge.f32.partialorder %v1936, %v1997
      %vm2068 = vcmp.ge.f32.partialorder %v1937, %v2000
      %vm2069 = vcmp.ge.f32.partialorder %v1938, %v2003
      %vm2070 = vcmp.ge.f32.partialorder %v1939, %v2006
      %vm2071 = vcmp.ge.f32.partialorder %v1940, %v2009
      %vm2072 = vcmp.ge.f32.partialorder %v1941, %v2012
      %vm2073 = vcmp.ge.f32.partialorder %v1942, %v2015
      %vm2074 = vcmp.ge.f32.partialorder %v1943, %v2018
      %vm2075 = vcmp.ge.f32.partialorder %v1944, %v2021
      %vm2076 = vcmp.ge.f32.partialorder %v1945, %v2024
      %vm2077 = vcmp.ge.f32.partialorder %v1946, %v2027
      %vm2078 = vcmp.ge.f32.partialorder %v1947, %v2030
      %vm2079 = vcmp.ge.f32.partialorder %v1948, %v2033
      %vm2080 = vcmp.ge.f32.partialorder %v1949, %v2036
      %vm2081 = vcmp.ge.f32.partialorder %v1950, %v2039
      %vm2082 = vcmp.ge.f32.partialorder %v1951, %v2042
      %vm2083 = vcmp.ge.f32.partialorder %v1952, %v2045
      %vm2084 = vcmp.ge.f32.partialorder %v1953, %v2048
      %vm2085 = vcmp.ge.f32.partialorder %v1954, %v2051
      %v2086 = vsel %vm2054, %v2053, 4
      %v2087 = vsel %vm2055, %v2053, 4
      %v2088 = vsel %vm2056, %v2053, 4
      %v2089 = vsel %vm2057, %v2053, 4
      %v2090 = vsel %vm2058, %v2053, 4
      %v2091 = vsel %vm2059, %v2053, 4
      %v2092 = vsel %vm2060, %v2053, 4
      %v2093 = vsel %vm2061, %v2053, 4
      %v2094 = vsel %vm2062, %v2053, 4
      %v2095 = vsel %vm2063, %v2053, 4
      %v2096 = vsel %vm2064, %v2053, 4
      %v2097 = vsel %vm2065, %v2053, 4
      %v2098 = vsel %vm2066, %v2053, 4
      %v2099 = vsel %vm2067, %v2053, 4
      %v2100 = vsel %vm2068, %v2053, 4
      %v2101 = vsel %vm2069, %v2053, 4
      %v2102 = vsel %vm2070, %v2053, 4
      %v2103 = vsel %vm2071, %v2053, 4
      %v2104 = vsel %vm2072, %v2053, 4
      %v2105 = vsel %vm2073, %v2053, 4
      %v2106 = vsel %vm2074, %v2053, 4
      %v2107 = vsel %vm2075, %v2053, 4
      %v2108 = vsel %vm2076, %v2053, 4
      %v2109 = vsel %vm2077, %v2053, 4
      %v2110 = vsel %vm2078, %v2053, 4
      %v2111 = vsel %vm2079, %v2053, 4
      %v2112 = vsel %vm2080, %v2053, 4
      %v2113 = vsel %vm2081, %v2053, 4
      %v2114 = vsel %vm2082, %v2053, 4
      %v2115 = vsel %vm2083, %v2053, 4
      %v2116 = vsel %vm2084, %v2053, 4
      %v2117 = vsel %vm2085, %v2053, 4
      %v2118 = vsel %vm1955, %v2086, 2147483647
      %v2119 = vand.u32 %v2118, 65535
      %v2120 = vshra.s32 %v2118, 16
      %v2121 = vcvt.s32.f32 %v2119
      %v2122 = vcvt.s32.f32 %v2120
      %2123 = vmin.xlane.f32.xlu0 %v2122
      %v2124 = vpop.xlane.xlu0 %2123
      %vm2125 = vcmp.eq.f32.partialorder %v2122, %v2124
      %v2126 = vsel %vm2125, %v2121, inf
      %2127 = vmin.xlane.f32.xlu0 %v2126
      %v2128 = vpop.xlane.xlu0 %2127
      %v2129 = vcvt.f32.s32 %v2128
      %v2130 = vcvt.f32.s32 %v2124
      %v2131 = vshll.u32 %v2130, 16
      %v2132 = vadd.s32 %v2131, %v2129
      %v2133 = vsel %vm1955, %v2087, 2147483647
      %v2134 = vand.u32 %v2133, 65535
      %v2135 = vshra.s32 %v2133, 16
      %v2136 = vcvt.s32.f32 %v2134
      %v2137 = vcvt.s32.f32 %v2135
      %2138 = vmin.xlane.f32.xlu0 %v2137
      %v2139 = vpop.xlane.xlu0 %2138
      %vm2140 = vcmp.eq.f32.partialorder %v2137, %v2139
      %v2141 = vsel %vm2140, %v2136, inf
      %2142 = vmin.xlane.f32.xlu0 %v2141
      %v2143 = vpop.xlane.xlu0 %2142
      %v2144 = vcvt.f32.s32 %v2143
      %v2145 = vcvt.f32.s32 %v2139
      %v2146 = vshll.u32 %v2145, 16
      %v2147 = vadd.s32 %v2146, %v2144
      %v2148 = vsel %vm1955, %v2088, 2147483647
      %v2149 = vand.u32 %v2148, 65535
      %v2150 = vshra.s32 %v2148, 16
      %v2151 = vcvt.s32.f32 %v2149
      %v2152 = vcvt.s32.f32 %v2150
      %2153 = vmin.xlane.f32.xlu0 %v2152
      %v2154 = vpop.xlane.xlu0 %2153
      %vm2155 = vcmp.eq.f32.partialorder %v2152, %v2154
      %v2156 = vsel %vm2155, %v2151, inf
      %2157 = vmin.xlane.f32.xlu0 %v2156
      %v2158 = vpop.xlane.xlu0 %2157
      %v2159 = vcvt.f32.s32 %v2158
      %v2160 = vcvt.f32.s32 %v2154
      %v2161 = vshll.u32 %v2160, 16
      %v2162 = vadd.s32 %v2161, %v2159
      %v2163 = vsel %vm1955, %v2089, 2147483647
      %v2164 = vand.u32 %v2163, 65535
      %v2165 = vshra.s32 %v2163, 16
      %v2166 = vcvt.s32.f32 %v2164
      %v2167 = vcvt.s32.f32 %v2165
      %2168 = vmin.xlane.f32.xlu0 %v2167
      %v2169 = vpop.xlane.xlu0 %2168
      %vm2170 = vcmp.eq.f32.partialorder %v2167, %v2169
      %v2171 = vsel %vm2170, %v2166, inf
      %2172 = vmin.xlane.f32.xlu0 %v2171
      %v2173 = vpop.xlane.xlu0 %2172
      %v2174 = vcvt.f32.s32 %v2173
      %v2175 = vcvt.f32.s32 %v2169
      %v2176 = vshll.u32 %v2175, 16
      %v2177 = vadd.s32 %v2176, %v2174
      %v2178 = vsel %vm1955, %v2090, 2147483647
      %v2179 = vand.u32 %v2178, 65535
      %v2180 = vshra.s32 %v2178, 16
      %v2181 = vcvt.s32.f32 %v2179
      %v2182 = vcvt.s32.f32 %v2180
      %2183 = vmin.xlane.f32.xlu0 %v2182
      %v2184 = vpop.xlane.xlu0 %2183
      %vm2185 = vcmp.eq.f32.partialorder %v2182, %v2184
      %v2186 = vsel %vm2185, %v2181, inf
      %2187 = vmin.xlane.f32.xlu0 %v2186
      %v2188 = vpop.xlane.xlu0 %2187
      %v2189 = vcvt.f32.s32 %v2188
      %v2190 = vcvt.f32.s32 %v2184
      %v2191 = vshll.u32 %v2190, 16
      %v2192 = vadd.s32 %v2191, %v2189
      %v2193 = vsel %vm1955, %v2091, 2147483647
      %v2194 = vand.u32 %v2193, 65535
      %v2195 = vshra.s32 %v2193, 16
      %v2196 = vcvt.s32.f32 %v2194
      %v2197 = vcvt.s32.f32 %v2195
      %2198 = vmin.xlane.f32.xlu0 %v2197
      %v2199 = vpop.xlane.xlu0 %2198
      %vm2200 = vcmp.eq.f32.partialorder %v2197, %v2199
      %v2201 = vsel %vm2200, %v2196, inf
      %2202 = vmin.xlane.f32.xlu0 %v2201
      %v2203 = vpop.xlane.xlu0 %2202
      %v2204 = vcvt.f32.s32 %v2203
      %v2205 = vcvt.f32.s32 %v2199
      %v2206 = vshll.u32 %v2205, 16
      %v2207 = vadd.s32 %v2206, %v2204
      %v2208 = vsel %vm1955, %v2092, 2147483647
      %v2209 = vand.u32 %v2208, 65535
      %v2210 = vshra.s32 %v2208, 16
      %v2211 = vcvt.s32.f32 %v2209
      %v2212 = vcvt.s32.f32 %v2210
      %2213 = vmin.xlane.f32.xlu0 %v2212
      %v2214 = vpop.xlane.xlu0 %2213
      %vm2215 = vcmp.eq.f32.partialorder %v2212, %v2214
      %v2216 = vsel %vm2215, %v2211, inf
      %2217 = vmin.xlane.f32.xlu0 %v2216
      %v2218 = vpop.xlane.xlu0 %2217
      %v2219 = vcvt.f32.s32 %v2218
      %v2220 = vcvt.f32.s32 %v2214
      %v2221 = vshll.u32 %v2220, 16
      %v2222 = vadd.s32 %v2221, %v2219
      %v2223 = vsel %vm1955, %v2093, 2147483647
      %v2224 = vand.u32 %v2223, 65535
      %v2225 = vshra.s32 %v2223, 16
      %v2226 = vcvt.s32.f32 %v2224
      %v2227 = vcvt.s32.f32 %v2225
      %2228 = vmin.xlane.f32.xlu0 %v2227
      %v2229 = vpop.xlane.xlu0 %2228
      %vm2230 = vcmp.eq.f32.partialorder %v2227, %v2229
      %v2231 = vsel %vm2230, %v2226, inf
      %2232 = vmin.xlane.f32.xlu0 %v2231
      %v2233 = vpop.xlane.xlu0 %2232
      %v2234 = vcvt.f32.s32 %v2233
      %v2235 = vcvt.f32.s32 %v2229
      %v2236 = vshll.u32 %v2235, 16
      %v2237 = vadd.s32 %v2236, %v2234
      %v2238 = vsel %vm1955, %v2094, 2147483647
      %v2239 = vand.u32 %v2238, 65535
      %v2240 = vshra.s32 %v2238, 16
      %v2241 = vcvt.s32.f32 %v2239
      %v2242 = vcvt.s32.f32 %v2240
      %2243 = vmin.xlane.f32.xlu0 %v2242
      %v2244 = vpop.xlane.xlu0 %2243
      %vm2245 = vcmp.eq.f32.partialorder %v2242, %v2244
      %v2246 = vsel %vm2245, %v2241, inf
      %2247 = vmin.xlane.f32.xlu0 %v2246
      %v2248 = vpop.xlane.xlu0 %2247
      %v2249 = vcvt.f32.s32 %v2248
      %v2250 = vcvt.f32.s32 %v2244
      %v2251 = vshll.u32 %v2250, 16
      %v2252 = vadd.s32 %v2251, %v2249
      %v2253 = vsel %vm1955, %v2095, 2147483647
      %v2254 = vand.u32 %v2253, 65535
      %v2255 = vshra.s32 %v2253, 16
      %v2256 = vcvt.s32.f32 %v2254
      %v2257 = vcvt.s32.f32 %v2255
      %2258 = vmin.xlane.f32.xlu0 %v2257
      %v2259 = vpop.xlane.xlu0 %2258
      %vm2260 = vcmp.eq.f32.partialorder %v2257, %v2259
      %v2261 = vsel %vm2260, %v2256, inf
      %2262 = vmin.xlane.f32.xlu0 %v2261
      %v2263 = vpop.xlane.xlu0 %2262
      %v2264 = vcvt.f32.s32 %v2263
      %v2265 = vcvt.f32.s32 %v2259
      %v2266 = vshll.u32 %v2265, 16
      %v2267 = vadd.s32 %v2266, %v2264
      %v2268 = vsel %vm1955, %v2096, 2147483647
      %v2269 = vand.u32 %v2268, 65535
      %v2270 = vshra.s32 %v2268, 16
      %v2271 = vcvt.s32.f32 %v2269
      %v2272 = vcvt.s32.f32 %v2270
      %2273 = vmin.xlane.f32.xlu0 %v2272
      %v2274 = vpop.xlane.xlu0 %2273
      %vm2275 = vcmp.eq.f32.partialorder %v2272, %v2274
      %v2276 = vsel %vm2275, %v2271, inf
      %2277 = vmin.xlane.f32.xlu0 %v2276
      %v2278 = vpop.xlane.xlu0 %2277
      %v2279 = vcvt.f32.s32 %v2278
      %v2280 = vcvt.f32.s32 %v2274
      %v2281 = vshll.u32 %v2280, 16
      %v2282 = vadd.s32 %v2281, %v2279
      %v2283 = vsel %vm1955, %v2097, 2147483647
      %v2284 = vand.u32 %v2283, 65535
      %v2285 = vshra.s32 %v2283, 16
      %v2286 = vcvt.s32.f32 %v2284
      %v2287 = vcvt.s32.f32 %v2285
      %2288 = vmin.xlane.f32.xlu0 %v2287
      %v2289 = vpop.xlane.xlu0 %2288
      %vm2290 = vcmp.eq.f32.partialorder %v2287, %v2289
      %v2291 = vsel %vm2290, %v2286, inf
      %2292 = vmin.xlane.f32.xlu0 %v2291
      %v2293 = vpop.xlane.xlu0 %2292
      %v2294 = vcvt.f32.s32 %v2293
      %v2295 = vcvt.f32.s32 %v2289
      %v2296 = vshll.u32 %v2295, 16
      %v2297 = vadd.s32 %v2296, %v2294
      %v2298 = vsel %vm1955, %v2098, 2147483647
      %v2299 = vand.u32 %v2298, 65535
      %v2300 = vshra.s32 %v2298, 16
      %v2301 = vcvt.s32.f32 %v2299
      %v2302 = vcvt.s32.f32 %v2300
      %2303 = vmin.xlane.f32.xlu0 %v2302
      %v2304 = vpop.xlane.xlu0 %2303
      %vm2305 = vcmp.eq.f32.partialorder %v2302, %v2304
      %v2306 = vsel %vm2305, %v2301, inf
      %2307 = vmin.xlane.f32.xlu0 %v2306
      %v2308 = vpop.xlane.xlu0 %2307
      %v2309 = vcvt.f32.s32 %v2308
      %v2310 = vcvt.f32.s32 %v2304
      %v2311 = vshll.u32 %v2310, 16
      %v2312 = vadd.s32 %v2311, %v2309
      %v2313 = vsel %vm1955, %v2099, 2147483647
      %v2314 = vand.u32 %v2313, 65535
      %v2315 = vshra.s32 %v2313, 16
      %v2316 = vcvt.s32.f32 %v2314
      %v2317 = vcvt.s32.f32 %v2315
      %2318 = vmin.xlane.f32.xlu0 %v2317
      %v2319 = vpop.xlane.xlu0 %2318
      %vm2320 = vcmp.eq.f32.partialorder %v2317, %v2319
      %v2321 = vsel %vm2320, %v2316, inf
      %2322 = vmin.xlane.f32.xlu0 %v2321
      %v2323 = vpop.xlane.xlu0 %2322
      %v2324 = vcvt.f32.s32 %v2323
      %v2325 = vcvt.f32.s32 %v2319
      %v2326 = vshll.u32 %v2325, 16
      %v2327 = vadd.s32 %v2326, %v2324
      %v2328 = vsel %vm1955, %v2100, 2147483647
      %v2329 = vand.u32 %v2328, 65535
      %v2330 = vshra.s32 %v2328, 16
      %v2331 = vcvt.s32.f32 %v2329
      %v2332 = vcvt.s32.f32 %v2330
      %2333 = vmin.xlane.f32.xlu0 %v2332
      %v2334 = vpop.xlane.xlu0 %2333
      %vm2335 = vcmp.eq.f32.partialorder %v2332, %v2334
      %v2336 = vsel %vm2335, %v2331, inf
      %2337 = vmin.xlane.f32.xlu0 %v2336
      %v2338 = vpop.xlane.xlu0 %2337
      %v2339 = vcvt.f32.s32 %v2338
      %v2340 = vcvt.f32.s32 %v2334
      %v2341 = vshll.u32 %v2340, 16
      %v2342 = vadd.s32 %v2341, %v2339
      %v2343 = vsel %vm1955, %v2101, 2147483647
      %v2344 = vand.u32 %v2343, 65535
      %v2345 = vshra.s32 %v2343, 16
      %v2346 = vcvt.s32.f32 %v2344
      %v2347 = vcvt.s32.f32 %v2345
      %2348 = vmin.xlane.f32.xlu0 %v2347
      %v2349 = vpop.xlane.xlu0 %2348
      %vm2350 = vcmp.eq.f32.partialorder %v2347, %v2349
      %v2351 = vsel %vm2350, %v2346, inf
      %2352 = vmin.xlane.f32.xlu0 %v2351
      %v2353 = vpop.xlane.xlu0 %2352
      %v2354 = vcvt.f32.s32 %v2353
      %v2355 = vcvt.f32.s32 %v2349
      %v2356 = vshll.u32 %v2355, 16
      %v2357 = vadd.s32 %v2356, %v2354
      %v2358 = vsel %vm1955, %v2102, 2147483647
      %v2359 = vand.u32 %v2358, 65535
      %v2360 = vshra.s32 %v2358, 16
      %v2361 = vcvt.s32.f32 %v2359
      %v2362 = vcvt.s32.f32 %v2360
      %2363 = vmin.xlane.f32.xlu0 %v2362
      %v2364 = vpop.xlane.xlu0 %2363
      %vm2365 = vcmp.eq.f32.partialorder %v2362, %v2364
      %v2366 = vsel %vm2365, %v2361, inf
      %2367 = vmin.xlane.f32.xlu0 %v2366
      %v2368 = vpop.xlane.xlu0 %2367
      %v2369 = vcvt.f32.s32 %v2368
      %v2370 = vcvt.f32.s32 %v2364
      %v2371 = vshll.u32 %v2370, 16
      %v2372 = vadd.s32 %v2371, %v2369
      %v2373 = vsel %vm1955, %v2103, 2147483647
      %v2374 = vand.u32 %v2373, 65535
      %v2375 = vshra.s32 %v2373, 16
      %v2376 = vcvt.s32.f32 %v2374
      %v2377 = vcvt.s32.f32 %v2375
      %2378 = vmin.xlane.f32.xlu0 %v2377
      %v2379 = vpop.xlane.xlu0 %2378
      %vm2380 = vcmp.eq.f32.partialorder %v2377, %v2379
      %v2381 = vsel %vm2380, %v2376, inf
      %2382 = vmin.xlane.f32.xlu0 %v2381
      %v2383 = vpop.xlane.xlu0 %2382
      %v2384 = vcvt.f32.s32 %v2383
      %v2385 = vcvt.f32.s32 %v2379
      %v2386 = vshll.u32 %v2385, 16
      %v2387 = vadd.s32 %v2386, %v2384
      %v2388 = vsel %vm1955, %v2104, 2147483647
      %v2389 = vand.u32 %v2388, 65535
      %v2390 = vshra.s32 %v2388, 16
      %v2391 = vcvt.s32.f32 %v2389
      %v2392 = vcvt.s32.f32 %v2390
      %2393 = vmin.xlane.f32.xlu0 %v2392
      %v2394 = vpop.xlane.xlu0 %2393
      %vm2395 = vcmp.eq.f32.partialorder %v2392, %v2394
      %v2396 = vsel %vm2395, %v2391, inf
      %2397 = vmin.xlane.f32.xlu0 %v2396
      %v2398 = vpop.xlane.xlu0 %2397
      %v2399 = vcvt.f32.s32 %v2398
      %v2400 = vcvt.f32.s32 %v2394
      %v2401 = vshll.u32 %v2400, 16
      %v2402 = vadd.s32 %v2401, %v2399
      %v2403 = vsel %vm1955, %v2105, 2147483647
      %v2404 = vand.u32 %v2403, 65535
      %v2405 = vshra.s32 %v2403, 16
      %v2406 = vcvt.s32.f32 %v2404
      %v2407 = vcvt.s32.f32 %v2405
      %2408 = vmin.xlane.f32.xlu0 %v2407
      %v2409 = vpop.xlane.xlu0 %2408
      %vm2410 = vcmp.eq.f32.partialorder %v2407, %v2409
      %v2411 = vsel %vm2410, %v2406, inf
      %2412 = vmin.xlane.f32.xlu0 %v2411
      %v2413 = vpop.xlane.xlu0 %2412
      %v2414 = vcvt.f32.s32 %v2413
      %v2415 = vcvt.f32.s32 %v2409
      %v2416 = vshll.u32 %v2415, 16
      %v2417 = vadd.s32 %v2416, %v2414
      %v2418 = vsel %vm1955, %v2106, 2147483647
      %v2419 = vand.u32 %v2418, 65535
      %v2420 = vshra.s32 %v2418, 16
      %v2421 = vcvt.s32.f32 %v2419
      %v2422 = vcvt.s32.f32 %v2420
      %2423 = vmin.xlane.f32.xlu0 %v2422
      %v2424 = vpop.xlane.xlu0 %2423
      %vm2425 = vcmp.eq.f32.partialorder %v2422, %v2424
      %v2426 = vsel %vm2425, %v2421, inf
      %2427 = vmin.xlane.f32.xlu0 %v2426
      %v2428 = vpop.xlane.xlu0 %2427
      %v2429 = vcvt.f32.s32 %v2428
      %v2430 = vcvt.f32.s32 %v2424
      %v2431 = vshll.u32 %v2430, 16
      %v2432 = vadd.s32 %v2431, %v2429
      %v2433 = vsel %vm1955, %v2107, 2147483647
      %v2434 = vand.u32 %v2433, 65535
      %v2435 = vshra.s32 %v2433, 16
      %v2436 = vcvt.s32.f32 %v2434
      %v2437 = vcvt.s32.f32 %v2435
      %2438 = vmin.xlane.f32.xlu0 %v2437
      %v2439 = vpop.xlane.xlu0 %2438
      %vm2440 = vcmp.eq.f32.partialorder %v2437, %v2439
      %v2441 = vsel %vm2440, %v2436, inf
      %2442 = vmin.xlane.f32.xlu0 %v2441
      %v2443 = vpop.xlane.xlu0 %2442
      %v2444 = vcvt.f32.s32 %v2443
      %v2445 = vcvt.f32.s32 %v2439
      %v2446 = vshll.u32 %v2445, 16
      %v2447 = vadd.s32 %v2446, %v2444
      %v2448 = vsel %vm1955, %v2108, 2147483647
      %v2449 = vand.u32 %v2448, 65535
      %v2450 = vshra.s32 %v2448, 16
      %v2451 = vcvt.s32.f32 %v2449
      %v2452 = vcvt.s32.f32 %v2450
      %2453 = vmin.xlane.f32.xlu0 %v2452
      %v2454 = vpop.xlane.xlu0 %2453
      %vm2455 = vcmp.eq.f32.partialorder %v2452, %v2454
      %v2456 = vsel %vm2455, %v2451, inf
      %2457 = vmin.xlane.f32.xlu0 %v2456
      %v2458 = vpop.xlane.xlu0 %2457
      %v2459 = vcvt.f32.s32 %v2458
      %v2460 = vcvt.f32.s32 %v2454
      %v2461 = vshll.u32 %v2460, 16
      %v2462 = vadd.s32 %v2461, %v2459
      %v2463 = vsel %vm1955, %v2109, 2147483647
      %v2464 = vand.u32 %v2463, 65535
      %v2465 = vshra.s32 %v2463, 16
      %v2466 = vcvt.s32.f32 %v2464
      %v2467 = vcvt.s32.f32 %v2465
      %2468 = vmin.xlane.f32.xlu0 %v2467
      %v2469 = vpop.xlane.xlu0 %2468
      %vm2470 = vcmp.eq.f32.partialorder %v2467, %v2469
      %v2471 = vsel %vm2470, %v2466, inf
      %2472 = vmin.xlane.f32.xlu0 %v2471
      %v2473 = vpop.xlane.xlu0 %2472
      %v2474 = vcvt.f32.s32 %v2473
      %v2475 = vcvt.f32.s32 %v2469
      %v2476 = vshll.u32 %v2475, 16
      %v2477 = vadd.s32 %v2476, %v2474
      %v2478 = vsel %vm1955, %v2110, 2147483647
      %v2479 = vand.u32 %v2478, 65535
      %v2480 = vshra.s32 %v2478, 16
      %v2481 = vcvt.s32.f32 %v2479
      %v2482 = vcvt.s32.f32 %v2480
      %2483 = vmin.xlane.f32.xlu0 %v2482
      %v2484 = vpop.xlane.xlu0 %2483
      %vm2485 = vcmp.eq.f32.partialorder %v2482, %v2484
      %v2486 = vsel %vm2485, %v2481, inf
      %2487 = vmin.xlane.f32.xlu0 %v2486
      %v2488 = vpop.xlane.xlu0 %2487
      %v2489 = vcvt.f32.s32 %v2488
      %v2490 = vcvt.f32.s32 %v2484
      %v2491 = vshll.u32 %v2490, 16
      %v2492 = vadd.s32 %v2491, %v2489
      %v2493 = vsel %vm1955, %v2111, 2147483647
      %v2494 = vand.u32 %v2493, 65535
      %v2495 = vshra.s32 %v2493, 16
      %v2496 = vcvt.s32.f32 %v2494
      %v2497 = vcvt.s32.f32 %v2495
      %2498 = vmin.xlane.f32.xlu0 %v2497
      %v2499 = vpop.xlane.xlu0 %2498
      %vm2500 = vcmp.eq.f32.partialorder %v2497, %v2499
      %v2501 = vsel %vm2500, %v2496, inf
      %2502 = vmin.xlane.f32.xlu0 %v2501
      %v2503 = vpop.xlane.xlu0 %2502
      %v2504 = vcvt.f32.s32 %v2503
      %v2505 = vcvt.f32.s32 %v2499
      %v2506 = vshll.u32 %v2505, 16
      %v2507 = vadd.s32 %v2506, %v2504
      %v2508 = vsel %vm1955, %v2112, 2147483647
      %v2509 = vand.u32 %v2508, 65535
      %v2510 = vshra.s32 %v2508, 16
      %v2511 = vcvt.s32.f32 %v2509
      %v2512 = vcvt.s32.f32 %v2510
      %2513 = vmin.xlane.f32.xlu0 %v2512
      %v2514 = vpop.xlane.xlu0 %2513
      %vm2515 = vcmp.eq.f32.partialorder %v2512, %v2514
      %v2516 = vsel %vm2515, %v2511, inf
      %2517 = vmin.xlane.f32.xlu0 %v2516
      %v2518 = vpop.xlane.xlu0 %2517
      %v2519 = vcvt.f32.s32 %v2518
      %v2520 = vcvt.f32.s32 %v2514
      %v2521 = vshll.u32 %v2520, 16
      %v2522 = vadd.s32 %v2521, %v2519
      %v2523 = vsel %vm1955, %v2113, 2147483647
      %v2524 = vand.u32 %v2523, 65535
      %v2525 = vshra.s32 %v2523, 16
      %v2526 = vcvt.s32.f32 %v2524
      %v2527 = vcvt.s32.f32 %v2525
      %2528 = vmin.xlane.f32.xlu0 %v2527
      %v2529 = vpop.xlane.xlu0 %2528
      %vm2530 = vcmp.eq.f32.partialorder %v2527, %v2529
      %v2531 = vsel %vm2530, %v2526, inf
      %2532 = vmin.xlane.f32.xlu0 %v2531
      %v2533 = vpop.xlane.xlu0 %2532
      %v2534 = vcvt.f32.s32 %v2533
      %v2535 = vcvt.f32.s32 %v2529
      %v2536 = vshll.u32 %v2535, 16
      %v2537 = vadd.s32 %v2536, %v2534
      %v2538 = vsel %vm1955, %v2114, 2147483647
      %v2539 = vand.u32 %v2538, 65535
      %v2540 = vshra.s32 %v2538, 16
      %v2541 = vcvt.s32.f32 %v2539
      %v2542 = vcvt.s32.f32 %v2540
      %2543 = vmin.xlane.f32.xlu0 %v2542
      %v2544 = vpop.xlane.xlu0 %2543
      %vm2545 = vcmp.eq.f32.partialorder %v2542, %v2544
      %v2546 = vsel %vm2545, %v2541, inf
      %2547 = vmin.xlane.f32.xlu0 %v2546
      %v2548 = vpop.xlane.xlu0 %2547
      %v2549 = vcvt.f32.s32 %v2548
      %v2550 = vcvt.f32.s32 %v2544
      %v2551 = vshll.u32 %v2550, 16
      %v2552 = vadd.s32 %v2551, %v2549
      %v2553 = vsel %vm1955, %v2115, 2147483647
      %v2554 = vand.u32 %v2553, 65535
      %v2555 = vshra.s32 %v2553, 16
      %v2556 = vcvt.s32.f32 %v2554
      %v2557 = vcvt.s32.f32 %v2555
      %2558 = vmin.xlane.f32.xlu0 %v2557
      %v2559 = vpop.xlane.xlu0 %2558
      %vm2560 = vcmp.eq.f32.partialorder %v2557, %v2559
      %v2561 = vsel %vm2560, %v2556, inf
      %2562 = vmin.xlane.f32.xlu0 %v2561
      %v2563 = vpop.xlane.xlu0 %2562
      %v2564 = vcvt.f32.s32 %v2563
      %v2565 = vcvt.f32.s32 %v2559
      %v2566 = vshll.u32 %v2565, 16
      %v2567 = vadd.s32 %v2566, %v2564
      %v2568 = vsel %vm1955, %v2116, 2147483647
      %v2569 = vand.u32 %v2568, 65535
      %v2570 = vshra.s32 %v2568, 16
      %v2571 = vcvt.s32.f32 %v2569
      %v2572 = vcvt.s32.f32 %v2570
      %2573 = vmin.xlane.f32.xlu0 %v2572
      %v2574 = vpop.xlane.xlu0 %2573
      %vm2575 = vcmp.eq.f32.partialorder %v2572, %v2574
      %v2576 = vsel %vm2575, %v2571, inf
      %2577 = vmin.xlane.f32.xlu0 %v2576
      %v2578 = vpop.xlane.xlu0 %2577
      %v2579 = vcvt.f32.s32 %v2578
      %v2580 = vcvt.f32.s32 %v2574
      %v2581 = vshll.u32 %v2580, 16
      %v2582 = vadd.s32 %v2581, %v2579
      %v2583 = vsel %vm1955, %v2117, 2147483647
      %v2584 = vand.u32 %v2583, 65535
      %v2585 = vshra.s32 %v2583, 16
      %v2586 = vcvt.s32.f32 %v2584
      %v2587 = vcvt.s32.f32 %v2585
      %2588 = vmin.xlane.f32.xlu0 %v2587
      %v2589 = vpop.xlane.xlu0 %2588
      %vm2590 = vcmp.eq.f32.partialorder %v2587, %v2589
      %v2591 = vsel %vm2590, %v2586, inf
      %2592 = vmin.xlane.f32.xlu0 %v2591
      %v2593 = vpop.xlane.xlu0 %2592
      %v2594 = vcvt.f32.s32 %v2593
      %v2595 = vcvt.f32.s32 %v2589
      %v2596 = vshll.u32 %v2595, 16
      %v2597 = vadd.s32 %v2596, %v2594
      %v2598 = vmul.u32 %v2132, 8
      %v2599 = vmul.u32 %v2147, 8
      %v2600 = vmul.u32 %v2162, 8
      %v2601 = vmul.u32 %v2177, 8
      %v2602 = vmul.u32 %v2192, 8
      %v2603 = vmul.u32 %v2207, 8
      %v2604 = vmul.u32 %v2222, 8
      %v2605 = vmul.u32 %v2237, 8
      %v2606 = vmul.u32 %v2252, 8
      %v2607 = vmul.u32 %v2267, 8
      %v2608 = vmul.u32 %v2282, 8
      %v2609 = vmul.u32 %v2297, 8
      %v2610 = vmul.u32 %v2312, 8
      %v2611 = vmul.u32 %v2327, 8
      %v2612 = vmul.u32 %v2342, 8
      %v2613 = vmul.u32 %v2357, 8
      %v2614 = vmul.u32 %v2372, 8
      %v2615 = vmul.u32 %v2387, 8
      %v2616 = vmul.u32 %v2402, 8
      %v2617 = vmul.u32 %v2417, 8
      %v2618 = vmul.u32 %v2432, 8
      %v2619 = vmul.u32 %v2447, 8
      %v2620 = vmul.u32 %v2462, 8
      %v2621 = vmul.u32 %v2477, 8
      %v2622 = vmul.u32 %v2492, 8
      %v2623 = vmul.u32 %v2507, 8
      %v2624 = vmul.u32 %v2522, 8
      %v2625 = vmul.u32 %v2537, 8
      %v2626 = vmul.u32 %v2552, 8
      %v2627 = vmul.u32 %v2567, 8
      %v2628 = vmul.u32 %v2582, 8
      %v2629 = vmul.u32 %v2597, 8
      %vm2630 = vcmp.ge.s32.totalorder %v2053, %v2598
      %vm2631 = vcmp.ge.s32.totalorder %v2053, %v2599
      %vm2632 = vcmp.ge.s32.totalorder %v2053, %v2600
      %vm2633 = vcmp.ge.s32.totalorder %v2053, %v2601
      %vm2634 = vcmp.ge.s32.totalorder %v2053, %v2602
      %vm2635 = vcmp.ge.s32.totalorder %v2053, %v2603
      %vm2636 = vcmp.ge.s32.totalorder %v2053, %v2604
      %vm2637 = vcmp.ge.s32.totalorder %v2053, %v2605
      %vm2638 = vcmp.ge.s32.totalorder %v2053, %v2606
      %vm2639 = vcmp.ge.s32.totalorder %v2053, %v2607
      %vm2640 = vcmp.ge.s32.totalorder %v2053, %v2608
      %vm2641 = vcmp.ge.s32.totalorder %v2053, %v2609
      %vm2642 = vcmp.ge.s32.totalorder %v2053, %v2610
      %vm2643 = vcmp.ge.s32.totalorder %v2053, %v2611
      %vm2644 = vcmp.ge.s32.totalorder %v2053, %v2612
      %vm2645 = vcmp.ge.s32.totalorder %v2053, %v2613
      %vm2646 = vcmp.ge.s32.totalorder %v2053, %v2614
      %vm2647 = vcmp.ge.s32.totalorder %v2053, %v2615
      %vm2648 = vcmp.ge.s32.totalorder %v2053, %v2616
      %vm2649 = vcmp.ge.s32.totalorder %v2053, %v2617
      %vm2650 = vcmp.ge.s32.totalorder %v2053, %v2618
      %vm2651 = vcmp.ge.s32.totalorder %v2053, %v2619
      %vm2652 = vcmp.ge.s32.totalorder %v2053, %v2620
      %vm2653 = vcmp.ge.s32.totalorder %v2053, %v2621
      %vm2654 = vcmp.ge.s32.totalorder %v2053, %v2622
      %vm2655 = vcmp.ge.s32.totalorder %v2053, %v2623
      %vm2656 = vcmp.ge.s32.totalorder %v2053, %v2624
      %vm2657 = vcmp.ge.s32.totalorder %v2053, %v2625
      %vm2658 = vcmp.ge.s32.totalorder %v2053, %v2626
      %vm2659 = vcmp.ge.s32.totalorder %v2053, %v2627
      %vm2660 = vcmp.ge.s32.totalorder %v2053, %v2628
      %vm2661 = vcmp.ge.s32.totalorder %v2053, %v2629
      %v2662 = vadd.s32 %v2598, 8
      %v2663 = vadd.s32 %v2599, 8
      %v2664 = vadd.s32 %v2600, 8
      %v2665 = vadd.s32 %v2601, 8
      %v2666 = vadd.s32 %v2602, 8
      %v2667 = vadd.s32 %v2603, 8
      %v2668 = vadd.s32 %v2604, 8
      %v2669 = vadd.s32 %v2605, 8
      %v2670 = vadd.s32 %v2606, 8
      %v2671 = vadd.s32 %v2607, 8
      %v2672 = vadd.s32 %v2608, 8
      %v2673 = vadd.s32 %v2609, 8
      %v2674 = vadd.s32 %v2610, 8
      %v2675 = vadd.s32 %v2611, 8
      %v2676 = vadd.s32 %v2612, 8
      %v2677 = vadd.s32 %v2613, 8
      %v2678 = vadd.s32 %v2614, 8
      %v2679 = vadd.s32 %v2615, 8
      %v2680 = vadd.s32 %v2616, 8
      %v2681 = vadd.s32 %v2617, 8
      %v2682 = vadd.s32 %v2618, 8
      %v2683 = vadd.s32 %v2619, 8
      %v2684 = vadd.s32 %v2620, 8
      %v2685 = vadd.s32 %v2621, 8
      %v2686 = vadd.s32 %v2622, 8
      %v2687 = vadd.s32 %v2623, 8
      %v2688 = vadd.s32 %v2624, 8
      %v2689 = vadd.s32 %v2625, 8
      %v2690 = vadd.s32 %v2626, 8
      %v2691 = vadd.s32 %v2627, 8
      %v2692 = vadd.s32 %v2628, 8
      %v2693 = vadd.s32 %v2629, 8
      %vm2694 = vcmp.lt.s32.totalorder %v2053, %v2662
      %vm2695 = vcmp.lt.s32.totalorder %v2053, %v2663
      %vm2696 = vcmp.lt.s32.totalorder %v2053, %v2664
      %vm2697 = vcmp.lt.s32.totalorder %v2053, %v2665
      %vm2698 = vcmp.lt.s32.totalorder %v2053, %v2666
      %vm2699 = vcmp.lt.s32.totalorder %v2053, %v2667
      %vm2700 = vcmp.lt.s32.totalorder %v2053, %v2668
      %vm2701 = vcmp.lt.s32.totalorder %v2053, %v2669
      %vm2702 = vcmp.lt.s32.totalorder %v2053, %v2670
      %vm2703 = vcmp.lt.s32.totalorder %v2053, %v2671
      %vm2704 = vcmp.lt.s32.totalorder %v2053, %v2672
      %vm2705 = vcmp.lt.s32.totalorder %v2053, %v2673
      %vm2706 = vcmp.lt.s32.totalorder %v2053, %v2674
      %vm2707 = vcmp.lt.s32.totalorder %v2053, %v2675
      %vm2708 = vcmp.lt.s32.totalorder %v2053, %v2676
      %vm2709 = vcmp.lt.s32.totalorder %v2053, %v2677
      %vm2710 = vcmp.lt.s32.totalorder %v2053, %v2678
      %vm2711 = vcmp.lt.s32.totalorder %v2053, %v2679
      %vm2712 = vcmp.lt.s32.totalorder %v2053, %v2680
      %vm2713 = vcmp.lt.s32.totalorder %v2053, %v2681
      %vm2714 = vcmp.lt.s32.totalorder %v2053, %v2682
      %vm2715 = vcmp.lt.s32.totalorder %v2053, %v2683
      %vm2716 = vcmp.lt.s32.totalorder %v2053, %v2684
      %vm2717 = vcmp.lt.s32.totalorder %v2053, %v2685
      %vm2718 = vcmp.lt.s32.totalorder %v2053, %v2686
      %vm2719 = vcmp.lt.s32.totalorder %v2053, %v2687
      %vm2720 = vcmp.lt.s32.totalorder %v2053, %v2688
      %vm2721 = vcmp.lt.s32.totalorder %v2053, %v2689
      %vm2722 = vcmp.lt.s32.totalorder %v2053, %v2690
      %vm2723 = vcmp.lt.s32.totalorder %v2053, %v2691
      %vm2724 = vcmp.lt.s32.totalorder %v2053, %v2692
      %vm2725 = vcmp.lt.s32.totalorder %v2053, %v2693
      %vm2726 = vmand %vm2630, %vm2694
      %vm2727 = vmand %vm2631, %vm2695
      %vm2728 = vmand %vm2632, %vm2696
      %vm2729 = vmand %vm2633, %vm2697
      %vm2730 = vmand %vm2634, %vm2698
      %vm2731 = vmand %vm2635, %vm2699
      %vm2732 = vmand %vm2636, %vm2700
      %vm2733 = vmand %vm2637, %vm2701
      %vm2734 = vmand %vm2638, %vm2702
      %vm2735 = vmand %vm2639, %vm2703
      %vm2736 = vmand %vm2640, %vm2704
      %vm2737 = vmand %vm2641, %vm2705
      %vm2738 = vmand %vm2642, %vm2706
      %vm2739 = vmand %vm2643, %vm2707
      %vm2740 = vmand %vm2644, %vm2708
      %vm2741 = vmand %vm2645, %vm2709
      %vm2742 = vmand %vm2646, %vm2710
      %vm2743 = vmand %vm2647, %vm2711
      %vm2744 = vmand %vm2648, %vm2712
      %vm2745 = vmand %vm2649, %vm2713
      %vm2746 = vmand %vm2650, %vm2714
      %vm2747 = vmand %vm2651, %vm2715
      %vm2748 = vmand %vm2652, %vm2716
      %vm2749 = vmand %vm2653, %vm2717
      %vm2750 = vmand %vm2654, %vm2718
      %vm2751 = vmand %vm2655, %vm2719
      %vm2752 = vmand %vm2656, %vm2720
      %vm2753 = vmand %vm2657, %vm2721
      %vm2754 = vmand %vm2658, %vm2722
      %vm2755 = vmand %vm2659, %vm2723
      %vm2756 = vmand %vm2660, %vm2724
      %vm2757 = vmand %vm2661, %vm2725
      %v2758 = vsel %vm2726, %v1669, 0.0
      %v2759 = vsel %vm2727, %v1674, 0.0
      %v2760 = vsel %vm2728, %v1679, 0.0
      %v2761 = vsel %vm2729, %v1684, 0.0
      %v2762 = vsel %vm2730, %v1689, 0.0
      %v2763 = vsel %vm2731, %v1694, 0.0
      %v2764 = vsel %vm2732, %v1699, 0.0
      %v2765 = vsel %vm2733, %v1704, 0.0
      %v2766 = vsel %vm2734, %v1709, 0.0
      %v2767 = vsel %vm2735, %v1714, 0.0
      %v2768 = vsel %vm2736, %v1719, 0.0
      %v2769 = vsel %vm2737, %v1724, 0.0
      %v2770 = vsel %vm2738, %v1729, 0.0
      %v2771 = vsel %vm2739, %v1734, 0.0
      %v2772 = vsel %vm2740, %v1739, 0.0
      %v2773 = vsel %vm2741, %v1744, 0.0
      %v2774 = vsel %vm2742, %v1749, 0.0
      %v2775 = vsel %vm2743, %v1754, 0.0
      %v2776 = vsel %vm2744, %v1759, 0.0
      %v2777 = vsel %vm2745, %v1764, 0.0
      %v2778 = vsel %vm2746, %v1769, 0.0
      %v2779 = vsel %vm2747, %v1774, 0.0
      %v2780 = vsel %vm2748, %v1779, 0.0
      %v2781 = vsel %vm2749, %v1784, 0.0
      %v2782 = vsel %vm2750, %v1789, 0.0
      %v2783 = vsel %vm2751, %v1794, 0.0
      %v2784 = vsel %vm2752, %v1799, 0.0
      %v2785 = vsel %vm2753, %v1804, 0.0
      %v2786 = vsel %vm2754, %v1809, 0.0
      %v2787 = vsel %vm2755, %v1814, 0.0
      %v2788 = vsel %vm2756, %v1819, 0.0
      %v2789 = vsel %vm2757, %v1824, 0.0
      %2822 = vrot.lane.b32.xlu0 %v2758, 120
      %v2823 = vpop.permute.xlu0 %2822
      %2824 = vrot.lane.b32.xlu0 %v2759, 120
      %v2825 = vpop.permute.xlu0 %2824
      %2826 = vrot.lane.b32.xlu0 %v2760, 120
      %v2827 = vpop.permute.xlu0 %2826
      %2828 = vrot.lane.b32.xlu0 %v2761, 120
      %v2829 = vpop.permute.xlu0 %2828
      %2830 = vrot.lane.b32.xlu0 %v2762, 120
      %v2831 = vpop.permute.xlu0 %2830
      %2832 = vrot.lane.b32.xlu0 %v2763, 120
      %v2833 = vpop.permute.xlu0 %2832
      %2834 = vrot.lane.b32.xlu0 %v2764, 120
      %v2835 = vpop.permute.xlu0 %2834
      %2836 = vrot.lane.b32.xlu0 %v2765, 120
      %v2837 = vpop.permute.xlu0 %2836
      %2838 = vrot.lane.b32.xlu0 %v2766, 120
      %v2839 = vpop.permute.xlu0 %2838
      %2840 = vrot.lane.b32.xlu0 %v2767, 120
      %v2841 = vpop.permute.xlu0 %2840
      %2842 = vrot.lane.b32.xlu0 %v2768, 120
      %v2843 = vpop.permute.xlu0 %2842
      %2844 = vrot.lane.b32.xlu0 %v2769, 120
      %v2845 = vpop.permute.xlu0 %2844
      %2846 = vrot.lane.b32.xlu0 %v2770, 120
      %v2847 = vpop.permute.xlu0 %2846
      %2848 = vrot.lane.b32.xlu0 %v2771, 120
      %v2849 = vpop.permute.xlu0 %2848
      %2850 = vrot.lane.b32.xlu0 %v2772, 120
      %v2851 = vpop.permute.xlu0 %2850
      %2852 = vrot.lane.b32.xlu0 %v2773, 120
      %v2853 = vpop.permute.xlu0 %2852
      %2854 = vrot.lane.b32.xlu0 %v2774, 120
      %v2855 = vpop.permute.xlu0 %2854
      %2856 = vrot.lane.b32.xlu0 %v2775, 120
      %v2857 = vpop.permute.xlu0 %2856
      %2858 = vrot.lane.b32.xlu0 %v2776, 120
      %v2859 = vpop.permute.xlu0 %2858
      %2860 = vrot.lane.b32.xlu0 %v2777, 120
      %v2861 = vpop.permute.xlu0 %2860
      %2862 = vrot.lane.b32.xlu0 %v2778, 120
      %v2863 = vpop.permute.xlu0 %2862
      %2864 = vrot.lane.b32.xlu0 %v2779, 120
      %v2865 = vpop.permute.xlu0 %2864
      %2866 = vrot.lane.b32.xlu0 %v2780, 120
      %v2867 = vpop.permute.xlu0 %2866
      %2868 = vrot.lane.b32.xlu0 %v2781, 120
      %v2869 = vpop.permute.xlu0 %2868
      %2870 = vrot.lane.b32.xlu0 %v2782, 120
      %v2871 = vpop.permute.xlu0 %2870
      %2872 = vrot.lane.b32.xlu0 %v2783, 120
      %v2873 = vpop.permute.xlu0 %2872
      %2874 = vrot.lane.b32.xlu0 %v2784, 120
      %v2875 = vpop.permute.xlu0 %2874
      %2876 = vrot.lane.b32.xlu0 %v2785, 120
      %v2877 = vpop.permute.xlu0 %2876
      %2878 = vrot.lane.b32.xlu0 %v2786, 120
      %v2879 = vpop.permute.xlu0 %2878
      %2880 = vrot.lane.b32.xlu0 %v2787, 120
      %v2881 = vpop.permute.xlu0 %2880
      %2882 = vrot.lane.b32.xlu0 %v2788, 120
      %v2883 = vpop.permute.xlu0 %2882
      %2884 = vrot.lane.b32.xlu0 %v2789, 120
      %v2885 = vpop.permute.xlu0 %2884
      %v2918 = vadd.f32 %v2758, %v2823
      %v2919 = vadd.f32 %v2759, %v2825
      %v2920 = vadd.f32 %v2760, %v2827
      %v2921 = vadd.f32 %v2761, %v2829
      %v2922 = vadd.f32 %v2762, %v2831
      %v2923 = vadd.f32 %v2763, %v2833
      %v2924 = vadd.f32 %v2764, %v2835
      %v2925 = vadd.f32 %v2765, %v2837
      %v2926 = vadd.f32 %v2766, %v2839
      %v2927 = vadd.f32 %v2767, %v2841
      %v2928 = vadd.f32 %v2768, %v2843
      %v2929 = vadd.f32 %v2769, %v2845
      %v2930 = vadd.f32 %v2770, %v2847
      %v2931 = vadd.f32 %v2771, %v2849
      %v2932 = vadd.f32 %v2772, %v2851
      %v2933 = vadd.f32 %v2773, %v2853
      %v2934 = vadd.f32 %v2774, %v2855
      %v2935 = vadd.f32 %v2775, %v2857
      %v2936 = vadd.f32 %v2776, %v2859
      %v2937 = vadd.f32 %v2777, %v2861
      %v2938 = vadd.f32 %v2778, %v2863
      %v2939 = vadd.f32 %v2779, %v2865
      %v2940 = vadd.f32 %v2780, %v2867
      %v2941 = vadd.f32 %v2781, %v2869
      %v2942 = vadd.f32 %v2782, %v2871
      %v2943 = vadd.f32 %v2783, %v2873
      %v2944 = vadd.f32 %v2784, %v2875
      %v2945 = vadd.f32 %v2785, %v2877
      %v2946 = vadd.f32 %v2786, %v2879
      %v2947 = vadd.f32 %v2787, %v2881
      %v2948 = vadd.f32 %v2788, %v2883
      %v2949 = vadd.f32 %v2789, %v2885
      %2950 = vrot.lane.b32.xlu0 %v2758, 112
      %v2951 = vpop.permute.xlu0 %2950
      %2952 = vrot.lane.b32.xlu0 %v2759, 112
      %v2953 = vpop.permute.xlu0 %2952
      %2954 = vrot.lane.b32.xlu0 %v2760, 112
      %v2955 = vpop.permute.xlu0 %2954
      %2956 = vrot.lane.b32.xlu0 %v2761, 112
      %v2957 = vpop.permute.xlu0 %2956
      %2958 = vrot.lane.b32.xlu0 %v2762, 112
      %v2959 = vpop.permute.xlu0 %2958
      %2960 = vrot.lane.b32.xlu0 %v2763, 112
      %v2961 = vpop.permute.xlu0 %2960
      %2962 = vrot.lane.b32.xlu0 %v2764, 112
      %v2963 = vpop.permute.xlu0 %2962
      %2964 = vrot.lane.b32.xlu0 %v2765, 112
      %v2965 = vpop.permute.xlu0 %2964
      %2966 = vrot.lane.b32.xlu0 %v2766, 112
      %v2967 = vpop.permute.xlu0 %2966
      %2968 = vrot.lane.b32.xlu0 %v2767, 112
      %v2969 = vpop.permute.xlu0 %2968
      %2970 = vrot.lane.b32.xlu0 %v2768, 112
      %v2971 = vpop.permute.xlu0 %2970
      %2972 = vrot.lane.b32.xlu0 %v2769, 112
      %v2973 = vpop.permute.xlu0 %2972
      %2974 = vrot.lane.b32.xlu0 %v2770, 112
      %v2975 = vpop.permute.xlu0 %2974
      %2976 = vrot.lane.b32.xlu0 %v2771, 112
      %v2977 = vpop.permute.xlu0 %2976
      %2978 = vrot.lane.b32.xlu0 %v2772, 112
      %v2979 = vpop.permute.xlu0 %2978
      %2980 = vrot.lane.b32.xlu0 %v2773, 112
      %v2981 = vpop.permute.xlu0 %2980
      %2982 = vrot.lane.b32.xlu0 %v2774, 112
      %v2983 = vpop.permute.xlu0 %2982
      %2984 = vrot.lane.b32.xlu0 %v2775, 112
      %v2985 = vpop.permute.xlu0 %2984
      %2986 = vrot.lane.b32.xlu0 %v2776, 112
      %v2987 = vpop.permute.xlu0 %2986
      %2988 = vrot.lane.b32.xlu0 %v2777, 112
      %v2989 = vpop.permute.xlu0 %2988
      %2990 = vrot.lane.b32.xlu0 %v2778, 112
      %v2991 = vpop.permute.xlu0 %2990
      %2992 = vrot.lane.b32.xlu0 %v2779, 112
      %v2993 = vpop.permute.xlu0 %2992
      %2994 = vrot.lane.b32.xlu0 %v2780, 112
      %v2995 = vpop.permute.xlu0 %2994
      %2996 = vrot.lane.b32.xlu0 %v2781, 112
      %v2997 = vpop.permute.xlu0 %2996
      %2998 = vrot.lane.b32.xlu0 %v2782, 112
      %v2999 = vpop.permute.xlu0 %2998
      %3000 = vrot.lane.b32.xlu0 %v2783, 112
      %v3001 = vpop.permute.xlu0 %3000
      %3002 = vrot.lane.b32.xlu0 %v2784, 112
      %v3003 = vpop.permute.xlu0 %3002
      %3004 = vrot.lane.b32.xlu0 %v2785, 112
      %v3005 = vpop.permute.xlu0 %3004
      %3006 = vrot.lane.b32.xlu0 %v2786, 112
      %v3007 = vpop.permute.xlu0 %3006
      %3008 = vrot.lane.b32.xlu0 %v2787, 112
      %v3009 = vpop.permute.xlu0 %3008
      %3010 = vrot.lane.b32.xlu0 %v2788, 112
      %v3011 = vpop.permute.xlu0 %3010
      %3012 = vrot.lane.b32.xlu0 %v2789, 112
      %v3013 = vpop.permute.xlu0 %3012
      %v3046 = vadd.f32 %v2918, %v2951
      %v3047 = vadd.f32 %v2919, %v2953
      %v3048 = vadd.f32 %v2920, %v2955
      %v3049 = vadd.f32 %v2921, %v2957
      %v3050 = vadd.f32 %v2922, %v2959
      %v3051 = vadd.f32 %v2923, %v2961
      %v3052 = vadd.f32 %v2924, %v2963
      %v3053 = vadd.f32 %v2925, %v2965
      %v3054 = vadd.f32 %v2926, %v2967
      %v3055 = vadd.f32 %v2927, %v2969
      %v3056 = vadd.f32 %v2928, %v2971
      %v3057 = vadd.f32 %v2929, %v2973
      %v3058 = vadd.f32 %v2930, %v2975
      %v3059 = vadd.f32 %v2931, %v2977
      %v3060 = vadd.f32 %v2932, %v2979
      %v3061 = vadd.f32 %v2933, %v2981
      %v3062 = vadd.f32 %v2934, %v2983
      %v3063 = vadd.f32 %v2935, %v2985
      %v3064 = vadd.f32 %v2936, %v2987
      %v3065 = vadd.f32 %v2937, %v2989
      %v3066 = vadd.f32 %v2938, %v2991
      %v3067 = vadd.f32 %v2939, %v2993
      %v3068 = vadd.f32 %v2940, %v2995
      %v3069 = vadd.f32 %v2941, %v2997
      %v3070 = vadd.f32 %v2942, %v2999
      %v3071 = vadd.f32 %v2943, %v3001
      %v3072 = vadd.f32 %v2944, %v3003
      %v3073 = vadd.f32 %v2945, %v3005
      %v3074 = vadd.f32 %v2946, %v3007
      %v3075 = vadd.f32 %v2947, %v3009
      %v3076 = vadd.f32 %v2948, %v3011
      %v3077 = vadd.f32 %v2949, %v3013
      %3078 = vrot.lane.b32.xlu0 %v2758, 104
      %v3079 = vpop.permute.xlu0 %3078
      %3080 = vrot.lane.b32.xlu0 %v2759, 104
      %v3081 = vpop.permute.xlu0 %3080
      %3082 = vrot.lane.b32.xlu0 %v2760, 104
      %v3083 = vpop.permute.xlu0 %3082
      %3084 = vrot.lane.b32.xlu0 %v2761, 104
      %v3085 = vpop.permute.xlu0 %3084
      %3086 = vrot.lane.b32.xlu0 %v2762, 104
      %v3087 = vpop.permute.xlu0 %3086
      %3088 = vrot.lane.b32.xlu0 %v2763, 104
      %v3089 = vpop.permute.xlu0 %3088
      %3090 = vrot.lane.b32.xlu0 %v2764, 104
      %v3091 = vpop.permute.xlu0 %3090
      %3092 = vrot.lane.b32.xlu0 %v2765, 104
      %v3093 = vpop.permute.xlu0 %3092
      %3094 = vrot.lane.b32.xlu0 %v2766, 104
      %v3095 = vpop.permute.xlu0 %3094
      %3096 = vrot.lane.b32.xlu0 %v2767, 104
      %v3097 = vpop.permute.xlu0 %3096
      %3098 = vrot.lane.b32.xlu0 %v2768, 104
      %v3099 = vpop.permute.xlu0 %3098
      %3100 = vrot.lane.b32.xlu0 %v2769, 104
      %v3101 = vpop.permute.xlu0 %3100
      %3102 = vrot.lane.b32.xlu0 %v2770, 104
      %v3103 = vpop.permute.xlu0 %3102
      %3104 = vrot.lane.b32.xlu0 %v2771, 104
      %v3105 = vpop.permute.xlu0 %3104
      %3106 = vrot.lane.b32.xlu0 %v2772, 104
      %v3107 = vpop.permute.xlu0 %3106
      %3108 = vrot.lane.b32.xlu0 %v2773, 104
      %v3109 = vpop.permute.xlu0 %3108
      %3110 = vrot.lane.b32.xlu0 %v2774, 104
      %v3111 = vpop.permute.xlu0 %3110
      %3112 = vrot.lane.b32.xlu0 %v2775, 104
      %v3113 = vpop.permute.xlu0 %3112
      %3114 = vrot.lane.b32.xlu0 %v2776, 104
      %v3115 = vpop.permute.xlu0 %3114
      %3116 = vrot.lane.b32.xlu0 %v2777, 104
      %v3117 = vpop.permute.xlu0 %3116
      %3118 = vrot.lane.b32.xlu0 %v2778, 104
      %v3119 = vpop.permute.xlu0 %3118
      %3120 = vrot.lane.b32.xlu0 %v2779, 104
      %v3121 = vpop.permute.xlu0 %3120
      %3122 = vrot.lane.b32.xlu0 %v2780, 104
      %v3123 = vpop.permute.xlu0 %3122
      %3124 = vrot.lane.b32.xlu0 %v2781, 104
      %v3125 = vpop.permute.xlu0 %3124
      %3126 = vrot.lane.b32.xlu0 %v2782, 104
      %v3127 = vpop.permute.xlu0 %3126
      %3128 = vrot.lane.b32.xlu0 %v2783, 104
      %v3129 = vpop.permute.xlu0 %3128
      %3130 = vrot.lane.b32.xlu0 %v2784, 104
      %v3131 = vpop.permute.xlu0 %3130
      %3132 = vrot.lane.b32.xlu0 %v2785, 104
      %v3133 = vpop.permute.xlu0 %3132
      %3134 = vrot.lane.b32.xlu0 %v2786, 104
      %v3135 = vpop.permute.xlu0 %3134
      %3136 = vrot.lane.b32.xlu0 %v2787, 104
      %v3137 = vpop.permute.xlu0 %3136
      %3138 = vrot.lane.b32.xlu0 %v2788, 104
      %v3139 = vpop.permute.xlu0 %3138
      %3140 = vrot.lane.b32.xlu0 %v2789, 104
      %v3141 = vpop.permute.xlu0 %3140
      %v3174 = vadd.f32 %v3046, %v3079
      %v3175 = vadd.f32 %v3047, %v3081
      %v3176 = vadd.f32 %v3048, %v3083
      %v3177 = vadd.f32 %v3049, %v3085
      %v3178 = vadd.f32 %v3050, %v3087
      %v3179 = vadd.f32 %v3051, %v3089
      %v3180 = vadd.f32 %v3052, %v3091
      %v3181 = vadd.f32 %v3053, %v3093
      %v3182 = vadd.f32 %v3054, %v3095
      %v3183 = vadd.f32 %v3055, %v3097
      %v3184 = vadd.f32 %v3056, %v3099
      %v3185 = vadd.f32 %v3057, %v3101
      %v3186 = vadd.f32 %v3058, %v3103
      %v3187 = vadd.f32 %v3059, %v3105
      %v3188 = vadd.f32 %v3060, %v3107
      %v3189 = vadd.f32 %v3061, %v3109
      %v3190 = vadd.f32 %v3062, %v3111
      %v3191 = vadd.f32 %v3063, %v3113
      %v3192 = vadd.f32 %v3064, %v3115
      %v3193 = vadd.f32 %v3065, %v3117
      %v3194 = vadd.f32 %v3066, %v3119
      %v3195 = vadd.f32 %v3067, %v3121
      %v3196 = vadd.f32 %v3068, %v3123
      %v3197 = vadd.f32 %v3069, %v3125
      %v3198 = vadd.f32 %v3070, %v3127
      %v3199 = vadd.f32 %v3071, %v3129
      %v3200 = vadd.f32 %v3072, %v3131
      %v3201 = vadd.f32 %v3073, %v3133
      %v3202 = vadd.f32 %v3074, %v3135
      %v3203 = vadd.f32 %v3075, %v3137
      %v3204 = vadd.f32 %v3076, %v3139
      %v3205 = vadd.f32 %v3077, %v3141
      %3238 = vrot.lane.b32.xlu0 %v1669, 96
      %v3239 = vpop.permute.xlu0 %3238
      %3240 = vrot.lane.b32.xlu0 %v1674, 96
      %v3241 = vpop.permute.xlu0 %3240
      %3242 = vrot.lane.b32.xlu0 %v1679, 96
      %v3243 = vpop.permute.xlu0 %3242
      %3244 = vrot.lane.b32.xlu0 %v1684, 96
      %v3245 = vpop.permute.xlu0 %3244
      %3246 = vrot.lane.b32.xlu0 %v1689, 96
      %v3247 = vpop.permute.xlu0 %3246
      %3248 = vrot.lane.b32.xlu0 %v1694, 96
      %v3249 = vpop.permute.xlu0 %3248
      %3250 = vrot.lane.b32.xlu0 %v1699, 96
      %v3251 = vpop.permute.xlu0 %3250
      %3252 = vrot.lane.b32.xlu0 %v1704, 96
      %v3253 = vpop.permute.xlu0 %3252
      %3254 = vrot.lane.b32.xlu0 %v1709, 96
      %v3255 = vpop.permute.xlu0 %3254
      %3256 = vrot.lane.b32.xlu0 %v1714, 96
      %v3257 = vpop.permute.xlu0 %3256
      %3258 = vrot.lane.b32.xlu0 %v1719, 96
      %v3259 = vpop.permute.xlu0 %3258
      %3260 = vrot.lane.b32.xlu0 %v1724, 96
      %v3261 = vpop.permute.xlu0 %3260
      %3262 = vrot.lane.b32.xlu0 %v1729, 96
      %v3263 = vpop.permute.xlu0 %3262
      %3264 = vrot.lane.b32.xlu0 %v1734, 96
      %v3265 = vpop.permute.xlu0 %3264
      %3266 = vrot.lane.b32.xlu0 %v1739, 96
      %v3267 = vpop.permute.xlu0 %3266
      %3268 = vrot.lane.b32.xlu0 %v1744, 96
      %v3269 = vpop.permute.xlu0 %3268
      %3270 = vrot.lane.b32.xlu0 %v1749, 96
      %v3271 = vpop.permute.xlu0 %3270
      %3272 = vrot.lane.b32.xlu0 %v1754, 96
      %v3273 = vpop.permute.xlu0 %3272
      %3274 = vrot.lane.b32.xlu0 %v1759, 96
      %v3275 = vpop.permute.xlu0 %3274
      %3276 = vrot.lane.b32.xlu0 %v1764, 96
      %v3277 = vpop.permute.xlu0 %3276
      %3278 = vrot.lane.b32.xlu0 %v1769, 96
      %v3279 = vpop.permute.xlu0 %3278
      %3280 = vrot.lane.b32.xlu0 %v1774, 96
      %v3281 = vpop.permute.xlu0 %3280
      %3282 = vrot.lane.b32.xlu0 %v1779, 96
      %v3283 = vpop.permute.xlu0 %3282
      %3284 = vrot.lane.b32.xlu0 %v1784, 96
      %v3285 = vpop.permute.xlu0 %3284
      %3286 = vrot.lane.b32.xlu0 %v1789, 96
      %v3287 = vpop.permute.xlu0 %3286
      %3288 = vrot.lane.b32.xlu0 %v1794, 96
      %v3289 = vpop.permute.xlu0 %3288
      %3290 = vrot.lane.b32.xlu0 %v1799, 96
      %v3291 = vpop.permute.xlu0 %3290
      %3292 = vrot.lane.b32.xlu0 %v1804, 96
      %v3293 = vpop.permute.xlu0 %3292
      %3294 = vrot.lane.b32.xlu0 %v1809, 96
      %v3295 = vpop.permute.xlu0 %3294
      %3296 = vrot.lane.b32.xlu0 %v1814, 96
      %v3297 = vpop.permute.xlu0 %3296
      %3298 = vrot.lane.b32.xlu0 %v1819, 96
      %v3299 = vpop.permute.xlu0 %3298
      %3300 = vrot.lane.b32.xlu0 %v1824, 96
      %v3301 = vpop.permute.xlu0 %3300
      %v3334 = vsel %vm2726, %v3239, 0.0
      %v3335 = vsel %vm2727, %v3241, 0.0
      %v3336 = vsel %vm2728, %v3243, 0.0
      %v3337 = vsel %vm2729, %v3245, 0.0
      %v3338 = vsel %vm2730, %v3247, 0.0
      %v3339 = vsel %vm2731, %v3249, 0.0
      %v3340 = vsel %vm2732, %v3251, 0.0
      %v3341 = vsel %vm2733, %v3253, 0.0
      %v3342 = vsel %vm2734, %v3255, 0.0
      %v3343 = vsel %vm2735, %v3257, 0.0
      %v3344 = vsel %vm2736, %v3259, 0.0
      %v3345 = vsel %vm2737, %v3261, 0.0
      %v3346 = vsel %vm2738, %v3263, 0.0
      %v3347 = vsel %vm2739, %v3265, 0.0
      %v3348 = vsel %vm2740, %v3267, 0.0
      %v3349 = vsel %vm2741, %v3269, 0.0
      %v3350 = vsel %vm2742, %v3271, 0.0
      %v3351 = vsel %vm2743, %v3273, 0.0
      %v3352 = vsel %vm2744, %v3275, 0.0
      %v3353 = vsel %vm2745, %v3277, 0.0
      %v3354 = vsel %vm2746, %v3279, 0.0
      %v3355 = vsel %vm2747, %v3281, 0.0
      %v3356 = vsel %vm2748, %v3283, 0.0
      %v3357 = vsel %vm2749, %v3285, 0.0
      %v3358 = vsel %vm2750, %v3287, 0.0
      %v3359 = vsel %vm2751, %v3289, 0.0
      %v3360 = vsel %vm2752, %v3291, 0.0
      %v3361 = vsel %vm2753, %v3293, 0.0
      %v3362 = vsel %vm2754, %v3295, 0.0
      %v3363 = vsel %vm2755, %v3297, 0.0
      %v3364 = vsel %vm2756, %v3299, 0.0
      %v3365 = vsel %vm2757, %v3301, 0.0
      %3398 = vrot.lane.b32.xlu0 %v3334, 120
      %v3399 = vpop.permute.xlu0 %3398
      %3400 = vrot.lane.b32.xlu0 %v3335, 120
      %v3401 = vpop.permute.xlu0 %3400
      %3402 = vrot.lane.b32.xlu0 %v3336, 120
      %v3403 = vpop.permute.xlu0 %3402
      %3404 = vrot.lane.b32.xlu0 %v3337, 120
      %v3405 = vpop.permute.xlu0 %3404
      %3406 = vrot.lane.b32.xlu0 %v3338, 120
      %v3407 = vpop.permute.xlu0 %3406
      %3408 = vrot.lane.b32.xlu0 %v3339, 120
      %v3409 = vpop.permute.xlu0 %3408
      %3410 = vrot.lane.b32.xlu0 %v3340, 120
      %v3411 = vpop.permute.xlu0 %3410
      %3412 = vrot.lane.b32.xlu0 %v3341, 120
      %v3413 = vpop.permute.xlu0 %3412
      %3414 = vrot.lane.b32.xlu0 %v3342, 120
      %v3415 = vpop.permute.xlu0 %3414
      %3416 = vrot.lane.b32.xlu0 %v3343, 120
      %v3417 = vpop.permute.xlu0 %3416
      %3418 = vrot.lane.b32.xlu0 %v3344, 120
      %v3419 = vpop.permute.xlu0 %3418
      %3420 = vrot.lane.b32.xlu0 %v3345, 120
      %v3421 = vpop.permute.xlu0 %3420
      %3422 = vrot.lane.b32.xlu0 %v3346, 120
      %v3423 = vpop.permute.xlu0 %3422
      %3424 = vrot.lane.b32.xlu0 %v3347, 120
      %v3425 = vpop.permute.xlu0 %3424
      %3426 = vrot.lane.b32.xlu0 %v3348, 120
      %v3427 = vpop.permute.xlu0 %3426
      %3428 = vrot.lane.b32.xlu0 %v3349, 120
      %v3429 = vpop.permute.xlu0 %3428
      %3430 = vrot.lane.b32.xlu0 %v3350, 120
      %v3431 = vpop.permute.xlu0 %3430
      %3432 = vrot.lane.b32.xlu0 %v3351, 120
      %v3433 = vpop.permute.xlu0 %3432
      %3434 = vrot.lane.b32.xlu0 %v3352, 120
      %v3435 = vpop.permute.xlu0 %3434
      %3436 = vrot.lane.b32.xlu0 %v3353, 120
      %v3437 = vpop.permute.xlu0 %3436
      %3438 = vrot.lane.b32.xlu0 %v3354, 120
      %v3439 = vpop.permute.xlu0 %3438
      %3440 = vrot.lane.b32.xlu0 %v3355, 120
      %v3441 = vpop.permute.xlu0 %3440
      %3442 = vrot.lane.b32.xlu0 %v3356, 120
      %v3443 = vpop.permute.xlu0 %3442
      %3444 = vrot.lane.b32.xlu0 %v3357, 120
      %v3445 = vpop.permute.xlu0 %3444
      %3446 = vrot.lane.b32.xlu0 %v3358, 120
      %v3447 = vpop.permute.xlu0 %3446
      %3448 = vrot.lane.b32.xlu0 %v3359, 120
      %v3449 = vpop.permute.xlu0 %3448
      %3450 = vrot.lane.b32.xlu0 %v3360, 120
      %v3451 = vpop.permute.xlu0 %3450
      %3452 = vrot.lane.b32.xlu0 %v3361, 120
      %v3453 = vpop.permute.xlu0 %3452
      %3454 = vrot.lane.b32.xlu0 %v3362, 120
      %v3455 = vpop.permute.xlu0 %3454
      %3456 = vrot.lane.b32.xlu0 %v3363, 120
      %v3457 = vpop.permute.xlu0 %3456
      %3458 = vrot.lane.b32.xlu0 %v3364, 120
      %v3459 = vpop.permute.xlu0 %3458
      %3460 = vrot.lane.b32.xlu0 %v3365, 120
      %v3461 = vpop.permute.xlu0 %3460
      %v3494 = vadd.f32 %v3334, %v3399
      %v3495 = vadd.f32 %v3335, %v3401
      %v3496 = vadd.f32 %v3336, %v3403
      %v3497 = vadd.f32 %v3337, %v3405
      %v3498 = vadd.f32 %v3338, %v3407
      %v3499 = vadd.f32 %v3339, %v3409
      %v3500 = vadd.f32 %v3340, %v3411
      %v3501 = vadd.f32 %v3341, %v3413
      %v3502 = vadd.f32 %v3342, %v3415
      %v3503 = vadd.f32 %v3343, %v3417
      %v3504 = vadd.f32 %v3344, %v3419
      %v3505 = vadd.f32 %v3345, %v3421
      %v3506 = vadd.f32 %v3346, %v3423
      %v3507 = vadd.f32 %v3347, %v3425
      %v3508 = vadd.f32 %v3348, %v3427
      %v3509 = vadd.f32 %v3349, %v3429
      %v3510 = vadd.f32 %v3350, %v3431
      %v3511 = vadd.f32 %v3351, %v3433
      %v3512 = vadd.f32 %v3352, %v3435
      %v3513 = vadd.f32 %v3353, %v3437
      %v3514 = vadd.f32 %v3354, %v3439
      %v3515 = vadd.f32 %v3355, %v3441
      %v3516 = vadd.f32 %v3356, %v3443
      %v3517 = vadd.f32 %v3357, %v3445
      %v3518 = vadd.f32 %v3358, %v3447
      %v3519 = vadd.f32 %v3359, %v3449
      %v3520 = vadd.f32 %v3360, %v3451
      %v3521 = vadd.f32 %v3361, %v3453
      %v3522 = vadd.f32 %v3362, %v3455
      %v3523 = vadd.f32 %v3363, %v3457
      %v3524 = vadd.f32 %v3364, %v3459
      %v3525 = vadd.f32 %v3365, %v3461
      %3526 = vrot.lane.b32.xlu0 %v3334, 112
      %v3527 = vpop.permute.xlu0 %3526
      %3528 = vrot.lane.b32.xlu0 %v3335, 112
      %v3529 = vpop.permute.xlu0 %3528
      %3530 = vrot.lane.b32.xlu0 %v3336, 112
      %v3531 = vpop.permute.xlu0 %3530
      %3532 = vrot.lane.b32.xlu0 %v3337, 112
      %v3533 = vpop.permute.xlu0 %3532
      %3534 = vrot.lane.b32.xlu0 %v3338, 112
      %v3535 = vpop.permute.xlu0 %3534
      %3536 = vrot.lane.b32.xlu0 %v3339, 112
      %v3537 = vpop.permute.xlu0 %3536
      %3538 = vrot.lane.b32.xlu0 %v3340, 112
      %v3539 = vpop.permute.xlu0 %3538
      %3540 = vrot.lane.b32.xlu0 %v3341, 112
      %v3541 = vpop.permute.xlu0 %3540
      %3542 = vrot.lane.b32.xlu0 %v3342, 112
      %v3543 = vpop.permute.xlu0 %3542
      %3544 = vrot.lane.b32.xlu0 %v3343, 112
      %v3545 = vpop.permute.xlu0 %3544
      %3546 = vrot.lane.b32.xlu0 %v3344, 112
      %v3547 = vpop.permute.xlu0 %3546
      %3548 = vrot.lane.b32.xlu0 %v3345, 112
      %v3549 = vpop.permute.xlu0 %3548
      %3550 = vrot.lane.b32.xlu0 %v3346, 112
      %v3551 = vpop.permute.xlu0 %3550
      %3552 = vrot.lane.b32.xlu0 %v3347, 112
      %v3553 = vpop.permute.xlu0 %3552
      %3554 = vrot.lane.b32.xlu0 %v3348, 112
      %v3555 = vpop.permute.xlu0 %3554
      %3556 = vrot.lane.b32.xlu0 %v3349, 112
      %v3557 = vpop.permute.xlu0 %3556
      %3558 = vrot.lane.b32.xlu0 %v3350, 112
      %v3559 = vpop.permute.xlu0 %3558
      %3560 = vrot.lane.b32.xlu0 %v3351, 112
      %v3561 = vpop.permute.xlu0 %3560
      %3562 = vrot.lane.b32.xlu0 %v3352, 112
      %v3563 = vpop.permute.xlu0 %3562
      %3564 = vrot.lane.b32.xlu0 %v3353, 112
      %v3565 = vpop.permute.xlu0 %3564
      %3566 = vrot.lane.b32.xlu0 %v3354, 112
      %v3567 = vpop.permute.xlu0 %3566
      %3568 = vrot.lane.b32.xlu0 %v3355, 112
      %v3569 = vpop.permute.xlu0 %3568
      %3570 = vrot.lane.b32.xlu0 %v3356, 112
      %v3571 = vpop.permute.xlu0 %3570
      %3572 = vrot.lane.b32.xlu0 %v3357, 112
      %v3573 = vpop.permute.xlu0 %3572
      %3574 = vrot.lane.b32.xlu0 %v3358, 112
      %v3575 = vpop.permute.xlu0 %3574
      %3576 = vrot.lane.b32.xlu0 %v3359, 112
      %v3577 = vpop.permute.xlu0 %3576
      %3578 = vrot.lane.b32.xlu0 %v3360, 112
      %v3579 = vpop.permute.xlu0 %3578
      %3580 = vrot.lane.b32.xlu0 %v3361, 112
      %v3581 = vpop.permute.xlu0 %3580
      %3582 = vrot.lane.b32.xlu0 %v3362, 112
      %v3583 = vpop.permute.xlu0 %3582
      %3584 = vrot.lane.b32.xlu0 %v3363, 112
      %v3585 = vpop.permute.xlu0 %3584
      %3586 = vrot.lane.b32.xlu0 %v3364, 112
      %v3587 = vpop.permute.xlu0 %3586
      %3588 = vrot.lane.b32.xlu0 %v3365, 112
      %v3589 = vpop.permute.xlu0 %3588
      %v3622 = vadd.f32 %v3494, %v3527
      %v3623 = vadd.f32 %v3495, %v3529
      %v3624 = vadd.f32 %v3496, %v3531
      %v3625 = vadd.f32 %v3497, %v3533
      %v3626 = vadd.f32 %v3498, %v3535
      %v3627 = vadd.f32 %v3499, %v3537
      %v3628 = vadd.f32 %v3500, %v3539
      %v3629 = vadd.f32 %v3501, %v3541
      %v3630 = vadd.f32 %v3502, %v3543
      %v3631 = vadd.f32 %v3503, %v3545
      %v3632 = vadd.f32 %v3504, %v3547
      %v3633 = vadd.f32 %v3505, %v3549
      %v3634 = vadd.f32 %v3506, %v3551
      %v3635 = vadd.f32 %v3507, %v3553
      %v3636 = vadd.f32 %v3508, %v3555
      %v3637 = vadd.f32 %v3509, %v3557
      %v3638 = vadd.f32 %v3510, %v3559
      %v3639 = vadd.f32 %v3511, %v3561
      %v3640 = vadd.f32 %v3512, %v3563
      %v3641 = vadd.f32 %v3513, %v3565
      %v3642 = vadd.f32 %v3514, %v3567
      %v3643 = vadd.f32 %v3515, %v3569
      %v3644 = vadd.f32 %v3516, %v3571
      %v3645 = vadd.f32 %v3517, %v3573
      %v3646 = vadd.f32 %v3518, %v3575
      %v3647 = vadd.f32 %v3519, %v3577
      %v3648 = vadd.f32 %v3520, %v3579
      %v3649 = vadd.f32 %v3521, %v3581
      %v3650 = vadd.f32 %v3522, %v3583
      %v3651 = vadd.f32 %v3523, %v3585
      %v3652 = vadd.f32 %v3524, %v3587
      %v3653 = vadd.f32 %v3525, %v3589
      %3654 = vrot.lane.b32.xlu0 %v3334, 104
      %v3655 = vpop.permute.xlu0 %3654
      %3656 = vrot.lane.b32.xlu0 %v3335, 104
      %v3657 = vpop.permute.xlu0 %3656
      %3658 = vrot.lane.b32.xlu0 %v3336, 104
      %v3659 = vpop.permute.xlu0 %3658
      %3660 = vrot.lane.b32.xlu0 %v3337, 104
      %v3661 = vpop.permute.xlu0 %3660
      %3662 = vrot.lane.b32.xlu0 %v3338, 104
      %v3663 = vpop.permute.xlu0 %3662
      %3664 = vrot.lane.b32.xlu0 %v3339, 104
      %v3665 = vpop.permute.xlu0 %3664
      %3666 = vrot.lane.b32.xlu0 %v3340, 104
      %v3667 = vpop.permute.xlu0 %3666
      %3668 = vrot.lane.b32.xlu0 %v3341, 104
      %v3669 = vpop.permute.xlu0 %3668
      %3670 = vrot.lane.b32.xlu0 %v3342, 104
      %v3671 = vpop.permute.xlu0 %3670
      %3672 = vrot.lane.b32.xlu0 %v3343, 104
      %v3673 = vpop.permute.xlu0 %3672
      %3674 = vrot.lane.b32.xlu0 %v3344, 104
      %v3675 = vpop.permute.xlu0 %3674
      %3676 = vrot.lane.b32.xlu0 %v3345, 104
      %v3677 = vpop.permute.xlu0 %3676
      %3678 = vrot.lane.b32.xlu0 %v3346, 104
      %v3679 = vpop.permute.xlu0 %3678
      %3680 = vrot.lane.b32.xlu0 %v3347, 104
      %v3681 = vpop.permute.xlu0 %3680
      %3682 = vrot.lane.b32.xlu0 %v3348, 104
      %v3683 = vpop.permute.xlu0 %3682
      %3684 = vrot.lane.b32.xlu0 %v3349, 104
      %v3685 = vpop.permute.xlu0 %3684
      %3686 = vrot.lane.b32.xlu0 %v3350, 104
      %v3687 = vpop.permute.xlu0 %3686
      %3688 = vrot.lane.b32.xlu0 %v3351, 104
      %v3689 = vpop.permute.xlu0 %3688
      %3690 = vrot.lane.b32.xlu0 %v3352, 104
      %v3691 = vpop.permute.xlu0 %3690
      %3692 = vrot.lane.b32.xlu0 %v3353, 104
      %v3693 = vpop.permute.xlu0 %3692
      %3694 = vrot.lane.b32.xlu0 %v3354, 104
      %v3695 = vpop.permute.xlu0 %3694
      %3696 = vrot.lane.b32.xlu0 %v3355, 104
      %v3697 = vpop.permute.xlu0 %3696
      %3698 = vrot.lane.b32.xlu0 %v3356, 104
      %v3699 = vpop.permute.xlu0 %3698
      %3700 = vrot.lane.b32.xlu0 %v3357, 104
      %v3701 = vpop.permute.xlu0 %3700
      %3702 = vrot.lane.b32.xlu0 %v3358, 104
      %v3703 = vpop.permute.xlu0 %3702
      %3704 = vrot.lane.b32.xlu0 %v3359, 104
      %v3705 = vpop.permute.xlu0 %3704
      %3706 = vrot.lane.b32.xlu0 %v3360, 104
      %v3707 = vpop.permute.xlu0 %3706
      %3708 = vrot.lane.b32.xlu0 %v3361, 104
      %v3709 = vpop.permute.xlu0 %3708
      %3710 = vrot.lane.b32.xlu0 %v3362, 104
      %v3711 = vpop.permute.xlu0 %3710
      %3712 = vrot.lane.b32.xlu0 %v3363, 104
      %v3713 = vpop.permute.xlu0 %3712
      %3714 = vrot.lane.b32.xlu0 %v3364, 104
      %v3715 = vpop.permute.xlu0 %3714
      %3716 = vrot.lane.b32.xlu0 %v3365, 104
      %v3717 = vpop.permute.xlu0 %3716
      %v3750 = vadd.f32 %v3622, %v3655
      %v3751 = vadd.f32 %v3623, %v3657
      %v3752 = vadd.f32 %v3624, %v3659
      %v3753 = vadd.f32 %v3625, %v3661
      %v3754 = vadd.f32 %v3626, %v3663
      %v3755 = vadd.f32 %v3627, %v3665
      %v3756 = vadd.f32 %v3628, %v3667
      %v3757 = vadd.f32 %v3629, %v3669
      %v3758 = vadd.f32 %v3630, %v3671
      %v3759 = vadd.f32 %v3631, %v3673
      %v3760 = vadd.f32 %v3632, %v3675
      %v3761 = vadd.f32 %v3633, %v3677
      %v3762 = vadd.f32 %v3634, %v3679
      %v3763 = vadd.f32 %v3635, %v3681
      %v3764 = vadd.f32 %v3636, %v3683
      %v3765 = vadd.f32 %v3637, %v3685
      %v3766 = vadd.f32 %v3638, %v3687
      %v3767 = vadd.f32 %v3639, %v3689
      %v3768 = vadd.f32 %v3640, %v3691
      %v3769 = vadd.f32 %v3641, %v3693
      %v3770 = vadd.f32 %v3642, %v3695
      %v3771 = vadd.f32 %v3643, %v3697
      %v3772 = vadd.f32 %v3644, %v3699
      %v3773 = vadd.f32 %v3645, %v3701
      %v3774 = vadd.f32 %v3646, %v3703
      %v3775 = vadd.f32 %v3647, %v3705
      %v3776 = vadd.f32 %v3648, %v3707
      %v3777 = vadd.f32 %v3649, %v3709
      %v3778 = vadd.f32 %v3650, %v3711
      %v3779 = vadd.f32 %v3651, %v3713
      %v3780 = vadd.f32 %v3652, %v3715
      %v3781 = vadd.f32 %v3653, %v3717
      %3782 = vrot.lane.b32.xlu0 %v282, 108
      %v3783 = vpop.permute.xlu0 %3782
      %3784 = vrot.lane.b32.xlu0 %v283, 108
      %v3785 = vpop.permute.xlu0 %3784
      %3786 = vrot.lane.b32.xlu0 %v284, 108
      %v3787 = vpop.permute.xlu0 %3786
      %3788 = vrot.lane.b32.xlu0 %v285, 108
      %v3789 = vpop.permute.xlu0 %3788
      %3790 = vrot.lane.b32.xlu0 %v286, 108
      %v3791 = vpop.permute.xlu0 %3790
      %3792 = vrot.lane.b32.xlu0 %v287, 108
      %v3793 = vpop.permute.xlu0 %3792
      %3794 = vrot.lane.b32.xlu0 %v288, 108
      %v3795 = vpop.permute.xlu0 %3794
      %3796 = vrot.lane.b32.xlu0 %v289, 108
      %v3797 = vpop.permute.xlu0 %3796
      %3798 = vrot.lane.b32.xlu0 %v290, 108
      %v3799 = vpop.permute.xlu0 %3798
      %3800 = vrot.lane.b32.xlu0 %v291, 108
      %v3801 = vpop.permute.xlu0 %3800
      %3802 = vrot.lane.b32.xlu0 %v292, 108
      %v3803 = vpop.permute.xlu0 %3802
      %3804 = vrot.lane.b32.xlu0 %v293, 108
      %v3805 = vpop.permute.xlu0 %3804
      %3806 = vrot.lane.b32.xlu0 %v294, 108
      %v3807 = vpop.permute.xlu0 %3806
      %3808 = vrot.lane.b32.xlu0 %v295, 108
      %v3809 = vpop.permute.xlu0 %3808
      %3810 = vrot.lane.b32.xlu0 %v296, 108
      %v3811 = vpop.permute.xlu0 %3810
      %3812 = vrot.lane.b32.xlu0 %v297, 108
      %v3813 = vpop.permute.xlu0 %3812
      %3814 = vrot.lane.b32.xlu0 %v298, 108
      %v3815 = vpop.permute.xlu0 %3814
      %3816 = vrot.lane.b32.xlu0 %v299, 108
      %v3817 = vpop.permute.xlu0 %3816
      %3818 = vrot.lane.b32.xlu0 %v300, 108
      %v3819 = vpop.permute.xlu0 %3818
      %3820 = vrot.lane.b32.xlu0 %v301, 108
      %v3821 = vpop.permute.xlu0 %3820
      %3822 = vrot.lane.b32.xlu0 %v302, 108
      %v3823 = vpop.permute.xlu0 %3822
      %3824 = vrot.lane.b32.xlu0 %v303, 108
      %v3825 = vpop.permute.xlu0 %3824
      %3826 = vrot.lane.b32.xlu0 %v304, 108
      %v3827 = vpop.permute.xlu0 %3826
      %3828 = vrot.lane.b32.xlu0 %v305, 108
      %v3829 = vpop.permute.xlu0 %3828
      %3830 = vrot.lane.b32.xlu0 %v306, 108
      %v3831 = vpop.permute.xlu0 %3830
      %3832 = vrot.lane.b32.xlu0 %v307, 108
      %v3833 = vpop.permute.xlu0 %3832
      %3834 = vrot.lane.b32.xlu0 %v308, 108
      %v3835 = vpop.permute.xlu0 %3834
      %3836 = vrot.lane.b32.xlu0 %v309, 108
      %v3837 = vpop.permute.xlu0 %3836
      %3838 = vrot.lane.b32.xlu0 %v310, 108
      %v3839 = vpop.permute.xlu0 %3838
      %3840 = vrot.lane.b32.xlu0 %v311, 108
      %v3841 = vpop.permute.xlu0 %3840
      %3842 = vrot.lane.b32.xlu0 %v312, 108
      %v3843 = vpop.permute.xlu0 %3842
      %3844 = vrot.lane.b32.xlu0 %v313, 108
      %v3845 = vpop.permute.xlu0 %3844
      %v3878 = vsel %vm2726, %v3783, 0.0
      %v3879 = vsel %vm2727, %v3785, 0.0
      %v3880 = vsel %vm2728, %v3787, 0.0
      %v3881 = vsel %vm2729, %v3789, 0.0
      %v3882 = vsel %vm2730, %v3791, 0.0
      %v3883 = vsel %vm2731, %v3793, 0.0
      %v3884 = vsel %vm2732, %v3795, 0.0
      %v3885 = vsel %vm2733, %v3797, 0.0
      %v3886 = vsel %vm2734, %v3799, 0.0
      %v3887 = vsel %vm2735, %v3801, 0.0
      %v3888 = vsel %vm2736, %v3803, 0.0
      %v3889 = vsel %vm2737, %v3805, 0.0
      %v3890 = vsel %vm2738, %v3807, 0.0
      %v3891 = vsel %vm2739, %v3809, 0.0
      %v3892 = vsel %vm2740, %v3811, 0.0
      %v3893 = vsel %vm2741, %v3813, 0.0
      %v3894 = vsel %vm2742, %v3815, 0.0
      %v3895 = vsel %vm2743, %v3817, 0.0
      %v3896 = vsel %vm2744, %v3819, 0.0
      %v3897 = vsel %vm2745, %v3821, 0.0
      %v3898 = vsel %vm2746, %v3823, 0.0
      %v3899 = vsel %vm2747, %v3825, 0.0
      %v3900 = vsel %vm2748, %v3827, 0.0
      %v3901 = vsel %vm2749, %v3829, 0.0
      %v3902 = vsel %vm2750, %v3831, 0.0
      %v3903 = vsel %vm2751, %v3833, 0.0
      %v3904 = vsel %vm2752, %v3835, 0.0
      %v3905 = vsel %vm2753, %v3837, 0.0
      %v3906 = vsel %vm2754, %v3839, 0.0
      %v3907 = vsel %vm2755, %v3841, 0.0
      %v3908 = vsel %vm2756, %v3843, 0.0
      %v3909 = vsel %vm2757, %v3845, 0.0
      %3942 = vrot.lane.b32.xlu0 %v3878, 120
      %v3943 = vpop.permute.xlu0 %3942
      %3944 = vrot.lane.b32.xlu0 %v3879, 120
      %v3945 = vpop.permute.xlu0 %3944
      %3946 = vrot.lane.b32.xlu0 %v3880, 120
      %v3947 = vpop.permute.xlu0 %3946
      %3948 = vrot.lane.b32.xlu0 %v3881, 120
      %v3949 = vpop.permute.xlu0 %3948
      %3950 = vrot.lane.b32.xlu0 %v3882, 120
      %v3951 = vpop.permute.xlu0 %3950
      %3952 = vrot.lane.b32.xlu0 %v3883, 120
      %v3953 = vpop.permute.xlu0 %3952
      %3954 = vrot.lane.b32.xlu0 %v3884, 120
      %v3955 = vpop.permute.xlu0 %3954
      %3956 = vrot.lane.b32.xlu0 %v3885, 120
      %v3957 = vpop.permute.xlu0 %3956
      %3958 = vrot.lane.b32.xlu0 %v3886, 120
      %v3959 = vpop.permute.xlu0 %3958
      %3960 = vrot.lane.b32.xlu0 %v3887, 120
      %v3961 = vpop.permute.xlu0 %3960
      %3962 = vrot.lane.b32.xlu0 %v3888, 120
      %v3963 = vpop.permute.xlu0 %3962
      %3964 = vrot.lane.b32.xlu0 %v3889, 120
      %v3965 = vpop.permute.xlu0 %3964
      %3966 = vrot.lane.b32.xlu0 %v3890, 120
      %v3967 = vpop.permute.xlu0 %3966
      %3968 = vrot.lane.b32.xlu0 %v3891, 120
      %v3969 = vpop.permute.xlu0 %3968
      %3970 = vrot.lane.b32.xlu0 %v3892, 120
      %v3971 = vpop.permute.xlu0 %3970
      %3972 = vrot.lane.b32.xlu0 %v3893, 120
      %v3973 = vpop.permute.xlu0 %3972
      %3974 = vrot.lane.b32.xlu0 %v3894, 120
      %v3975 = vpop.permute.xlu0 %3974
      %3976 = vrot.lane.b32.xlu0 %v3895, 120
      %v3977 = vpop.permute.xlu0 %3976
      %3978 = vrot.lane.b32.xlu0 %v3896, 120
      %v3979 = vpop.permute.xlu0 %3978
      %3980 = vrot.lane.b32.xlu0 %v3897, 120
      %v3981 = vpop.permute.xlu0 %3980
      %3982 = vrot.lane.b32.xlu0 %v3898, 120
      %v3983 = vpop.permute.xlu0 %3982
      %3984 = vrot.lane.b32.xlu0 %v3899, 120
      %v3985 = vpop.permute.xlu0 %3984
      %3986 = vrot.lane.b32.xlu0 %v3900, 120
      %v3987 = vpop.permute.xlu0 %3986
      %3988 = vrot.lane.b32.xlu0 %v3901, 120
      %v3989 = vpop.permute.xlu0 %3988
      %3990 = vrot.lane.b32.xlu0 %v3902, 120
      %v3991 = vpop.permute.xlu0 %3990
      %3992 = vrot.lane.b32.xlu0 %v3903, 120
      %v3993 = vpop.permute.xlu0 %3992
      %3994 = vrot.lane.b32.xlu0 %v3904, 120
      %v3995 = vpop.permute.xlu0 %3994
      %3996 = vrot.lane.b32.xlu0 %v3905, 120
      %v3997 = vpop.permute.xlu0 %3996
      %3998 = vrot.lane.b32.xlu0 %v3906, 120
      %v3999 = vpop.permute.xlu0 %3998
      %4000 = vrot.lane.b32.xlu0 %v3907, 120
      %v4001 = vpop.permute.xlu0 %4000
      %4002 = vrot.lane.b32.xlu0 %v3908, 120
      %v4003 = vpop.permute.xlu0 %4002
      %4004 = vrot.lane.b32.xlu0 %v3909, 120
      %v4005 = vpop.permute.xlu0 %4004
      %v4038 = vadd.f32 %v3878, %v3943
      %v4039 = vadd.f32 %v3879, %v3945
      %v4040 = vadd.f32 %v3880, %v3947
      %v4041 = vadd.f32 %v3881, %v3949
      %v4042 = vadd.f32 %v3882, %v3951
      %v4043 = vadd.f32 %v3883, %v3953
      %v4044 = vadd.f32 %v3884, %v3955
      %v4045 = vadd.f32 %v3885, %v3957
      %v4046 = vadd.f32 %v3886, %v3959
      %v4047 = vadd.f32 %v3887, %v3961
      %v4048 = vadd.f32 %v3888, %v3963
      %v4049 = vadd.f32 %v3889, %v3965
      %v4050 = vadd.f32 %v3890, %v3967
      %v4051 = vadd.f32 %v3891, %v3969
      %v4052 = vadd.f32 %v3892, %v3971
      %v4053 = vadd.f32 %v3893, %v3973
      %v4054 = vadd.f32 %v3894, %v3975
      %v4055 = vadd.f32 %v3895, %v3977
      %v4056 = vadd.f32 %v3896, %v3979
      %v4057 = vadd.f32 %v3897, %v3981
      %v4058 = vadd.f32 %v3898, %v3983
      %v4059 = vadd.f32 %v3899, %v3985
      %v4060 = vadd.f32 %v3900, %v3987
      %v4061 = vadd.f32 %v3901, %v3989
      %v4062 = vadd.f32 %v3902, %v3991
      %v4063 = vadd.f32 %v3903, %v3993
      %v4064 = vadd.f32 %v3904, %v3995
      %v4065 = vadd.f32 %v3905, %v3997
      %v4066 = vadd.f32 %v3906, %v3999
      %v4067 = vadd.f32 %v3907, %v4001
      %v4068 = vadd.f32 %v3908, %v4003
      %v4069 = vadd.f32 %v3909, %v4005
      %4070 = vrot.lane.b32.xlu0 %v3878, 112
      %v4071 = vpop.permute.xlu0 %4070
      %4072 = vrot.lane.b32.xlu0 %v3879, 112
      %v4073 = vpop.permute.xlu0 %4072
      %4074 = vrot.lane.b32.xlu0 %v3880, 112
      %v4075 = vpop.permute.xlu0 %4074
      %4076 = vrot.lane.b32.xlu0 %v3881, 112
      %v4077 = vpop.permute.xlu0 %4076
      %4078 = vrot.lane.b32.xlu0 %v3882, 112
      %v4079 = vpop.permute.xlu0 %4078
      %4080 = vrot.lane.b32.xlu0 %v3883, 112
      %v4081 = vpop.permute.xlu0 %4080
      %4082 = vrot.lane.b32.xlu0 %v3884, 112
      %v4083 = vpop.permute.xlu0 %4082
      %4084 = vrot.lane.b32.xlu0 %v3885, 112
      %v4085 = vpop.permute.xlu0 %4084
      %4086 = vrot.lane.b32.xlu0 %v3886, 112
      %v4087 = vpop.permute.xlu0 %4086
      %4088 = vrot.lane.b32.xlu0 %v3887, 112
      %v4089 = vpop.permute.xlu0 %4088
      %4090 = vrot.lane.b32.xlu0 %v3888, 112
      %v4091 = vpop.permute.xlu0 %4090
      %4092 = vrot.lane.b32.xlu0 %v3889, 112
      %v4093 = vpop.permute.xlu0 %4092
      %4094 = vrot.lane.b32.xlu0 %v3890, 112
      %v4095 = vpop.permute.xlu0 %4094
      %4096 = vrot.lane.b32.xlu0 %v3891, 112
      %v4097 = vpop.permute.xlu0 %4096
      %4098 = vrot.lane.b32.xlu0 %v3892, 112
      %v4099 = vpop.permute.xlu0 %4098
      %4100 = vrot.lane.b32.xlu0 %v3893, 112
      %v4101 = vpop.permute.xlu0 %4100
      %4102 = vrot.lane.b32.xlu0 %v3894, 112
      %v4103 = vpop.permute.xlu0 %4102
      %4104 = vrot.lane.b32.xlu0 %v3895, 112
      %v4105 = vpop.permute.xlu0 %4104
      %4106 = vrot.lane.b32.xlu0 %v3896, 112
      %v4107 = vpop.permute.xlu0 %4106
      %4108 = vrot.lane.b32.xlu0 %v3897, 112
      %v4109 = vpop.permute.xlu0 %4108
      %4110 = vrot.lane.b32.xlu0 %v3898, 112
      %v4111 = vpop.permute.xlu0 %4110
      %4112 = vrot.lane.b32.xlu0 %v3899, 112
      %v4113 = vpop.permute.xlu0 %4112
      %4114 = vrot.lane.b32.xlu0 %v3900, 112
      %v4115 = vpop.permute.xlu0 %4114
      %4116 = vrot.lane.b32.xlu0 %v3901, 112
      %v4117 = vpop.permute.xlu0 %4116
      %4118 = vrot.lane.b32.xlu0 %v3902, 112
      %v4119 = vpop.permute.xlu0 %4118
      %4120 = vrot.lane.b32.xlu0 %v3903, 112
      %v4121 = vpop.permute.xlu0 %4120
      %4122 = vrot.lane.b32.xlu0 %v3904, 112
      %v4123 = vpop.permute.xlu0 %4122
      %4124 = vrot.lane.b32.xlu0 %v3905, 112
      %v4125 = vpop.permute.xlu0 %4124
      %4126 = vrot.lane.b32.xlu0 %v3906, 112
      %v4127 = vpop.permute.xlu0 %4126
      %4128 = vrot.lane.b32.xlu0 %v3907, 112
      %v4129 = vpop.permute.xlu0 %4128
      %4130 = vrot.lane.b32.xlu0 %v3908, 112
      %v4131 = vpop.permute.xlu0 %4130
      %4132 = vrot.lane.b32.xlu0 %v3909, 112
      %v4133 = vpop.permute.xlu0 %4132
      %v4166 = vadd.f32 %v4038, %v4071
      %v4167 = vadd.f32 %v4039, %v4073
      %v4168 = vadd.f32 %v4040, %v4075
      %v4169 = vadd.f32 %v4041, %v4077
      %v4170 = vadd.f32 %v4042, %v4079
      %v4171 = vadd.f32 %v4043, %v4081
      %v4172 = vadd.f32 %v4044, %v4083
      %v4173 = vadd.f32 %v4045, %v4085
      %v4174 = vadd.f32 %v4046, %v4087
      %v4175 = vadd.f32 %v4047, %v4089
      %v4176 = vadd.f32 %v4048, %v4091
      %v4177 = vadd.f32 %v4049, %v4093
      %v4178 = vadd.f32 %v4050, %v4095
      %v4179 = vadd.f32 %v4051, %v4097
      %v4180 = vadd.f32 %v4052, %v4099
      %v4181 = vadd.f32 %v4053, %v4101
      %v4182 = vadd.f32 %v4054, %v4103
      %v4183 = vadd.f32 %v4055, %v4105
      %v4184 = vadd.f32 %v4056, %v4107
      %v4185 = vadd.f32 %v4057, %v4109
      %v4186 = vadd.f32 %v4058, %v4111
      %v4187 = vadd.f32 %v4059, %v4113
      %v4188 = vadd.f32 %v4060, %v4115
      %v4189 = vadd.f32 %v4061, %v4117
      %v4190 = vadd.f32 %v4062, %v4119
      %v4191 = vadd.f32 %v4063, %v4121
      %v4192 = vadd.f32 %v4064, %v4123
      %v4193 = vadd.f32 %v4065, %v4125
      %v4194 = vadd.f32 %v4066, %v4127
      %v4195 = vadd.f32 %v4067, %v4129
      %v4196 = vadd.f32 %v4068, %v4131
      %v4197 = vadd.f32 %v4069, %v4133
      %4198 = vrot.lane.b32.xlu0 %v3878, 104
      %v4199 = vpop.permute.xlu0 %4198
      %4200 = vrot.lane.b32.xlu0 %v3879, 104
      %v4201 = vpop.permute.xlu0 %4200
      %4202 = vrot.lane.b32.xlu0 %v3880, 104
      %v4203 = vpop.permute.xlu0 %4202
      %4204 = vrot.lane.b32.xlu0 %v3881, 104
      %v4205 = vpop.permute.xlu0 %4204
      %4206 = vrot.lane.b32.xlu0 %v3882, 104
      %v4207 = vpop.permute.xlu0 %4206
      %4208 = vrot.lane.b32.xlu0 %v3883, 104
      %v4209 = vpop.permute.xlu0 %4208
      %4210 = vrot.lane.b32.xlu0 %v3884, 104
      %v4211 = vpop.permute.xlu0 %4210
      %4212 = vrot.lane.b32.xlu0 %v3885, 104
      %v4213 = vpop.permute.xlu0 %4212
      %4214 = vrot.lane.b32.xlu0 %v3886, 104
      %v4215 = vpop.permute.xlu0 %4214
      %4216 = vrot.lane.b32.xlu0 %v3887, 104
      %v4217 = vpop.permute.xlu0 %4216
      %4218 = vrot.lane.b32.xlu0 %v3888, 104
      %v4219 = vpop.permute.xlu0 %4218
      %4220 = vrot.lane.b32.xlu0 %v3889, 104
      %v4221 = vpop.permute.xlu0 %4220
      %4222 = vrot.lane.b32.xlu0 %v3890, 104
      %v4223 = vpop.permute.xlu0 %4222
      %4224 = vrot.lane.b32.xlu0 %v3891, 104
      %v4225 = vpop.permute.xlu0 %4224
      %4226 = vrot.lane.b32.xlu0 %v3892, 104
      %v4227 = vpop.permute.xlu0 %4226
      %4228 = vrot.lane.b32.xlu0 %v3893, 104
      %v4229 = vpop.permute.xlu0 %4228
      %4230 = vrot.lane.b32.xlu0 %v3894, 104
      %v4231 = vpop.permute.xlu0 %4230
      %4232 = vrot.lane.b32.xlu0 %v3895, 104
      %v4233 = vpop.permute.xlu0 %4232
      %4234 = vrot.lane.b32.xlu0 %v3896, 104
      %v4235 = vpop.permute.xlu0 %4234
      %4236 = vrot.lane.b32.xlu0 %v3897, 104
      %v4237 = vpop.permute.xlu0 %4236
      %4238 = vrot.lane.b32.xlu0 %v3898, 104
      %v4239 = vpop.permute.xlu0 %4238
      %4240 = vrot.lane.b32.xlu0 %v3899, 104
      %v4241 = vpop.permute.xlu0 %4240
      %4242 = vrot.lane.b32.xlu0 %v3900, 104
      %v4243 = vpop.permute.xlu0 %4242
      %4244 = vrot.lane.b32.xlu0 %v3901, 104
      %v4245 = vpop.permute.xlu0 %4244
      %4246 = vrot.lane.b32.xlu0 %v3902, 104
      %v4247 = vpop.permute.xlu0 %4246
      %4248 = vrot.lane.b32.xlu0 %v3903, 104
      %v4249 = vpop.permute.xlu0 %4248
      %4250 = vrot.lane.b32.xlu0 %v3904, 104
      %v4251 = vpop.permute.xlu0 %4250
      %4252 = vrot.lane.b32.xlu0 %v3905, 104
      %v4253 = vpop.permute.xlu0 %4252
      %4254 = vrot.lane.b32.xlu0 %v3906, 104
      %v4255 = vpop.permute.xlu0 %4254
      %4256 = vrot.lane.b32.xlu0 %v3907, 104
      %v4257 = vpop.permute.xlu0 %4256
      %4258 = vrot.lane.b32.xlu0 %v3908, 104
      %v4259 = vpop.permute.xlu0 %4258
      %4260 = vrot.lane.b32.xlu0 %v3909, 104
      %v4261 = vpop.permute.xlu0 %4260
      %v4294 = vadd.f32 %v4166, %v4199
      %v4295 = vadd.f32 %v4167, %v4201
      %v4296 = vadd.f32 %v4168, %v4203
      %v4297 = vadd.f32 %v4169, %v4205
      %v4298 = vadd.f32 %v4170, %v4207
      %v4299 = vadd.f32 %v4171, %v4209
      %v4300 = vadd.f32 %v4172, %v4211
      %v4301 = vadd.f32 %v4173, %v4213
      %v4302 = vadd.f32 %v4174, %v4215
      %v4303 = vadd.f32 %v4175, %v4217
      %v4304 = vadd.f32 %v4176, %v4219
      %v4305 = vadd.f32 %v4177, %v4221
      %v4306 = vadd.f32 %v4178, %v4223
      %v4307 = vadd.f32 %v4179, %v4225
      %v4308 = vadd.f32 %v4180, %v4227
      %v4309 = vadd.f32 %v4181, %v4229
      %v4310 = vadd.f32 %v4182, %v4231
      %v4311 = vadd.f32 %v4183, %v4233
      %v4312 = vadd.f32 %v4184, %v4235
      %v4313 = vadd.f32 %v4185, %v4237
      %v4314 = vadd.f32 %v4186, %v4239
      %v4315 = vadd.f32 %v4187, %v4241
      %v4316 = vadd.f32 %v4188, %v4243
      %v4317 = vadd.f32 %v4189, %v4245
      %v4318 = vadd.f32 %v4190, %v4247
      %v4319 = vadd.f32 %v4191, %v4249
      %v4320 = vadd.f32 %v4192, %v4251
      %v4321 = vadd.f32 %v4193, %v4253
      %v4322 = vadd.f32 %v4194, %v4255
      %v4323 = vadd.f32 %v4195, %v4257
      %v4324 = vadd.f32 %v4196, %v4259
      %v4325 = vadd.f32 %v4197, %v4261
      %v4326 = vmul.f32 %v3750, 1.442695
      %v4327 = vpow.pop %v4326
      %v4328 = vmul.f32 %v3751, 1.442695
      %v4329 = vpow.pop %v4328
      %v4330 = vmul.f32 %v3752, 1.442695
      %v4331 = vpow.pop %v4330
      %v4332 = vmul.f32 %v3753, 1.442695
      %v4333 = vpow.pop %v4332
      %v4334 = vmul.f32 %v3754, 1.442695
      %v4335 = vpow.pop %v4334
      %v4336 = vmul.f32 %v3755, 1.442695
      %v4337 = vpow.pop %v4336
      %v4338 = vmul.f32 %v3756, 1.442695
      %v4339 = vpow.pop %v4338
      %v4340 = vmul.f32 %v3757, 1.442695
      %v4341 = vpow.pop %v4340
      %v4342 = vmul.f32 %v3758, 1.442695
      %v4343 = vpow.pop %v4342
      %v4344 = vmul.f32 %v3759, 1.442695
      %v4345 = vpow.pop %v4344
      %v4346 = vmul.f32 %v3760, 1.442695
      %v4347 = vpow.pop %v4346
      %v4348 = vmul.f32 %v3761, 1.442695
      %v4349 = vpow.pop %v4348
      %v4350 = vmul.f32 %v3762, 1.442695
      %v4351 = vpow.pop %v4350
      %v4352 = vmul.f32 %v3763, 1.442695
      %v4353 = vpow.pop %v4352
      %v4354 = vmul.f32 %v3764, 1.442695
      %v4355 = vpow.pop %v4354
      %v4356 = vmul.f32 %v3765, 1.442695
      %v4357 = vpow.pop %v4356
      %v4358 = vmul.f32 %v3766, 1.442695
      %v4359 = vpow.pop %v4358
      %v4360 = vmul.f32 %v3767, 1.442695
      %v4361 = vpow.pop %v4360
      %v4362 = vmul.f32 %v3768, 1.442695
      %v4363 = vpow.pop %v4362
      %v4364 = vmul.f32 %v3769, 1.442695
      %v4365 = vpow.pop %v4364
      %v4366 = vmul.f32 %v3770, 1.442695
      %v4367 = vpow.pop %v4366
      %v4368 = vmul.f32 %v3771, 1.442695
      %v4369 = vpow.pop %v4368
      %v4370 = vmul.f32 %v3772, 1.442695
      %v4371 = vpow.pop %v4370
      %v4372 = vmul.f32 %v3773, 1.442695
      %v4373 = vpow.pop %v4372
      %v4374 = vmul.f32 %v3774, 1.442695
      %v4375 = vpow.pop %v4374
      %v4376 = vmul.f32 %v3775, 1.442695
      %v4377 = vpow.pop %v4376
      %v4378 = vmul.f32 %v3776, 1.442695
      %v4379 = vpow.pop %v4378
      %v4380 = vmul.f32 %v3777, 1.442695
      %v4381 = vpow.pop %v4380
      %v4382 = vmul.f32 %v3778, 1.442695
      %v4383 = vpow.pop %v4382
      %v4384 = vmul.f32 %v3779, 1.442695
      %v4385 = vpow.pop %v4384
      %v4386 = vmul.f32 %v3780, 1.442695
      %v4387 = vpow.pop %v4386
      %v4388 = vmul.f32 %v3781, 1.442695
      %v4389 = vpow.pop %v4388
      %v4390 = vmul.f32 %v4327, %v4294
      %v4391 = vmul.f32 %v4329, %v4295
      %v4392 = vmul.f32 %v4331, %v4296
      %v4393 = vmul.f32 %v4333, %v4297
      %v4394 = vmul.f32 %v4335, %v4298
      %v4395 = vmul.f32 %v4337, %v4299
      %v4396 = vmul.f32 %v4339, %v4300
      %v4397 = vmul.f32 %v4341, %v4301
      %v4398 = vmul.f32 %v4343, %v4302
      %v4399 = vmul.f32 %v4345, %v4303
      %v4400 = vmul.f32 %v4347, %v4304
      %v4401 = vmul.f32 %v4349, %v4305
      %v4402 = vmul.f32 %v4351, %v4306
      %v4403 = vmul.f32 %v4353, %v4307
      %v4404 = vmul.f32 %v4355, %v4308
      %v4405 = vmul.f32 %v4357, %v4309
      %v4406 = vmul.f32 %v4359, %v4310
      %v4407 = vmul.f32 %v4361, %v4311
      %v4408 = vmul.f32 %v4363, %v4312
      %v4409 = vmul.f32 %v4365, %v4313
      %v4410 = vmul.f32 %v4367, %v4314
      %v4411 = vmul.f32 %v4369, %v4315
      %v4412 = vmul.f32 %v4371, %v4316
      %v4413 = vmul.f32 %v4373, %v4317
      %v4414 = vmul.f32 %v4375, %v4318
      %v4415 = vmul.f32 %v4377, %v4319
      %v4416 = vmul.f32 %v4379, %v4320
      %v4417 = vmul.f32 %v4381, %v4321
      %v4418 = vmul.f32 %v4383, %v4322
      %v4419 = vmul.f32 %v4385, %v4323
      %v4420 = vmul.f32 %v4387, %v4324
      %v4421 = vmul.f32 %v4389, %v4325
      %v4422 = vadd.f32 %v3174, %v4390
      %v4423 = vadd.f32 %v3175, %v4391
      %v4424 = vadd.f32 %v3176, %v4392
      %v4425 = vadd.f32 %v3177, %v4393
      %v4426 = vadd.f32 %v3178, %v4394
      %v4427 = vadd.f32 %v3179, %v4395
      %v4428 = vadd.f32 %v3180, %v4396
      %v4429 = vadd.f32 %v3181, %v4397
      %v4430 = vadd.f32 %v3182, %v4398
      %v4431 = vadd.f32 %v3183, %v4399
      %v4432 = vadd.f32 %v3184, %v4400
      %v4433 = vadd.f32 %v3185, %v4401
      %v4434 = vadd.f32 %v3186, %v4402
      %v4435 = vadd.f32 %v3187, %v4403
      %v4436 = vadd.f32 %v3188, %v4404
      %v4437 = vadd.f32 %v3189, %v4405
      %v4438 = vadd.f32 %v3190, %v4406
      %v4439 = vadd.f32 %v3191, %v4407
      %v4440 = vadd.f32 %v3192, %v4408
      %v4441 = vadd.f32 %v3193, %v4409
      %v4442 = vadd.f32 %v3194, %v4410
      %v4443 = vadd.f32 %v3195, %v4411
      %v4444 = vadd.f32 %v3196, %v4412
      %v4445 = vadd.f32 %v3197, %v4413
      %v4446 = vadd.f32 %v3198, %v4414
      %v4447 = vadd.f32 %v3199, %v4415
      %v4448 = vadd.f32 %v3200, %v4416
      %v4449 = vadd.f32 %v3201, %v4417
      %v4450 = vadd.f32 %v3202, %v4418
      %v4451 = vadd.f32 %v3203, %v4419
      %v4452 = vadd.f32 %v3204, %v4420
      %v4453 = vadd.f32 %v3205, %v4421
      %v4454 = vmax.f32 %v4422, -1.0
      %v4455 = vmax.f32 %v4423, -1.0
      %v4456 = vmax.f32 %v4424, -1.0
      %v4457 = vmax.f32 %v4425, -1.0
      %v4458 = vmax.f32 %v4426, -1.0
      %v4459 = vmax.f32 %v4427, -1.0
      %v4460 = vmax.f32 %v4428, -1.0
      %v4461 = vmax.f32 %v4429, -1.0
      %v4462 = vmax.f32 %v4430, -1.0
      %v4463 = vmax.f32 %v4431, -1.0
      %v4464 = vmax.f32 %v4432, -1.0
      %v4465 = vmax.f32 %v4433, -1.0
      %v4466 = vmax.f32 %v4434, -1.0
      %v4467 = vmax.f32 %v4435, -1.0
      %v4468 = vmax.f32 %v4436, -1.0
      %v4469 = vmax.f32 %v4437, -1.0
      %v4470 = vmax.f32 %v4438, -1.0
      %v4471 = vmax.f32 %v4439, -1.0
      %v4472 = vmax.f32 %v4440, -1.0
      %v4473 = vmax.f32 %v4441, -1.0
      %v4474 = vmax.f32 %v4442, -1.0
      %v4475 = vmax.f32 %v4443, -1.0
      %v4476 = vmax.f32 %v4444, -1.0
      %v4477 = vmax.f32 %v4445, -1.0
      %v4478 = vmax.f32 %v4446, -1.0
      %v4479 = vmax.f32 %v4447, -1.0
      %v4480 = vmax.f32 %v4448, -1.0
      %v4481 = vmax.f32 %v4449, -1.0
      %v4482 = vmax.f32 %v4450, -1.0
      %v4483 = vmax.f32 %v4451, -1.0
      %v4484 = vmax.f32 %v4452, -1.0
      %v4485 = vmax.f32 %v4453, -1.0
      %v4486 = vmin.f32 %v4454, 1.0
      %v4487 = vmin.f32 %v4455, 1.0
      %v4488 = vmin.f32 %v4456, 1.0
      %v4489 = vmin.f32 %v4457, 1.0
      %v4490 = vmin.f32 %v4458, 1.0
      %v4491 = vmin.f32 %v4459, 1.0
      %v4492 = vmin.f32 %v4460, 1.0
      %v4493 = vmin.f32 %v4461, 1.0
      %v4494 = vmin.f32 %v4462, 1.0
      %v4495 = vmin.f32 %v4463, 1.0
      %v4496 = vmin.f32 %v4464, 1.0
      %v4497 = vmin.f32 %v4465, 1.0
      %v4498 = vmin.f32 %v4466, 1.0
      %v4499 = vmin.f32 %v4467, 1.0
      %v4500 = vmin.f32 %v4468, 1.0
      %v4501 = vmin.f32 %v4469, 1.0
      %v4502 = vmin.f32 %v4470, 1.0
      %v4503 = vmin.f32 %v4471, 1.0
      %v4504 = vmin.f32 %v4472, 1.0
      %v4505 = vmin.f32 %v4473, 1.0
      %v4506 = vmin.f32 %v4474, 1.0
      %v4507 = vmin.f32 %v4475, 1.0
      %v4508 = vmin.f32 %v4476, 1.0
      %v4509 = vmin.f32 %v4477, 1.0
      %v4510 = vmin.f32 %v4478, 1.0
      %v4511 = vmin.f32 %v4479, 1.0
      %v4512 = vmin.f32 %v4480, 1.0
      %v4513 = vmin.f32 %v4481, 1.0
      %v4514 = vmin.f32 %v4482, 1.0
      %v4515 = vmin.f32 %v4483, 1.0
      %v4516 = vmin.f32 %v4484, 1.0
      %v4517 = vmin.f32 %v4485, 1.0
      %vm4518 = vcmask 64512
      %4519 = vst.msk [vmem:[%s280] sm:$0xff] %vm4518, %v4486
      %4520 = vst.msk [vmem:[%s280 + $0x8] sm:$0xff] %vm4518, %v4487
      %4521 = vst.msk [vmem:[%s280 + $0x10] sm:$0xff] %vm4518, %v4488
      %4522 = vst.msk [vmem:[%s280 + $0x18] sm:$0xff] %vm4518, %v4489
      %4523 = vst.msk [vmem:[%s280 + $0x20] sm:$0xff] %vm4518, %v4490
      %4524 = vst.msk [vmem:[%s280 + $0x28] sm:$0xff] %vm4518, %v4491
      %4525 = vst.msk [vmem:[%s280 + $0x30] sm:$0xff] %vm4518, %v4492
      %4526 = vst.msk [vmem:[%s280 + $0x38] sm:$0xff] %vm4518, %v4493
      %4527 = vst.msk [vmem:[%s280 + $0x40] sm:$0xff] %vm4518, %v4494
      %4528 = vst.msk [vmem:[%s280 + $0x48] sm:$0xff] %vm4518, %v4495
      %4529 = vst.msk [vmem:[%s280 + $0x50] sm:$0xff] %vm4518, %v4496
      %4530 = vst.msk [vmem:[%s280 + $0x58] sm:$0xff] %vm4518, %v4497
      %4531 = vst.msk [vmem:[%s280 + $0x60] sm:$0xff] %vm4518, %v4498
      %4532 = vst.msk [vmem:[%s280 + $0x68] sm:$0xff] %vm4518, %v4499
      %4533 = vst.msk [vmem:[%s280 + $0x70] sm:$0xff] %vm4518, %v4500
      %4534 = vst.msk [vmem:[%s280 + $0x78] sm:$0xff] %vm4518, %v4501
      %4535 = vst.msk [vmem:[%s280 + $0x80] sm:$0xff] %vm4518, %v4502
      %4536 = vst.msk [vmem:[%s280 + $0x88] sm:$0xff] %vm4518, %v4503
      %4537 = vst.msk [vmem:[%s280 + $0x90] sm:$0xff] %vm4518, %v4504
      %4538 = vst.msk [vmem:[%s280 + $0x98] sm:$0xff] %vm4518, %v4505
      %4539 = vst.msk [vmem:[%s280 + $0xa0] sm:$0xff] %vm4518, %v4506
      %4540 = vst.msk [vmem:[%s280 + $0xa8] sm:$0xff] %vm4518, %v4507
      %4541 = vst.msk [vmem:[%s280 + $0xb0] sm:$0xff] %vm4518, %v4508
      %4542 = vst.msk [vmem:[%s280 + $0xb8] sm:$0xff] %vm4518, %v4509
      %4543 = vst.msk [vmem:[%s280 + $0xc0] sm:$0xff] %vm4518, %v4510
      %4544 = vst.msk [vmem:[%s280 + $0xc8] sm:$0xff] %vm4518, %v4511
      %4545 = vst.msk [vmem:[%s280 + $0xd0] sm:$0xff] %vm4518, %v4512
      %4546 = vst.msk [vmem:[%s280 + $0xd8] sm:$0xff] %vm4518, %v4513
      %4547 = vst.msk [vmem:[%s280 + $0xe0] sm:$0xff] %vm4518, %v4514
      %4548 = vst.msk [vmem:[%s280 + $0xe8] sm:$0xff] %vm4518, %v4515
      %4549 = vst.msk [vmem:[%s280 + $0xf0] sm:$0xff] %vm4518, %v4516
      %4550 = vst.msk [vmem:[%s280 + $0xf8] sm:$0xff] %vm4518, %v4517
      %s4551 = smul.u32 32, %s18
      %p4552 = scmp.lt.s32.totalorder %s4551, 63
      %s4553 = scalar_select %p4552, %s4551, 63
      %s4554 = smul.addr %s4553, 8
      %s4555 = scalar_lea.vmem %s7, %s4554
      // Predicated region
      $region49: #{tpu_custom_call.1} parent=47 // pred_check
        %p4556 = pneg %p188
      $region50: #{tpu_custom_call.1} parent=47 // pred_check_branch
        %4558 = sbr.rel (%p4556) target = $region52
      $region51: #{tpu_custom_call.1} parent=47 // pred_region
        %s4559 = smul.u32 32, %s18
      $region52: #{tpu_custom_call.1} parent=47 // pred_fallthru
        _
    $region48: #{tpu_custom_call.1} parent=5 // pred_fallthru
      _
    %p4560 = scmp.le.s32.totalorder 2, %s13
    // Predicated region
    $region53: #{tpu_custom_call.1} parent=5 // pred_check
      %p4561 = pneg %p4560
    $region54: #{tpu_custom_call.1} parent=5 // pred_check_branch
      %4563 = sbr.rel (%p4561) target = $region56
    $region55: #{tpu_custom_call.1} parent=5 // pred_region
      %s4564 = ssub.s32 %s13, 2
      // Predicated region
      $region57: #{tpu_custom_call.1} parent=55 // pred_check
        %p4565 = pneg %p194
      $region58: #{tpu_custom_call.1} parent=55 // pred_check_branch
        %4567 = sbr.rel (%p4565) target = $region60
      $region59: #{tpu_custom_call.1} parent=55 // pred_region
        %s4568 = smul.u32 32, %s19
        %p4569 = scmp.lt.s32.totalorder %s4568, 63
        %s4570 = scalar_select %p4569, %s4568, 63
        %s4571 = smul.addr %s4570, 8
        %s4572 = scalar_lea.vmem %s7, %s4571
      $region60: #{tpu_custom_call.1} parent=55 // pred_fallthru
        _
    $region56: #{tpu_custom_call.1} parent=5 // pred_fallthru
      _
  $region6: #{tpu_custom_call.1} parent=0 // loop_footer
    %s17 = sadd.s32 1, %s13
  $region7: #{tpu_custom_call.1} parent=0 // loop_footer_branch
    %12 = sbr.rel target = $region3
  $region8: #{tpu_custom_call.1} parent=0 // loop_exit
    _

</llo_original>
